<compile_context>
chip_gen: v6e
topology: v6e:2x2x1
jax: 0.10.0
libtpu: 0.0.40
codegen_flags: <defaults>
</compile_context>

<pallas_src>
import functools

import numpy as np
import jax
import jax.numpy as jnp
from jax.experimental import pallas as pl
from jax.experimental.pallas import tpu as pltpu


def _round_up(x, m):
    return ((x + m - 1) // m) * m


# ----------------------------------------------------------------------------
# Fused Pallas kernel: all layers, all telemetry channels, fc head — one
# program, everything VMEM/vreg resident.
# ----------------------------------------------------------------------------
def _fused_lstm_call(x_stack, wih0, wihr, whh, b, wfc, bfc, *, B, T, L, CH, G):
    TB, CDp = x_stack.shape
    Lr = wihr.shape[0]
    G4 = 4 * G

    def kernel(x_ref, wih0_ref, wihr_ref, whh_ref, b_ref, wfc_ref, bfc_ref,
               y_ref, hbuf0, hbuf1):
        # x_ref    : (T*B, C*Dp)   layer-0 inputs, time-major, per-channel slots
        # wih0_ref : (C*Dp, 4G)    block-diag layer-0 input weights (g-gate x2)
        # wihr_ref : (Lr, C*H, 4G) block-diag input weights, layers 1..L-1
        # whh_ref  : (L,  C*H, 4G) block-diag recurrent weights (g-gate x2)
        # b_ref    : (L,  1,   4G) b_ih + b_hh per layer (g-gate slice x2)
        # wfc_ref  : (C*H, G)      block fc weights (column c = channel c)
        # bfc_ref  : (1, G)        fc bias (column c = channel c)
        # y_ref    : (T*B, G)      lane-dense output slab
        # hbuf0/1  : (T*B, C*H)    ping-pong hidden-sequence VMEM scratch
        bufs = (hbuf0, hbuf1)
        for l in range(L):                         # static fused layer loop
            if l == 0:
                xin = x_ref[...]                   # (TB, C*Dp)
                win = wih0_ref[...]                # (C*Dp, 4G)
            else:
                xin = bufs[(l - 1) % 2][...]       # (TB, C*H)
                win = wihr_ref[l - 1]              # (C*H, 4G)
            whn = whh_ref[l]                       # (C*H, 4G)
            bl = b_ref[l]                          # (1, 4G)

            # Batched input projection for all timesteps at once (off the
            # recurrent chain).  Kept in vregs; sliced statically below.
            xg = jnp.dot(xin, win, preferred_element_type=jnp.float32) + bl

            out_buf = bufs[l % 2]
            h = jnp.zeros((B, CH), jnp.float32)
            c = jnp.zeros((B, CH), jnp.float32)
            # Fully unrolled recurrence (T is small and static).
            # TODO(synk): if T grows, unroll in chunks to bound vreg pressure.
            for t in range(T):
                gates = xg[t * B:(t + 1) * B, :] + jnp.dot(
                    h, whn, preferred_element_type=jnp.float32)   # (B, 4G)
                # Single sigmoid over the whole gate vector; the cell-gate
                # tanh is recovered from the x2-prescaled g columns:
                #   tanh(x) = 2*sigmoid(2x) - 1.
                s = jax.nn.sigmoid(gates)
                i_g = s[:, 0 * G:0 * G + CH]
                f_g = s[:, 1 * G:1 * G + CH]
                g_g = 2.0 * s[:, 2 * G:2 * G + CH] - 1.0
                o_g = s[:, 3 * G:3 * G + CH]
                c = f_g * c + i_g * g_g
                h = o_g * jnp.tanh(c)
                out_buf[t * B:(t + 1) * B, :] = h

        # Fused fc head: one block-structured matmul -> lane-dense output.
        hseq = bufs[(L - 1) % 2][...]                            # (TB, C*H)
        y_ref[...] = (jnp.dot(hseq, wfc_ref[...],
                              preferred_element_type=jnp.float32)
                      + bfc_ref[...])

    return pl.pallas_call(
        kernel,
        out_shape=jax.ShapeDtypeStruct((TB, G), jnp.float32),
        grid_spec=pltpu.PrefetchScalarGridSpec(
            num_scalar_prefetch=0,
            grid=(1,),     # channels are lane-batched: single program
            in_specs=[
                pl.BlockSpec((TB, CDp), lambda i: (0, 0)),
                pl.BlockSpec((CDp, G4), lambda i: (0, 0)),
                pl.BlockSpec((Lr, CH, G4), lambda i: (0, 0, 0)),
                pl.BlockSpec((L, CH, G4), lambda i: (0, 0, 0)),
                pl.BlockSpec((L, 1, G4), lambda i: (0, 0, 0)),
                pl.BlockSpec((CH, G), lambda i: (0, 0)),
                pl.BlockSpec((1, G), lambda i: (0, 0)),
            ],
            out_specs=pl.BlockSpec((TB, G), lambda i: (0, 0)),
            scratch_shapes=[
                pltpu.VMEM((TB, CH), jnp.float32),
                pltpu.VMEM((TB, CH), jnp.float32),
            ],
        ),
        compiler_params=pltpu.CompilerParams(
            dimension_semantics=("arbitrary",),
            # Explicit budget (review): footprint here is < 2 MiB; 32 MiB is
            # the v7x scoped default — re-derive if B/T/H/C ever scale up.
            vmem_limit_bytes=32 * 1024 * 1024,
        ),
    )(x_stack, wih0, wihr, whh, b, wfc, bfc)


# ----------------------------------------------------------------------------
# Parameter init (deterministic, PyTorch-like uniform(-1/sqrt(H), 1/sqrt(H)))
# ----------------------------------------------------------------------------
def init_advanced_lstm_params(key, input_size, hidden_size, num_layers,
                              telemetry_channels):
    params = {}
    bound = 1.0 / (hidden_size ** 0.5)
    for c in telemetry_channels:
        layers = []
        for l in range(num_layers):
            d_in = input_size if l == 0 else hidden_size
            key, k1, k2, k3, k4 = jax.random.split(key, 5)
            layers.append({
                "wih": jax.random.uniform(k1, (4 * hidden_size, d_in),
                                          jnp.float32, -bound, bound),
                "whh": jax.random.uniform(k2, (4 * hidden_size, hidden_size),
                                          jnp.float32, -bound, bound),
                "bih": jax.random.uniform(k3, (4 * hidden_size,),
                                          jnp.float32, -bound, bound),
                "bhh": jax.random.uniform(k4, (4 * hidden_size,),
                                          jnp.float32, -bound, bound),
            })
        key, k5, k6 = jax.random.split(key, 3)
        params[c] = {
            "lstm": layers,
            "fc": {
                "w": jax.random.uniform(k5, (1, hidden_size),
                                        jnp.float32, -bound, bound),
                "b": jax.random.uniform(k6, (1,), jnp.float32, -bound, bound),
            },
        }
    return params


# ----------------------------------------------------------------------------
# One-time weight prep: block-diagonal, gate-group-major, 128-lane aligned.
# g-gate columns are pre-scaled by 2 so the kernel needs a single sigmoid.
# ----------------------------------------------------------------------------
def prepare_stacked_params(params, telemetry_channels):
    C = len(telemetry_channels)
    layers0 = params[telemetry_channels[0]]["lstm"]
    L = len(layers0)
    H = layers0[0]["whh"].shape[1]
    D = layers0[0]["wih"].shape[1]
    Dp = max(8, _round_up(D, 8))       # sublane-friendly layer-0 channel slot
    CH = C * H
    G = _round_up(max(CH, 1), 128)     # lane stride per gate group (aligned)
    Lr = max(L - 1, 1)

    wih0 = np.zeros((C * Dp, 4 * G), np.float32)
    wihr = np.zeros((Lr, CH, 4 * G), np.float32)
    whh = np.zeros((L, CH, 4 * G), np.float32)
    b = np.zeros((L, 1, 4 * G), np.float32)
    wfc = np.zeros((CH, G), np.float32)
    bfc = np.zeros((1, G), np.float32)

    for ci, cname in enumerate(telemetry_channels):
        for l, lp in enumerate(params[cname]["lstm"]):
            w_ih = np.asarray(lp["wih"], np.float32)             # (4H, Din)
            w_hh = np.asarray(lp["whh"], np.float32)             # (4H, H)
            bias = (np.asarray(lp["bih"], np.float32)
                    + np.asarray(lp["bhh"], np.float32))         # (4H,)
            for g in range(4):                                   # i, f, g, o
                scale = 2.0 if g == 2 else 1.0   # tanh(x) = 2*sigmoid(2x) - 1
                col = slice(g * G + ci * H, g * G + (ci + 1) * H)
                wg_ih = scale * w_ih[g * H:(g + 1) * H, :].T     # (Din, H)
                wg_hh = scale * w_hh[g * H:(g + 1) * H, :].T     # (H, H)
                if l == 0:
                    wih0[ci * Dp:ci * Dp + wg_ih.shape[0], col] = wg_ih
                else:
                    wihr[l - 1, ci * H:(ci + 1) * H, col] = wg_ih
                whh[l, ci * H:(ci + 1) * H, col] = wg_hh
                b[l, 0, col] = scale * bias[g * H:(g + 1) * H]
        wfc[ci * H:(ci + 1) * H, ci] = np.asarray(
            params[cname]["fc"]["w"], np.float32)[0, :]
        bfc[0, ci] = float(np.asarray(params[cname]["fc"]["b"])[0])

    return {
        "wih0": jnp.asarray(wih0),   # (C*Dp, 4G)
        "wihr": jnp.asarray(wihr),   # (Lr, C*H, 4G)
        "whh": jnp.asarray(whh),     # (L, C*H, 4G)
        "b": jnp.asarray(b),         # (L, 1, 4G)
        "wfc": jnp.asarray(wfc),     # (C*H, G)
        "bfc": jnp.asarray(bfc),     # (1, G)
    }


# ----------------------------------------------------------------------------
# Forward pass mirroring AdvancedLSTM.forward (jitted; column indices static)
# ----------------------------------------------------------------------------
def _drop_column(x, idx):
    # Mirrors the PyTorch branch structure exactly (incl. the idx == F branch).
    # TODO(synk): the idx == F branch keeps all F features; PyTorch itself
    # would then fail the LSTM input_size check — not exercised here.
    F = x.shape[2]
    if idx == F:
        return x[:, :, :idx]
    elif idx == 0:
        return x[:, :, 1:]
    else:
        return jnp.concatenate((x[:, :, :idx], x[:, :, idx + 1:]), axis=2)


@functools.partial(jax.jit, static_argnums=(2,))
def _forward_impl(x, stacked, col_idx):
    C = len(col_idx)
    CH = stacked["wfc"].shape[0]
    G = stacked["wfc"].shape[1]
    L = stacked["whh"].shape[0]
    Dp = stacked["wih0"].shape[0] // C
    B, T, _ = x.shape

    xs = []
    for idx in col_idx:
        xm = _drop_column(x, idx)                               # (B, T, D)
        D = xm.shape[2]
        if D > Dp:
            raise ValueError("modified input width exceeds the prepared "
                             "channel slot width (input_size mismatch)")
        xm = jnp.transpose(xm, (1, 0, 2)).astype(jnp.float32)   # (T, B, D)
        xm = xm.reshape(T * B, D)
        if D < Dp:
            xm = jnp.pad(xm, ((0, 0), (0, Dp - D)))
        xs.append(xm)
    x_stack = jnp.concatenate(xs, axis=1)                       # (T*B, C*Dp)

    y = _fused_lstm_call(x_stack, stacked["wih0"], stacked["wihr"],
                         stacked["whh"], stacked["b"], stacked["wfc"],
                         stacked["bfc"], B=B, T=T, L=L, CH=CH, G=G)

    outputs = [jnp.transpose(y[:, ci].reshape(T, B), (1, 0))    # (B, T)
               for ci in range(C)]
    ys_true = [x[:, :, idx] for idx in col_idx]
    return outputs, ys_true


def advanced_lstm_forward(stacked, x, telemetry_channels, columns_id):
    col_idx = tuple(int(columns_id[c]) for c in telemetry_channels)
    return _forward_impl(x, stacked, col_idx)


# ----------------------------------------------------------------------------
# Pure-JAX reference (correctness check against the original gate math)
# ----------------------------------------------------------------------------
def _lstm_ref(x_mod, layers, wfc, bfc):
    B, T, _ = x_mod.shape
    h_in = x_mod.astype(jnp.float32)
    for lp in layers:
        H = lp["whh"].shape[1]
        h = jnp.zeros((B, H), jnp.float32)
        c = jnp.zeros((B, H), jnp.float32)
        hs = []
        for t in range(T):
            gates = (h_in[:, t, :] @ lp["wih"].T + lp["bih"]
                     + h @ lp["whh"].T + lp["bhh"])
            i = jax.nn.sigmoid(gates[:, :H])
            f = jax.nn.sigmoid(gates[:, H:2 * H])
            g = jnp.tanh(gates[:, 2 * H:3 * H])
            o = jax.nn.sigmoid(gates[:, 3 * H:4 * H])
            c = f * c + i * g
            h = o * jnp.tanh(c)
            hs.append(h)
        h_in = jnp.stack(hs, axis=1)
    return (h_in @ wfc.T + bfc)[..., 0]


if __name__ == "__main__":
    # Small deterministic configuration consistent with the module's forward:
    # x has F features; each per-channel LSTM sees F-1 features (one column
    # dropped), so input_size = F - 1.
    B, T = 2, 8
    F = 5
    input_size = F - 1
    hidden_size = 32
    num_layers = 2
    telemetry_channels = ["temp", "volt", "curr"]
    columns_id = {"temp": 0, "volt": 2, "curr": 4}  # exercises all branches

    key = jax.random.PRNGKey(0)
    kx, kp = jax.random.split(key)
    x = jax.random.normal(kx, (B, T, F), jnp.float32)
    params = init_advanced_lstm_params(kp, input_size, hidden_size, num_layers,
                                       telemetry_channels)
    stacked = prepare_stacked_params(params, telemetry_channels)

    outputs, ys_true = advanced_lstm_forward(stacked, x, telemetry_channels,
                                             columns_id)
    outputs = [jax.block_until_ready(o) for o in outputs]
    ys_true = [jax.block_until_ready(y) for y in ys_true]

    # Correctness check against the pure-JAX reference.  Tightened vs. the
    # previous 1e-2; 2e-3 leaves margin for MXU pass decomposition of the f32
    # matmuls on both the kernel and the XLA reference side.
    for ci, cname in enumerate(telemetry_channels):
        idx = columns_id[cname]
        y_ref = _lstm_ref(_drop_column(x, idx), params[cname]["lstm"],
                          params[cname]["fc"]["w"], params[cname]["fc"]["b"])
        assert outputs[ci].shape == (B, T)
        assert ys_true[ci].shape == (B, T)
        if not jnp.allclose(outputs[ci], y_ref, atol=2e-3, rtol=2e-3):
            err = float(jnp.max(jnp.abs(outputs[ci] - y_ref)))
            raise AssertionError(
                f"Pallas/ref mismatch for channel {cname}: max|diff|={err}")
        if not jnp.allclose(ys_true[ci], x[:, :, idx]):
            raise AssertionError(f"y_true mismatch for channel {cname}")

    print("KERNEL_OK")
</pallas_src>

<mosaic_0001>
module attributes {stable_mosaic.version = 11 : i64} {
  func.func @kernel(%arg0: i32, %arg1: memref<16x24xf32, #tpu.memory_space<vmem>>, %arg2: memref<24x512xf32, #tpu.memory_space<vmem>>, %arg3: memref<1x96x512xf32, #tpu.memory_space<vmem>>, %arg4: memref<2x96x512xf32, #tpu.memory_space<vmem>>, %arg5: memref<2x1x512xf32, #tpu.memory_space<vmem>>, %arg6: memref<96x128xf32, #tpu.memory_space<vmem>>, %arg7: memref<1x128xf32, #tpu.memory_space<vmem>>, %arg8: memref<16x128xf32, #tpu.memory_space<vmem>>, %arg9: memref<16x96xf32, #tpu.memory_space<vmem>>, %arg10: memref<16x96xf32, #tpu.memory_space<vmem>>) attributes {dimension_semantics = [#tpu.dimension_semantics<arbitrary>], iteration_bounds = array<i64: 1>, scalar_prefetch = 0 : i64, scratch_operands = 2 : i64, tpu.core_type = #tpu.core_type<tc>, window_params = [{pipeline_mode = #tpu.pipeline_mode<synchronous>, transform_indices = @transform_0, window_bounds = array<i64: 16, 24>}, {pipeline_mode = #tpu.pipeline_mode<synchronous>, transform_indices = @transform_1, window_bounds = array<i64: 24, 512>}, {pipeline_mode = #tpu.pipeline_mode<synchronous>, transform_indices = @transform_2, window_bounds = array<i64: 1, 96, 512>}, {pipeline_mode = #tpu.pipeline_mode<synchronous>, transform_indices = @transform_3, window_bounds = array<i64: 2, 96, 512>}, {pipeline_mode = #tpu.pipeline_mode<synchronous>, transform_indices = @transform_4, window_bounds = array<i64: 2, 1, 512>}, {pipeline_mode = #tpu.pipeline_mode<synchronous>, transform_indices = @transform_5, window_bounds = array<i64: 96, 128>}, {pipeline_mode = #tpu.pipeline_mode<synchronous>, transform_indices = @transform_6, window_bounds = array<i64: 1, 128>}, {pipeline_mode = #tpu.pipeline_mode<synchronous>, transform_indices = @transform_7, window_bounds = array<i64: 16, 128>}]} {
    %c0 = arith.constant 0 : index
    %c0_0 = arith.constant 0 : index
    %0 = vector.load %arg1[%c0, %c0_0] : memref<16x24xf32, #tpu.memory_space<vmem>>, vector<16x24xf32>
    %c0_1 = arith.constant 0 : index
    %c0_2 = arith.constant 0 : index
    %1 = vector.load %arg2[%c0_1, %c0_2] : memref<24x512xf32, #tpu.memory_space<vmem>>, vector<24x512xf32>
    %c0_3 = arith.constant 0 : index
    %c0_4 = arith.constant 0 : index
    %c0_5 = arith.constant 0 : index
    %2 = vector.load %arg4[%c0_3, %c0_4, %c0_5] : memref<2x96x512xf32, #tpu.memory_space<vmem>>, vector<1x96x512xf32>
    %3 = vector.shape_cast %2 : vector<1x96x512xf32> to vector<96x512xf32>
    %c0_6 = arith.constant 0 : index
    %c0_7 = arith.constant 0 : index
    %c0_8 = arith.constant 0 : index
    %4 = vector.load %arg5[%c0_6, %c0_7, %c0_8] : memref<2x1x512xf32, #tpu.memory_space<vmem>>, vector<1x1x512xf32>
    %5 = vector.shape_cast %4 : vector<1x1x512xf32> to vector<1x512xf32>
    %cst = arith.constant dense<0.000000e+00> : vector<16x512xf32>
    %6 = tpu.matmul %0, %1, %cst {dimension_numbers = #tpu.dot_dimension_numbers<[1], [0], [0], [1], [0, 0, 1, 1], [], []>} : vector<16x24xf32>, vector<24x512xf32>, vector<16x512xf32> -> vector<16x512xf32>
    %7 = vector.broadcast %5 : vector<1x512xf32> to vector<16x512xf32>
    %8 = arith.addf %6, %7 : vector<16x512xf32>
    %cst_9 = arith.constant 0.000000e+00 : f32
    %9 = vector.broadcast %cst_9 : f32 to vector<2x96xf32>
    %cst_10 = arith.constant 0.000000e+00 : f32
    %10 = vector.broadcast %cst_10 : f32 to vector<2x96xf32>
    %11 = vector.extract_strided_slice %8 {offsets = [0, 0], sizes = [2, 512], strides = [1, 1]} : vector<16x512xf32> to vector<2x512xf32>
    %cst_11 = arith.constant dense<0.000000e+00> : vector<2x512xf32>
    %12 = tpu.matmul %9, %3, %cst_11 {dimension_numbers = #tpu.dot_dimension_numbers<[1], [0], [0], [1], [0, 0, 1, 1], [], []>} : vector<2x96xf32>, vector<96x512xf32>, vector<2x512xf32> -> vector<2x512xf32>
    %13 = arith.addf %11, %12 : vector<2x512xf32>
    %14 = arith.negf %13 : vector<2x512xf32>
    %15 = math.exp %14 : vector<2x512xf32>
    %cst_12 = arith.constant 1.000000e+00 : f32
    %16 = vector.broadcast %cst_12 : f32 to vector<2x512xf32>
    %17 = arith.addf %16, %15 : vector<2x512xf32>
    %18 = arith.divf %16, %17 : vector<2x512xf32>
    %19 = vector.extract_strided_slice %18 {offsets = [0, 0], sizes = [2, 96], strides = [1, 1]} : vector<2x512xf32> to vector<2x96xf32>
    %20 = vector.extract_strided_slice %18 {offsets = [0, 128], sizes = [2, 96], strides = [1, 1]} : vector<2x512xf32> to vector<2x96xf32>
    %21 = vector.extract_strided_slice %18 {offsets = [0, 256], sizes = [2, 96], strides = [1, 1]} : vector<2x512xf32> to vector<2x96xf32>
    %cst_13 = arith.constant 2.000000e+00 : f32
    %22 = vector.broadcast %cst_13 : f32 to vector<2x96xf32>
    %23 = arith.mulf %22, %21 : vector<2x96xf32>
    %cst_14 = arith.constant 1.000000e+00 : f32
    %24 = vector.broadcast %cst_14 : f32 to vector<2x96xf32>
    %25 = arith.subf %23, %24 : vector<2x96xf32>
    %26 = vector.extract_strided_slice %18 {offsets = [0, 384], sizes = [2, 96], strides = [1, 1]} : vector<2x512xf32> to vector<2x96xf32>
    %27 = arith.mulf %20, %10 : vector<2x96xf32>
    %28 = arith.mulf %19, %25 : vector<2x96xf32>
    %29 = arith.addf %27, %28 : vector<2x96xf32>
    %30 = math.tanh %29 : vector<2x96xf32>
    %31 = arith.mulf %26, %30 : vector<2x96xf32>
    %c0_15 = arith.constant 0 : index
    %c0_16 = arith.constant 0 : index
    %32 = vector.load %arg9[%c0_15, %c0_16] : memref<16x96xf32, #tpu.memory_space<vmem>>, vector<2x96xf32>
    tpu.vector_store %arg9[%c0_15, %c0_16], %31 {strides = array<i32>} : memref<16x96xf32, #tpu.memory_space<vmem>>, vector<2x96xf32>,
    %33 = vector.extract_strided_slice %8 {offsets = [2, 0], sizes = [2, 512], strides = [1, 1]} : vector<16x512xf32> to vector<2x512xf32>
    %cst_17 = arith.constant dense<0.000000e+00> : vector<2x512xf32>
    %34 = tpu.matmul %31, %3, %cst_17 {dimension_numbers = #tpu.dot_dimension_numbers<[1], [0], [0], [1], [0, 0, 1, 1], [], []>} : vector<2x96xf32>, vector<96x512xf32>, vector<2x512xf32> -> vector<2x512xf32>
    %35 = arith.addf %33, %34 : vector<2x512xf32>
    %36 = arith.negf %35 : vector<2x512xf32>
    %37 = math.exp %36 : vector<2x512xf32>
    %cst_18 = arith.constant 1.000000e+00 : f32
    %38 = vector.broadcast %cst_18 : f32 to vector<2x512xf32>
    %39 = arith.addf %38, %37 : vector<2x512xf32>
    %40 = arith.divf %38, %39 : vector<2x512xf32>
    %41 = vector.extract_strided_slice %40 {offsets = [0, 0], sizes = [2, 96], strides = [1, 1]} : vector<2x512xf32> to vector<2x96xf32>
    %42 = vector.extract_strided_slice %40 {offsets = [0, 128], sizes = [2, 96], strides = [1, 1]} : vector<2x512xf32> to vector<2x96xf32>
    %43 = vector.extract_strided_slice %40 {offsets = [0, 256], sizes = [2, 96], strides = [1, 1]} : vector<2x512xf32> to vector<2x96xf32>
    %cst_19 = arith.constant 2.000000e+00 : f32
    %44 = vector.broadcast %cst_19 : f32 to vector<2x96xf32>
    %45 = arith.mulf %44, %43 : vector<2x96xf32>
    %cst_20 = arith.constant 1.000000e+00 : f32
    %46 = vector.broadcast %cst_20 : f32 to vector<2x96xf32>
    %47 = arith.subf %45, %46 : vector<2x96xf32>
    %48 = vector.extract_strided_slice %40 {offsets = [0, 384], sizes = [2, 96], strides = [1, 1]} : vector<2x512xf32> to vector<2x96xf32>
    %49 = arith.mulf %42, %29 : vector<2x96xf32>
    %50 = arith.mulf %41, %47 : vector<2x96xf32>
    %51 = arith.addf %49, %50 : vector<2x96xf32>
    %52 = math.tanh %51 : vector<2x96xf32>
    %53 = arith.mulf %48, %52 : vector<2x96xf32>
    %c2 = arith.constant 2 : index
    %c0_21 = arith.constant 0 : index
    %54 = vector.load %arg9[%c2, %c0_21] : memref<16x96xf32, #tpu.memory_space<vmem>>, vector<2x96xf32>
    tpu.vector_store %arg9[%c2, %c0_21], %53 {strides = array<i32>} : memref<16x96xf32, #tpu.memory_space<vmem>>, vector<2x96xf32>,
    %55 = vector.extract_strided_slice %8 {offsets = [4, 0], sizes = [2, 512], strides = [1, 1]} : vector<16x512xf32> to vector<2x512xf32>
    %cst_22 = arith.constant dense<0.000000e+00> : vector<2x512xf32>
    %56 = tpu.matmul %53, %3, %cst_22 {dimension_numbers = #tpu.dot_dimension_numbers<[1], [0], [0], [1], [0, 0, 1, 1], [], []>} : vector<2x96xf32>, vector<96x512xf32>, vector<2x512xf32> -> vector<2x512xf32>
    %57 = arith.addf %55, %56 : vector<2x512xf32>
    %58 = arith.negf %57 : vector<2x512xf32>
    %59 = math.exp %58 : vector<2x512xf32>
    %cst_23 = arith.constant 1.000000e+00 : f32
    %60 = vector.broadcast %cst_23 : f32 to vector<2x512xf32>
    %61 = arith.addf %60, %59 : vector<2x512xf32>
    %62 = arith.divf %60, %61 : vector<2x512xf32>
    %63 = vector.extract_strided_slice %62 {offsets = [0, 0], sizes = [2, 96], strides = [1, 1]} : vector<2x512xf32> to vector<2x96xf32>
    %64 = vector.extract_strided_slice %62 {offsets = [0, 128], sizes = [2, 96], strides = [1, 1]} : vector<2x512xf32> to vector<2x96xf32>
    %65 = vector.extract_strided_slice %62 {offsets = [0, 256], sizes = [2, 96], strides = [1, 1]} : vector<2x512xf32> to vector<2x96xf32>
    %cst_24 = arith.constant 2.000000e+00 : f32
    %66 = vector.broadcast %cst_24 : f32 to vector<2x96xf32>
    %67 = arith.mulf %66, %65 : vector<2x96xf32>
    %cst_25 = arith.constant 1.000000e+00 : f32
    %68 = vector.broadcast %cst_25 : f32 to vector<2x96xf32>
    %69 = arith.subf %67, %68 : vector<2x96xf32>
    %70 = vector.extract_strided_slice %62 {offsets = [0, 384], sizes = [2, 96], strides = [1, 1]} : vector<2x512xf32> to vector<2x96xf32>
    %71 = arith.mulf %64, %51 : vector<2x96xf32>
    %72 = arith.mulf %63, %69 : vector<2x96xf32>
    %73 = arith.addf %71, %72 : vector<2x96xf32>
    %74 = math.tanh %73 : vector<2x96xf32>
    %75 = arith.mulf %70, %74 : vector<2x96xf32>
    %c4 = arith.constant 4 : index
    %c0_26 = arith.constant 0 : index
    %76 = vector.load %arg9[%c4, %c0_26] : memref<16x96xf32, #tpu.memory_space<vmem>>, vector<2x96xf32>
    tpu.vector_store %arg9[%c4, %c0_26], %75 {strides = array<i32>} : memref<16x96xf32, #tpu.memory_space<vmem>>, vector<2x96xf32>,
    %77 = vector.extract_strided_slice %8 {offsets = [6, 0], sizes = [2, 512], strides = [1, 1]} : vector<16x512xf32> to vector<2x512xf32>
    %cst_27 = arith.constant dense<0.000000e+00> : vector<2x512xf32>
    %78 = tpu.matmul %75, %3, %cst_27 {dimension_numbers = #tpu.dot_dimension_numbers<[1], [0], [0], [1], [0, 0, 1, 1], [], []>} : vector<2x96xf32>, vector<96x512xf32>, vector<2x512xf32> -> vector<2x512xf32>
    %79 = arith.addf %77, %78 : vector<2x512xf32>
    %80 = arith.negf %79 : vector<2x512xf32>
    %81 = math.exp %80 : vector<2x512xf32>
    %cst_28 = arith.constant 1.000000e+00 : f32
    %82 = vector.broadcast %cst_28 : f32 to vector<2x512xf32>
    %83 = arith.addf %82, %81 : vector<2x512xf32>
    %84 = arith.divf %82, %83 : vector<2x512xf32>
    %85 = vector.extract_strided_slice %84 {offsets = [0, 0], sizes = [2, 96], strides = [1, 1]} : vector<2x512xf32> to vector<2x96xf32>
    %86 = vector.extract_strided_slice %84 {offsets = [0, 128], sizes = [2, 96], strides = [1, 1]} : vector<2x512xf32> to vector<2x96xf32>
    %87 = vector.extract_strided_slice %84 {offsets = [0, 256], sizes = [2, 96], strides = [1, 1]} : vector<2x512xf32> to vector<2x96xf32>
    %cst_29 = arith.constant 2.000000e+00 : f32
    %88 = vector.broadcast %cst_29 : f32 to vector<2x96xf32>
    %89 = arith.mulf %88, %87 : vector<2x96xf32>
    %cst_30 = arith.constant 1.000000e+00 : f32
    %90 = vector.broadcast %cst_30 : f32 to vector<2x96xf32>
    %91 = arith.subf %89, %90 : vector<2x96xf32>
    %92 = vector.extract_strided_slice %84 {offsets = [0, 384], sizes = [2, 96], strides = [1, 1]} : vector<2x512xf32> to vector<2x96xf32>
    %93 = arith.mulf %86, %73 : vector<2x96xf32>
    %94 = arith.mulf %85, %91 : vector<2x96xf32>
    %95 = arith.addf %93, %94 : vector<2x96xf32>
    %96 = math.tanh %95 : vector<2x96xf32>
    %97 = arith.mulf %92, %96 : vector<2x96xf32>
    %c6 = arith.constant 6 : index
    %c0_31 = arith.constant 0 : index
    %98 = vector.load %arg9[%c6, %c0_31] : memref<16x96xf32, #tpu.memory_space<vmem>>, vector<2x96xf32>
    tpu.vector_store %arg9[%c6, %c0_31], %97 {strides = array<i32>} : memref<16x96xf32, #tpu.memory_space<vmem>>, vector<2x96xf32>,
    %99 = vector.extract_strided_slice %8 {offsets = [8, 0], sizes = [2, 512], strides = [1, 1]} : vector<16x512xf32> to vector<2x512xf32>
    %cst_32 = arith.constant dense<0.000000e+00> : vector<2x512xf32>
    %100 = tpu.matmul %97, %3, %cst_32 {dimension_numbers = #tpu.dot_dimension_numbers<[1], [0], [0], [1], [0, 0, 1, 1], [], []>} : vector<2x96xf32>, vector<96x512xf32>, vector<2x512xf32> -> vector<2x512xf32>
    %101 = arith.addf %99, %100 : vector<2x512xf32>
    %102 = arith.negf %101 : vector<2x512xf32>
    %103 = math.exp %102 : vector<2x512xf32>
    %cst_33 = arith.constant 1.000000e+00 : f32
    %104 = vector.broadcast %cst_33 : f32 to vector<2x512xf32>
    %105 = arith.addf %104, %103 : vector<2x512xf32>
    %106 = arith.divf %104, %105 : vector<2x512xf32>
    %107 = vector.extract_strided_slice %106 {offsets = [0, 0], sizes = [2, 96], strides = [1, 1]} : vector<2x512xf32> to vector<2x96xf32>
    %108 = vector.extract_strided_slice %106 {offsets = [0, 128], sizes = [2, 96], strides = [1, 1]} : vector<2x512xf32> to vector<2x96xf32>
    %109 = vector.extract_strided_slice %106 {offsets = [0, 256], sizes = [2, 96], strides = [1, 1]} : vector<2x512xf32> to vector<2x96xf32>
    %cst_34 = arith.constant 2.000000e+00 : f32
    %110 = vector.broadcast %cst_34 : f32 to vector<2x96xf32>
    %111 = arith.mulf %110, %109 : vector<2x96xf32>
    %cst_35 = arith.constant 1.000000e+00 : f32
    %112 = vector.broadcast %cst_35 : f32 to vector<2x96xf32>
    %113 = arith.subf %111, %112 : vector<2x96xf32>
    %114 = vector.extract_strided_slice %106 {offsets = [0, 384], sizes = [2, 96], strides = [1, 1]} : vector<2x512xf32> to vector<2x96xf32>
    %115 = arith.mulf %108, %95 : vector<2x96xf32>
    %116 = arith.mulf %107, %113 : vector<2x96xf32>
    %117 = arith.addf %115, %116 : vector<2x96xf32>
    %118 = math.tanh %117 : vector<2x96xf32>
    %119 = arith.mulf %114, %118 : vector<2x96xf32>
    %c8 = arith.constant 8 : index
    %c0_36 = arith.constant 0 : index
    %120 = vector.load %arg9[%c8, %c0_36] : memref<16x96xf32, #tpu.memory_space<vmem>>, vector<2x96xf32>
    tpu.vector_store %arg9[%c8, %c0_36], %119 {strides = array<i32>} : memref<16x96xf32, #tpu.memory_space<vmem>>, vector<2x96xf32>,
    %121 = vector.extract_strided_slice %8 {offsets = [10, 0], sizes = [2, 512], strides = [1, 1]} : vector<16x512xf32> to vector<2x512xf32>
    %cst_37 = arith.constant dense<0.000000e+00> : vector<2x512xf32>
    %122 = tpu.matmul %119, %3, %cst_37 {dimension_numbers = #tpu.dot_dimension_numbers<[1], [0], [0], [1], [0, 0, 1, 1], [], []>} : vector<2x96xf32>, vector<96x512xf32>, vector<2x512xf32> -> vector<2x512xf32>
    %123 = arith.addf %121, %122 : vector<2x512xf32>
    %124 = arith.negf %123 : vector<2x512xf32>
    %125 = math.exp %124 : vector<2x512xf32>
    %cst_38 = arith.constant 1.000000e+00 : f32
    %126 = vector.broadcast %cst_38 : f32 to vector<2x512xf32>
    %127 = arith.addf %126, %125 : vector<2x512xf32>
    %128 = arith.divf %126, %127 : vector<2x512xf32>
    %129 = vector.extract_strided_slice %128 {offsets = [0, 0], sizes = [2, 96], strides = [1, 1]} : vector<2x512xf32> to vector<2x96xf32>
    %130 = vector.extract_strided_slice %128 {offsets = [0, 128], sizes = [2, 96], strides = [1, 1]} : vector<2x512xf32> to vector<2x96xf32>
    %131 = vector.extract_strided_slice %128 {offsets = [0, 256], sizes = [2, 96], strides = [1, 1]} : vector<2x512xf32> to vector<2x96xf32>
    %cst_39 = arith.constant 2.000000e+00 : f32
    %132 = vector.broadcast %cst_39 : f32 to vector<2x96xf32>
    %133 = arith.mulf %132, %131 : vector<2x96xf32>
    %cst_40 = arith.constant 1.000000e+00 : f32
    %134 = vector.broadcast %cst_40 : f32 to vector<2x96xf32>
    %135 = arith.subf %133, %134 : vector<2x96xf32>
    %136 = vector.extract_strided_slice %128 {offsets = [0, 384], sizes = [2, 96], strides = [1, 1]} : vector<2x512xf32> to vector<2x96xf32>
    %137 = arith.mulf %130, %117 : vector<2x96xf32>
    %138 = arith.mulf %129, %135 : vector<2x96xf32>
    %139 = arith.addf %137, %138 : vector<2x96xf32>
    %140 = math.tanh %139 : vector<2x96xf32>
    %141 = arith.mulf %136, %140 : vector<2x96xf32>
    %c10 = arith.constant 10 : index
    %c0_41 = arith.constant 0 : index
    %142 = vector.load %arg9[%c10, %c0_41] : memref<16x96xf32, #tpu.memory_space<vmem>>, vector<2x96xf32>
    tpu.vector_store %arg9[%c10, %c0_41], %141 {strides = array<i32>} : memref<16x96xf32, #tpu.memory_space<vmem>>, vector<2x96xf32>,
    %143 = vector.extract_strided_slice %8 {offsets = [12, 0], sizes = [2, 512], strides = [1, 1]} : vector<16x512xf32> to vector<2x512xf32>
    %cst_42 = arith.constant dense<0.000000e+00> : vector<2x512xf32>
    %144 = tpu.matmul %141, %3, %cst_42 {dimension_numbers = #tpu.dot_dimension_numbers<[1], [0], [0], [1], [0, 0, 1, 1], [], []>} : vector<2x96xf32>, vector<96x512xf32>, vector<2x512xf32> -> vector<2x512xf32>
    %145 = arith.addf %143, %144 : vector<2x512xf32>
    %146 = arith.negf %145 : vector<2x512xf32>
    %147 = math.exp %146 : vector<2x512xf32>
    %cst_43 = arith.constant 1.000000e+00 : f32
    %148 = vector.broadcast %cst_43 : f32 to vector<2x512xf32>
    %149 = arith.addf %148, %147 : vector<2x512xf32>
    %150 = arith.divf %148, %149 : vector<2x512xf32>
    %151 = vector.extract_strided_slice %150 {offsets = [0, 0], sizes = [2, 96], strides = [1, 1]} : vector<2x512xf32> to vector<2x96xf32>
    %152 = vector.extract_strided_slice %150 {offsets = [0, 128], sizes = [2, 96], strides = [1, 1]} : vector<2x512xf32> to vector<2x96xf32>
    %153 = vector.extract_strided_slice %150 {offsets = [0, 256], sizes = [2, 96], strides = [1, 1]} : vector<2x512xf32> to vector<2x96xf32>
    %cst_44 = arith.constant 2.000000e+00 : f32
    %154 = vector.broadcast %cst_44 : f32 to vector<2x96xf32>
    %155 = arith.mulf %154, %153 : vector<2x96xf32>
    %cst_45 = arith.constant 1.000000e+00 : f32
    %156 = vector.broadcast %cst_45 : f32 to vector<2x96xf32>
    %157 = arith.subf %155, %156 : vector<2x96xf32>
    %158 = vector.extract_strided_slice %150 {offsets = [0, 384], sizes = [2, 96], strides = [1, 1]} : vector<2x512xf32> to vector<2x96xf32>
    %159 = arith.mulf %152, %139 : vector<2x96xf32>
    %160 = arith.mulf %151, %157 : vector<2x96xf32>
    %161 = arith.addf %159, %160 : vector<2x96xf32>
    %162 = math.tanh %161 : vector<2x96xf32>
    %163 = arith.mulf %158, %162 : vector<2x96xf32>
    %c12 = arith.constant 12 : index
    %c0_46 = arith.constant 0 : index
    %164 = vector.load %arg9[%c12, %c0_46] : memref<16x96xf32, #tpu.memory_space<vmem>>, vector<2x96xf32>
    tpu.vector_store %arg9[%c12, %c0_46], %163 {strides = array<i32>} : memref<16x96xf32, #tpu.memory_space<vmem>>, vector<2x96xf32>,
    %165 = vector.extract_strided_slice %8 {offsets = [14, 0], sizes = [2, 512], strides = [1, 1]} : vector<16x512xf32> to vector<2x512xf32>
    %cst_47 = arith.constant dense<0.000000e+00> : vector<2x512xf32>
    %166 = tpu.matmul %163, %3, %cst_47 {dimension_numbers = #tpu.dot_dimension_numbers<[1], [0], [0], [1], [0, 0, 1, 1], [], []>} : vector<2x96xf32>, vector<96x512xf32>, vector<2x512xf32> -> vector<2x512xf32>
    %167 = arith.addf %165, %166 : vector<2x512xf32>
    %168 = arith.negf %167 : vector<2x512xf32>
    %169 = math.exp %168 : vector<2x512xf32>
    %cst_48 = arith.constant 1.000000e+00 : f32
    %170 = vector.broadcast %cst_48 : f32 to vector<2x512xf32>
    %171 = arith.addf %170, %169 : vector<2x512xf32>
    %172 = arith.divf %170, %171 : vector<2x512xf32>
    %173 = vector.extract_strided_slice %172 {offsets = [0, 0], sizes = [2, 96], strides = [1, 1]} : vector<2x512xf32> to vector<2x96xf32>
    %174 = vector.extract_strided_slice %172 {offsets = [0, 128], sizes = [2, 96], strides = [1, 1]} : vector<2x512xf32> to vector<2x96xf32>
    %175 = vector.extract_strided_slice %172 {offsets = [0, 256], sizes = [2, 96], strides = [1, 1]} : vector<2x512xf32> to vector<2x96xf32>
    %cst_49 = arith.constant 2.000000e+00 : f32
    %176 = vector.broadcast %cst_49 : f32 to vector<2x96xf32>
    %177 = arith.mulf %176, %175 : vector<2x96xf32>
    %cst_50 = arith.constant 1.000000e+00 : f32
    %178 = vector.broadcast %cst_50 : f32 to vector<2x96xf32>
    %179 = arith.subf %177, %178 : vector<2x96xf32>
    %180 = vector.extract_strided_slice %172 {offsets = [0, 384], sizes = [2, 96], strides = [1, 1]} : vector<2x512xf32> to vector<2x96xf32>
    %181 = arith.mulf %174, %161 : vector<2x96xf32>
    %182 = arith.mulf %173, %179 : vector<2x96xf32>
    %183 = arith.addf %181, %182 : vector<2x96xf32>
    %184 = math.tanh %183 : vector<2x96xf32>
    %185 = arith.mulf %180, %184 : vector<2x96xf32>
    %c14 = arith.constant 14 : index
    %c0_51 = arith.constant 0 : index
    %186 = vector.load %arg9[%c14, %c0_51] : memref<16x96xf32, #tpu.memory_space<vmem>>, vector<2x96xf32>
    tpu.vector_store %arg9[%c14, %c0_51], %185 {strides = array<i32>} : memref<16x96xf32, #tpu.memory_space<vmem>>, vector<2x96xf32>,
    %c0_52 = arith.constant 0 : index
    %c0_53 = arith.constant 0 : index
    %187 = vector.load %arg9[%c0_52, %c0_53] : memref<16x96xf32, #tpu.memory_space<vmem>>, vector<16x96xf32>
    %c0_54 = arith.constant 0 : index
    %c0_55 = arith.constant 0 : index
    %c0_56 = arith.constant 0 : index
    %188 = vector.load %arg3[%c0_54, %c0_55, %c0_56] : memref<1x96x512xf32, #tpu.memory_space<vmem>>, vector<1x96x512xf32>
    %189 = vector.shape_cast %188 : vector<1x96x512xf32> to vector<96x512xf32>
    %c1 = arith.constant 1 : index
    %c0_57 = arith.constant 0 : index
    %c0_58 = arith.constant 0 : index
    %190 = vector.load %arg4[%c1, %c0_57, %c0_58] : memref<2x96x512xf32, #tpu.memory_space<vmem>>, vector<1x96x512xf32>
    %191 = vector.shape_cast %190 : vector<1x96x512xf32> to vector<96x512xf32>
    %c1_59 = arith.constant 1 : index
    %c0_60 = arith.constant 0 : index
    %c0_61 = arith.constant 0 : index
    %192 = vector.load %arg5[%c1_59, %c0_60, %c0_61] : memref<2x1x512xf32, #tpu.memory_space<vmem>>, vector<1x1x512xf32>
    %193 = vector.shape_cast %192 : vector<1x1x512xf32> to vector<1x512xf32>
    %cst_62 = arith.constant dense<0.000000e+00> : vector<16x512xf32>
    %194 = tpu.matmul %187, %189, %cst_62 {dimension_numbers = #tpu.dot_dimension_numbers<[1], [0], [0], [1], [0, 0, 1, 1], [], []>} : vector<16x96xf32>, vector<96x512xf32>, vector<16x512xf32> -> vector<16x512xf32>
    %195 = vector.broadcast %193 : vector<1x512xf32> to vector<16x512xf32>
    %196 = arith.addf %194, %195 : vector<16x512xf32>
    %cst_63 = arith.constant 0.000000e+00 : f32
    %197 = vector.broadcast %cst_63 : f32 to vector<2x96xf32>
    %cst_64 = arith.constant 0.000000e+00 : f32
    %198 = vector.broadcast %cst_64 : f32 to vector<2x96xf32>
    %199 = vector.extract_strided_slice %196 {offsets = [0, 0], sizes = [2, 512], strides = [1, 1]} : vector<16x512xf32> to vector<2x512xf32>
    %cst_65 = arith.constant dense<0.000000e+00> : vector<2x512xf32>
    %200 = tpu.matmul %197, %191, %cst_65 {dimension_numbers = #tpu.dot_dimension_numbers<[1], [0], [0], [1], [0, 0, 1, 1], [], []>} : vector<2x96xf32>, vector<96x512xf32>, vector<2x512xf32> -> vector<2x512xf32>
    %201 = arith.addf %199, %200 : vector<2x512xf32>
    %202 = arith.negf %201 : vector<2x512xf32>
    %203 = math.exp %202 : vector<2x512xf32>
    %cst_66 = arith.constant 1.000000e+00 : f32
    %204 = vector.broadcast %cst_66 : f32 to vector<2x512xf32>
    %205 = arith.addf %204, %203 : vector<2x512xf32>
    %206 = arith.divf %204, %205 : vector<2x512xf32>
    %207 = vector.extract_strided_slice %206 {offsets = [0, 0], sizes = [2, 96], strides = [1, 1]} : vector<2x512xf32> to vector<2x96xf32>
    %208 = vector.extract_strided_slice %206 {offsets = [0, 128], sizes = [2, 96], strides = [1, 1]} : vector<2x512xf32> to vector<2x96xf32>
    %209 = vector.extract_strided_slice %206 {offsets = [0, 256], sizes = [2, 96], strides = [1, 1]} : vector<2x512xf32> to vector<2x96xf32>
    %cst_67 = arith.constant 2.000000e+00 : f32
    %210 = vector.broadcast %cst_67 : f32 to vector<2x96xf32>
    %211 = arith.mulf %210, %209 : vector<2x96xf32>
    %cst_68 = arith.constant 1.000000e+00 : f32
    %212 = vector.broadcast %cst_68 : f32 to vector<2x96xf32>
    %213 = arith.subf %211, %212 : vector<2x96xf32>
    %214 = vector.extract_strided_slice %206 {offsets = [0, 384], sizes = [2, 96], strides = [1, 1]} : vector<2x512xf32> to vector<2x96xf32>
    %215 = arith.mulf %208, %198 : vector<2x96xf32>
    %216 = arith.mulf %207, %213 : vector<2x96xf32>
    %217 = arith.addf %215, %216 : vector<2x96xf32>
    %218 = math.tanh %217 : vector<2x96xf32>
    %219 = arith.mulf %214, %218 : vector<2x96xf32>
    %c0_69 = arith.constant 0 : index
    %c0_70 = arith.constant 0 : index
    %220 = vector.load %arg10[%c0_69, %c0_70] : memref<16x96xf32, #tpu.memory_space<vmem>>, vector<2x96xf32>
    tpu.vector_store %arg10[%c0_69, %c0_70], %219 {strides = array<i32>} : memref<16x96xf32, #tpu.memory_space<vmem>>, vector<2x96xf32>,
    %221 = vector.extract_strided_slice %196 {offsets = [2, 0], sizes = [2, 512], strides = [1, 1]} : vector<16x512xf32> to vector<2x512xf32>
    %cst_71 = arith.constant dense<0.000000e+00> : vector<2x512xf32>
    %222 = tpu.matmul %219, %191, %cst_71 {dimension_numbers = #tpu.dot_dimension_numbers<[1], [0], [0], [1], [0, 0, 1, 1], [], []>} : vector<2x96xf32>, vector<96x512xf32>, vector<2x512xf32> -> vector<2x512xf32>
    %223 = arith.addf %221, %222 : vector<2x512xf32>
    %224 = arith.negf %223 : vector<2x512xf32>
    %225 = math.exp %224 : vector<2x512xf32>
    %cst_72 = arith.constant 1.000000e+00 : f32
    %226 = vector.broadcast %cst_72 : f32 to vector<2x512xf32>
    %227 = arith.addf %226, %225 : vector<2x512xf32>
    %228 = arith.divf %226, %227 : vector<2x512xf32>
    %229 = vector.extract_strided_slice %228 {offsets = [0, 0], sizes = [2, 96], strides = [1, 1]} : vector<2x512xf32> to vector<2x96xf32>
    %230 = vector.extract_strided_slice %228 {offsets = [0, 128], sizes = [2, 96], strides = [1, 1]} : vector<2x512xf32> to vector<2x96xf32>
    %231 = vector.extract_strided_slice %228 {offsets = [0, 256], sizes = [2, 96], strides = [1, 1]} : vector<2x512xf32> to vector<2x96xf32>
    %cst_73 = arith.constant 2.000000e+00 : f32
    %232 = vector.broadcast %cst_73 : f32 to vector<2x96xf32>
    %233 = arith.mulf %232, %231 : vector<2x96xf32>
    %cst_74 = arith.constant 1.000000e+00 : f32
    %234 = vector.broadcast %cst_74 : f32 to vector<2x96xf32>
    %235 = arith.subf %233, %234 : vector<2x96xf32>
    %236 = vector.extract_strided_slice %228 {offsets = [0, 384], sizes = [2, 96], strides = [1, 1]} : vector<2x512xf32> to vector<2x96xf32>
    %237 = arith.mulf %230, %217 : vector<2x96xf32>
    %238 = arith.mulf %229, %235 : vector<2x96xf32>
    %239 = arith.addf %237, %238 : vector<2x96xf32>
    %240 = math.tanh %239 : vector<2x96xf32>
    %241 = arith.mulf %236, %240 : vector<2x96xf32>
    %c2_75 = arith.constant 2 : index
    %c0_76 = arith.constant 0 : index
    %242 = vector.load %arg10[%c2_75, %c0_76] : memref<16x96xf32, #tpu.memory_space<vmem>>, vector<2x96xf32>
    tpu.vector_store %arg10[%c2_75, %c0_76], %241 {strides = array<i32>} : memref<16x96xf32, #tpu.memory_space<vmem>>, vector<2x96xf32>,
    %243 = vector.extract_strided_slice %196 {offsets = [4, 0], sizes = [2, 512], strides = [1, 1]} : vector<16x512xf32> to vector<2x512xf32>
    %cst_77 = arith.constant dense<0.000000e+00> : vector<2x512xf32>
    %244 = tpu.matmul %241, %191, %cst_77 {dimension_numbers = #tpu.dot_dimension_numbers<[1], [0], [0], [1], [0, 0, 1, 1], [], []>} : vector<2x96xf32>, vector<96x512xf32>, vector<2x512xf32> -> vector<2x512xf32>
    %245 = arith.addf %243, %244 : vector<2x512xf32>
    %246 = arith.negf %245 : vector<2x512xf32>
    %247 = math.exp %246 : vector<2x512xf32>
    %cst_78 = arith.constant 1.000000e+00 : f32
    %248 = vector.broadcast %cst_78 : f32 to vector<2x512xf32>
    %249 = arith.addf %248, %247 : vector<2x512xf32>
    %250 = arith.divf %248, %249 : vector<2x512xf32>
    %251 = vector.extract_strided_slice %250 {offsets = [0, 0], sizes = [2, 96], strides = [1, 1]} : vector<2x512xf32> to vector<2x96xf32>
    %252 = vector.extract_strided_slice %250 {offsets = [0, 128], sizes = [2, 96], strides = [1, 1]} : vector<2x512xf32> to vector<2x96xf32>
    %253 = vector.extract_strided_slice %250 {offsets = [0, 256], sizes = [2, 96], strides = [1, 1]} : vector<2x512xf32> to vector<2x96xf32>
    %cst_79 = arith.constant 2.000000e+00 : f32
    %254 = vector.broadcast %cst_79 : f32 to vector<2x96xf32>
    %255 = arith.mulf %254, %253 : vector<2x96xf32>
    %cst_80 = arith.constant 1.000000e+00 : f32
    %256 = vector.broadcast %cst_80 : f32 to vector<2x96xf32>
    %257 = arith.subf %255, %256 : vector<2x96xf32>
    %258 = vector.extract_strided_slice %250 {offsets = [0, 384], sizes = [2, 96], strides = [1, 1]} : vector<2x512xf32> to vector<2x96xf32>
    %259 = arith.mulf %252, %239 : vector<2x96xf32>
    %260 = arith.mulf %251, %257 : vector<2x96xf32>
    %261 = arith.addf %259, %260 : vector<2x96xf32>
    %262 = math.tanh %261 : vector<2x96xf32>
    %263 = arith.mulf %258, %262 : vector<2x96xf32>
    %c4_81 = arith.constant 4 : index
    %c0_82 = arith.constant 0 : index
    %264 = vector.load %arg10[%c4_81, %c0_82] : memref<16x96xf32, #tpu.memory_space<vmem>>, vector<2x96xf32>
    tpu.vector_store %arg10[%c4_81, %c0_82], %263 {strides = array<i32>} : memref<16x96xf32, #tpu.memory_space<vmem>>, vector<2x96xf32>,
    %265 = vector.extract_strided_slice %196 {offsets = [6, 0], sizes = [2, 512], strides = [1, 1]} : vector<16x512xf32> to vector<2x512xf32>
    %cst_83 = arith.constant dense<0.000000e+00> : vector<2x512xf32>
    %266 = tpu.matmul %263, %191, %cst_83 {dimension_numbers = #tpu.dot_dimension_numbers<[1], [0], [0], [1], [0, 0, 1, 1], [], []>} : vector<2x96xf32>, vector<96x512xf32>, vector<2x512xf32> -> vector<2x512xf32>
    %267 = arith.addf %265, %266 : vector<2x512xf32>
    %268 = arith.negf %267 : vector<2x512xf32>
    %269 = math.exp %268 : vector<2x512xf32>
    %cst_84 = arith.constant 1.000000e+00 : f32
    %270 = vector.broadcast %cst_84 : f32 to vector<2x512xf32>
    %271 = arith.addf %270, %269 : vector<2x512xf32>
    %272 = arith.divf %270, %271 : vector<2x512xf32>
    %273 = vector.extract_strided_slice %272 {offsets = [0, 0], sizes = [2, 96], strides = [1, 1]} : vector<2x512xf32> to vector<2x96xf32>
    %274 = vector.extract_strided_slice %272 {offsets = [0, 128], sizes = [2, 96], strides = [1, 1]} : vector<2x512xf32> to vector<2x96xf32>
    %275 = vector.extract_strided_slice %272 {offsets = [0, 256], sizes = [2, 96], strides = [1, 1]} : vector<2x512xf32> to vector<2x96xf32>
    %cst_85 = arith.constant 2.000000e+00 : f32
    %276 = vector.broadcast %cst_85 : f32 to vector<2x96xf32>
    %277 = arith.mulf %276, %275 : vector<2x96xf32>
    %cst_86 = arith.constant 1.000000e+00 : f32
    %278 = vector.broadcast %cst_86 : f32 to vector<2x96xf32>
    %279 = arith.subf %277, %278 : vector<2x96xf32>
    %280 = vector.extract_strided_slice %272 {offsets = [0, 384], sizes = [2, 96], strides = [1, 1]} : vector<2x512xf32> to vector<2x96xf32>
    %281 = arith.mulf %274, %261 : vector<2x96xf32>
    %282 = arith.mulf %273, %279 : vector<2x96xf32>
    %283 = arith.addf %281, %282 : vector<2x96xf32>
    %284 = math.tanh %283 : vector<2x96xf32>
    %285 = arith.mulf %280, %284 : vector<2x96xf32>
    %c6_87 = arith.constant 6 : index
    %c0_88 = arith.constant 0 : index
    %286 = vector.load %arg10[%c6_87, %c0_88] : memref<16x96xf32, #tpu.memory_space<vmem>>, vector<2x96xf32>
    tpu.vector_store %arg10[%c6_87, %c0_88], %285 {strides = array<i32>} : memref<16x96xf32, #tpu.memory_space<vmem>>, vector<2x96xf32>,
    %287 = vector.extract_strided_slice %196 {offsets = [8, 0], sizes = [2, 512], strides = [1, 1]} : vector<16x512xf32> to vector<2x512xf32>
    %cst_89 = arith.constant dense<0.000000e+00> : vector<2x512xf32>
    %288 = tpu.matmul %285, %191, %cst_89 {dimension_numbers = #tpu.dot_dimension_numbers<[1], [0], [0], [1], [0, 0, 1, 1], [], []>} : vector<2x96xf32>, vector<96x512xf32>, vector<2x512xf32> -> vector<2x512xf32>
    %289 = arith.addf %287, %288 : vector<2x512xf32>
    %290 = arith.negf %289 : vector<2x512xf32>
    %291 = math.exp %290 : vector<2x512xf32>
    %cst_90 = arith.constant 1.000000e+00 : f32
    %292 = vector.broadcast %cst_90 : f32 to vector<2x512xf32>
    %293 = arith.addf %292, %291 : vector<2x512xf32>
    %294 = arith.divf %292, %293 : vector<2x512xf32>
    %295 = vector.extract_strided_slice %294 {offsets = [0, 0], sizes = [2, 96], strides = [1, 1]} : vector<2x512xf32> to vector<2x96xf32>
    %296 = vector.extract_strided_slice %294 {offsets = [0, 128], sizes = [2, 96], strides = [1, 1]} : vector<2x512xf32> to vector<2x96xf32>
    %297 = vector.extract_strided_slice %294 {offsets = [0, 256], sizes = [2, 96], strides = [1, 1]} : vector<2x512xf32> to vector<2x96xf32>
    %cst_91 = arith.constant 2.000000e+00 : f32
    %298 = vector.broadcast %cst_91 : f32 to vector<2x96xf32>
    %299 = arith.mulf %298, %297 : vector<2x96xf32>
    %cst_92 = arith.constant 1.000000e+00 : f32
    %300 = vector.broadcast %cst_92 : f32 to vector<2x96xf32>
    %301 = arith.subf %299, %300 : vector<2x96xf32>
    %302 = vector.extract_strided_slice %294 {offsets = [0, 384], sizes = [2, 96], strides = [1, 1]} : vector<2x512xf32> to vector<2x96xf32>
    %303 = arith.mulf %296, %283 : vector<2x96xf32>
    %304 = arith.mulf %295, %301 : vector<2x96xf32>
    %305 = arith.addf %303, %304 : vector<2x96xf32>
    %306 = math.tanh %305 : vector<2x96xf32>
    %307 = arith.mulf %302, %306 : vector<2x96xf32>
    %c8_93 = arith.constant 8 : index
    %c0_94 = arith.constant 0 : index
    %308 = vector.load %arg10[%c8_93, %c0_94] : memref<16x96xf32, #tpu.memory_space<vmem>>, vector<2x96xf32>
    tpu.vector_store %arg10[%c8_93, %c0_94], %307 {strides = array<i32>} : memref<16x96xf32, #tpu.memory_space<vmem>>, vector<2x96xf32>,
    %309 = vector.extract_strided_slice %196 {offsets = [10, 0], sizes = [2, 512], strides = [1, 1]} : vector<16x512xf32> to vector<2x512xf32>
    %cst_95 = arith.constant dense<0.000000e+00> : vector<2x512xf32>
    %310 = tpu.matmul %307, %191, %cst_95 {dimension_numbers = #tpu.dot_dimension_numbers<[1], [0], [0], [1], [0, 0, 1, 1], [], []>} : vector<2x96xf32>, vector<96x512xf32>, vector<2x512xf32> -> vector<2x512xf32>
    %311 = arith.addf %309, %310 : vector<2x512xf32>
    %312 = arith.negf %311 : vector<2x512xf32>
    %313 = math.exp %312 : vector<2x512xf32>
    %cst_96 = arith.constant 1.000000e+00 : f32
    %314 = vector.broadcast %cst_96 : f32 to vector<2x512xf32>
    %315 = arith.addf %314, %313 : vector<2x512xf32>
    %316 = arith.divf %314, %315 : vector<2x512xf32>
    %317 = vector.extract_strided_slice %316 {offsets = [0, 0], sizes = [2, 96], strides = [1, 1]} : vector<2x512xf32> to vector<2x96xf32>
    %318 = vector.extract_strided_slice %316 {offsets = [0, 128], sizes = [2, 96], strides = [1, 1]} : vector<2x512xf32> to vector<2x96xf32>
    %319 = vector.extract_strided_slice %316 {offsets = [0, 256], sizes = [2, 96], strides = [1, 1]} : vector<2x512xf32> to vector<2x96xf32>
    %cst_97 = arith.constant 2.000000e+00 : f32
    %320 = vector.broadcast %cst_97 : f32 to vector<2x96xf32>
    %321 = arith.mulf %320, %319 : vector<2x96xf32>
    %cst_98 = arith.constant 1.000000e+00 : f32
    %322 = vector.broadcast %cst_98 : f32 to vector<2x96xf32>
    %323 = arith.subf %321, %322 : vector<2x96xf32>
    %324 = vector.extract_strided_slice %316 {offsets = [0, 384], sizes = [2, 96], strides = [1, 1]} : vector<2x512xf32> to vector<2x96xf32>
    %325 = arith.mulf %318, %305 : vector<2x96xf32>
    %326 = arith.mulf %317, %323 : vector<2x96xf32>
    %327 = arith.addf %325, %326 : vector<2x96xf32>
    %328 = math.tanh %327 : vector<2x96xf32>
    %329 = arith.mulf %324, %328 : vector<2x96xf32>
    %c10_99 = arith.constant 10 : index
    %c0_100 = arith.constant 0 : index
    %330 = vector.load %arg10[%c10_99, %c0_100] : memref<16x96xf32, #tpu.memory_space<vmem>>, vector<2x96xf32>
    tpu.vector_store %arg10[%c10_99, %c0_100], %329 {strides = array<i32>} : memref<16x96xf32, #tpu.memory_space<vmem>>, vector<2x96xf32>,
    %331 = vector.extract_strided_slice %196 {offsets = [12, 0], sizes = [2, 512], strides = [1, 1]} : vector<16x512xf32> to vector<2x512xf32>
    %cst_101 = arith.constant dense<0.000000e+00> : vector<2x512xf32>
    %332 = tpu.matmul %329, %191, %cst_101 {dimension_numbers = #tpu.dot_dimension_numbers<[1], [0], [0], [1], [0, 0, 1, 1], [], []>} : vector<2x96xf32>, vector<96x512xf32>, vector<2x512xf32> -> vector<2x512xf32>
    %333 = arith.addf %331, %332 : vector<2x512xf32>
    %334 = arith.negf %333 : vector<2x512xf32>
    %335 = math.exp %334 : vector<2x512xf32>
    %cst_102 = arith.constant 1.000000e+00 : f32
    %336 = vector.broadcast %cst_102 : f32 to vector<2x512xf32>
    %337 = arith.addf %336, %335 : vector<2x512xf32>
    %338 = arith.divf %336, %337 : vector<2x512xf32>
    %339 = vector.extract_strided_slice %338 {offsets = [0, 0], sizes = [2, 96], strides = [1, 1]} : vector<2x512xf32> to vector<2x96xf32>
    %340 = vector.extract_strided_slice %338 {offsets = [0, 128], sizes = [2, 96], strides = [1, 1]} : vector<2x512xf32> to vector<2x96xf32>
    %341 = vector.extract_strided_slice %338 {offsets = [0, 256], sizes = [2, 96], strides = [1, 1]} : vector<2x512xf32> to vector<2x96xf32>
    %cst_103 = arith.constant 2.000000e+00 : f32
    %342 = vector.broadcast %cst_103 : f32 to vector<2x96xf32>
    %343 = arith.mulf %342, %341 : vector<2x96xf32>
    %cst_104 = arith.constant 1.000000e+00 : f32
    %344 = vector.broadcast %cst_104 : f32 to vector<2x96xf32>
    %345 = arith.subf %343, %344 : vector<2x96xf32>
    %346 = vector.extract_strided_slice %338 {offsets = [0, 384], sizes = [2, 96], strides = [1, 1]} : vector<2x512xf32> to vector<2x96xf32>
    %347 = arith.mulf %340, %327 : vector<2x96xf32>
    %348 = arith.mulf %339, %345 : vector<2x96xf32>
    %349 = arith.addf %347, %348 : vector<2x96xf32>
    %350 = math.tanh %349 : vector<2x96xf32>
    %351 = arith.mulf %346, %350 : vector<2x96xf32>
    %c12_105 = arith.constant 12 : index
    %c0_106 = arith.constant 0 : index
    %352 = vector.load %arg10[%c12_105, %c0_106] : memref<16x96xf32, #tpu.memory_space<vmem>>, vector<2x96xf32>
    tpu.vector_store %arg10[%c12_105, %c0_106], %351 {strides = array<i32>} : memref<16x96xf32, #tpu.memory_space<vmem>>, vector<2x96xf32>,
    %353 = vector.extract_strided_slice %196 {offsets = [14, 0], sizes = [2, 512], strides = [1, 1]} : vector<16x512xf32> to vector<2x512xf32>
    %cst_107 = arith.constant dense<0.000000e+00> : vector<2x512xf32>
    %354 = tpu.matmul %351, %191, %cst_107 {dimension_numbers = #tpu.dot_dimension_numbers<[1], [0], [0], [1], [0, 0, 1, 1], [], []>} : vector<2x96xf32>, vector<96x512xf32>, vector<2x512xf32> -> vector<2x512xf32>
    %355 = arith.addf %353, %354 : vector<2x512xf32>
    %356 = arith.negf %355 : vector<2x512xf32>
    %357 = math.exp %356 : vector<2x512xf32>
    %cst_108 = arith.constant 1.000000e+00 : f32
    %358 = vector.broadcast %cst_108 : f32 to vector<2x512xf32>
    %359 = arith.addf %358, %357 : vector<2x512xf32>
    %360 = arith.divf %358, %359 : vector<2x512xf32>
    %361 = vector.extract_strided_slice %360 {offsets = [0, 0], sizes = [2, 96], strides = [1, 1]} : vector<2x512xf32> to vector<2x96xf32>
    %362 = vector.extract_strided_slice %360 {offsets = [0, 128], sizes = [2, 96], strides = [1, 1]} : vector<2x512xf32> to vector<2x96xf32>
    %363 = vector.extract_strided_slice %360 {offsets = [0, 256], sizes = [2, 96], strides = [1, 1]} : vector<2x512xf32> to vector<2x96xf32>
    %cst_109 = arith.constant 2.000000e+00 : f32
    %364 = vector.broadcast %cst_109 : f32 to vector<2x96xf32>
    %365 = arith.mulf %364, %363 : vector<2x96xf32>
    %cst_110 = arith.constant 1.000000e+00 : f32
    %366 = vector.broadcast %cst_110 : f32 to vector<2x96xf32>
    %367 = arith.subf %365, %366 : vector<2x96xf32>
    %368 = vector.extract_strided_slice %360 {offsets = [0, 384], sizes = [2, 96], strides = [1, 1]} : vector<2x512xf32> to vector<2x96xf32>
    %369 = arith.mulf %362, %349 : vector<2x96xf32>
    %370 = arith.mulf %361, %367 : vector<2x96xf32>
    %371 = arith.addf %369, %370 : vector<2x96xf32>
    %372 = math.tanh %371 : vector<2x96xf32>
    %373 = arith.mulf %368, %372 : vector<2x96xf32>
    %c14_111 = arith.constant 14 : index
    %c0_112 = arith.constant 0 : index
    %374 = vector.load %arg10[%c14_111, %c0_112] : memref<16x96xf32, #tpu.memory_space<vmem>>, vector<2x96xf32>
    tpu.vector_store %arg10[%c14_111, %c0_112], %373 {strides = array<i32>} : memref<16x96xf32, #tpu.memory_space<vmem>>, vector<2x96xf32>,
    %c0_113 = arith.constant 0 : index
    %c0_114 = arith.constant 0 : index
    %375 = vector.load %arg10[%c0_113, %c0_114] : memref<16x96xf32, #tpu.memory_space<vmem>>, vector<16x96xf32>
    %c0_115 = arith.constant 0 : index
    %c0_116 = arith.constant 0 : index
    %376 = vector.load %arg6[%c0_115, %c0_116] : memref<96x128xf32, #tpu.memory_space<vmem>>, vector<96x128xf32>
    %cst_117 = arith.constant dense<0.000000e+00> : vector<16x128xf32>
    %377 = tpu.matmul %375, %376, %cst_117 {dimension_numbers = #tpu.dot_dimension_numbers<[1], [0], [0], [1], [0, 0, 1, 1], [], []>} : vector<16x96xf32>, vector<96x128xf32>, vector<16x128xf32> -> vector<16x128xf32>
    %c0_118 = arith.constant 0 : index
    %c0_119 = arith.constant 0 : index
    %378 = vector.load %arg7[%c0_118, %c0_119] : memref<1x128xf32, #tpu.memory_space<vmem>>, vector<1x128xf32>
    %379 = vector.broadcast %378 : vector<1x128xf32> to vector<16x128xf32>
    %380 = arith.addf %377, %379 : vector<16x128xf32>
    %c0_120 = arith.constant 0 : index
    %c0_121 = arith.constant 0 : index
    %381 = vector.load %arg8[%c0_120, %c0_121] : memref<16x128xf32, #tpu.memory_space<vmem>>, vector<16x128xf32>
    tpu.vector_store %arg8[%c0_120, %c0_121], %380 {strides = array<i32>} : memref<16x128xf32, #tpu.memory_space<vmem>>, vector<16x128xf32>,
    return
  }
  func.func @transform_0(%arg0: i32) -> (i32, i32) {
    %c0_i32 = arith.constant 0 : i32
    %c0_i32_0 = arith.constant 0 : i32
    %c0_i32_1 = arith.constant 0 : i32
    return %c0_i32, %c0_i32_0 : i32, i32
  }
  func.func @transform_1(%arg0: i32) -> (i32, i32) {
    %c0_i32 = arith.constant 0 : i32
    %c0_i32_0 = arith.constant 0 : i32
    %c0_i32_1 = arith.constant 0 : i32
    return %c0_i32, %c0_i32_0 : i32, i32
  }
  func.func @transform_2(%arg0: i32) -> (i32, i32, i32) {
    %c0_i32 = arith.constant 0 : i32
    %c0_i32_0 = arith.constant 0 : i32
    %c0_i32_1 = arith.constant 0 : i32
    %c0_i32_2 = arith.constant 0 : i32
    return %c0_i32, %c0_i32_0, %c0_i32_1 : i32, i32, i32
  }
  func.func @transform_3(%arg0: i32) -> (i32, i32, i32) {
    %c0_i32 = arith.constant 0 : i32
    %c0_i32_0 = arith.constant 0 : i32
    %c0_i32_1 = arith.constant 0 : i32
    %c0_i32_2 = arith.constant 0 : i32
    return %c0_i32, %c0_i32_0, %c0_i32_1 : i32, i32, i32
  }
  func.func @transform_4(%arg0: i32) -> (i32, i32, i32) {
    %c0_i32 = arith.constant 0 : i32
    %c0_i32_0 = arith.constant 0 : i32
    %c0_i32_1 = arith.constant 0 : i32
    %c0_i32_2 = arith.constant 0 : i32
    return %c0_i32, %c0_i32_0, %c0_i32_1 : i32, i32, i32
  }
  func.func @transform_5(%arg0: i32) -> (i32, i32) {
    %c0_i32 = arith.constant 0 : i32
    %c0_i32_0 = arith.constant 0 : i32
    %c0_i32_1 = arith.constant 0 : i32
    return %c0_i32, %c0_i32_0 : i32, i32
  }
  func.func @transform_6(%arg0: i32) -> (i32, i32) {
    %c0_i32 = arith.constant 0 : i32
    %c0_i32_0 = arith.constant 0 : i32
    %c0_i32_1 = arith.constant 0 : i32
    return %c0_i32, %c0_i32_0 : i32, i32
  }
  func.func @transform_7(%arg0: i32) -> (i32, i32) {
    %c0_i32 = arith.constant 0 : i32
    %c0_i32_0 = arith.constant 0 : i32
    %c0_i32_1 = arith.constant 0 : i32
    return %c0_i32, %c0_i32_0 : i32, i32
  }
}

</mosaic_0001>

<llo_original>
// kernel: squeeze.7
$region0: #{squeeze.7}
  %s0 = inlined_call_operand.vmem [shape: f32[16], index: 0, kind: input, shape index: {}]
  %s1 = inlined_call_operand.vmem [shape: f32[8,2], index: 1, kind: output, shape index: {}]
  $region1: #{squeeze.7} parent=0
    #allocation0 [shape = 'u8[4096]{0}', space=vmem, size = 0x1000, scoped, tag = 'scoped mem for input reshape']
    %s3 = sshll.u32 1, 1
    %s4 = ssub.s32 %s3, 1
    %v5 = vld [vmem:[%s0] sm:%s4]
    %6 = vst [vmem:[#allocation0] sm:%s4] %v5
    %v7 = vld [vmem:[#allocation0] sm:$0x1]
    %vm8 = vcmask 15360
    %9 = vst.msk [vmem:[%s1] sm:$0x1] %vm8, %v7
    %v10 = vld [vmem:[#allocation0] sm:$0x1]
    %11 = vrot.lane.b32.xlu0 %v10, 126
    %v12 = vpop.permute.xlu0 %11
    %vm13 = vcmask 15360
    %s14 = scalar_lea.vmem %s1, 1
    %15 = vst.msk [vmem:[%s14] sm:$0x1] %vm13, %v12
    %v16 = vld [vmem:[#allocation0] sm:$0x1]
    %17 = vrot.lane.b32.xlu0 %v16, 124
    %v18 = vpop.permute.xlu0 %17
    %vm19 = vcmask 15360
    %s20 = scalar_lea.vmem %s1, 2
    %21 = vst.msk [vmem:[%s20] sm:$0x1] %vm19, %v18
    %v22 = vld [vmem:[#allocation0] sm:$0x1]
    %23 = vrot.lane.b32.xlu0 %v22, 122
    %v24 = vpop.permute.xlu0 %23
    %vm25 = vcmask 15360
    %s26 = scalar_lea.vmem %s1, 3
    %27 = vst.msk [vmem:[%s26] sm:$0x1] %vm25, %v24
    %v28 = vld [vmem:[#allocation0] sm:$0x1]
    %29 = vrot.lane.b32.xlu0 %v28, 120
    %v30 = vpop.permute.xlu0 %29
    %vm31 = vcmask 15360
    %s32 = scalar_lea.vmem %s1, 4
    %33 = vst.msk [vmem:[%s32] sm:$0x1] %vm31, %v30
    %v34 = vld [vmem:[#allocation0] sm:$0x1]
    %35 = vrot.lane.b32.xlu0 %v34, 118
    %v36 = vpop.permute.xlu0 %35
    %vm37 = vcmask 15360
    %s38 = scalar_lea.vmem %s1, 5
    %39 = vst.msk [vmem:[%s38] sm:$0x1] %vm37, %v36
    %v40 = vld [vmem:[#allocation0] sm:$0x1]
    %41 = vrot.lane.b32.xlu0 %v40, 116
    %v42 = vpop.permute.xlu0 %41
    %vm43 = vcmask 15360
    %s44 = scalar_lea.vmem %s1, 6
    %45 = vst.msk [vmem:[%s44] sm:$0x1] %vm43, %v42
    %v46 = vld [vmem:[#allocation0] sm:$0x1]
    %47 = vrot.lane.b32.xlu0 %v46, 114
    %v48 = vpop.permute.xlu0 %47
    %vm49 = vcmask 15360
    %s50 = scalar_lea.vmem %s1, 7
    %51 = vst.msk [vmem:[%s50] sm:$0x1] %vm49, %v48

// kernel: _forward_impl.1
$region0: #{_forward_impl.1}
  #allocation0 [shape = 'u32[]', space=smem, size = 0x4, offset = 0x4, fixed_abs, tag = 'smem constant byte address 0x4 - core index']
  #allocation1 [shape = 'u32[144,128]{1,0:T(1,128)}', space=vmem, size = 0x12000, scoped, tag = 'internal scratch']
  #allocation2 [shape = 'f32[16,96]{1,0:T(8,128)}', space=vmem, size = 0x2000, scoped, tag = 'scratch operand']
  #allocation3 [shape = 'f32[16,96]{1,0:T(8,128)}', space=vmem, size = 0x2000, scoped, tag = 'scratch operand']
  %s0 = inlined_call_operand.vmem [shape: f32[16,24], index: 0, kind: input, shape index: {}]
  %s1 = inlined_call_operand.vmem [shape: f32[24,512], index: 1, kind: input, shape index: {}]
  %s2 = inlined_call_operand.hbm [shape: f32[1,96,512], index: 2, kind: input, shape index: {}]
  %s3 = inlined_call_operand.hbm [shape: f32[2,96,512], index: 3, kind: input, shape index: {}]
  %s4 = inlined_call_operand.vmem [shape: f32[2,1,512], index: 4, kind: input, shape index: {}]
  %s5 = inlined_call_operand.vmem [shape: f32[96,128], index: 5, kind: input, shape index: {}]
  %s6 = inlined_call_operand.vmem [shape: f32[1,128], index: 6, kind: input, shape index: {}]
  %s7 = inlined_call_operand.vmem [shape: f32[16,128], index: 7, kind: output, shape index: {}]
  %s8 = sld [smem:[#allocation0]]
  $region46: #{_forward_impl.1} parent=0
    _
  %s10 = ssub.s32 1, %s8
  %s11 = scalar_select 0, %s10, %s8
  $region1: #{_forward_impl.1} parent=0
    #allocation4 [shape = 'u8[196608]{0}', space=vmem, size = 0x30000, scoped, tag = 'input window, operand 2, single buffered']
    #allocation5 [shape = 's32[1]{0}', space=sflag, size = 0x4, scoped, tag = 'scoped memory for _forward_impl.1']
    #allocation6 [shape = 'u8[393216]{0}', space=vmem, size = 0x60000, scoped, tag = 'input window, operand 3, single buffered']
    #allocation7 [shape = 's32[1]{0}', space=sflag, size = 0x4, scoped, tag = 'scoped memory for _forward_impl.1']
    %12 = vsyncpa [#allocation5], 0
    %13 = vsyncpa [#allocation7], 0
    // Predicated region
    $region2: #{_forward_impl.1} parent=1 // pred_check
      _
    $region3: #{_forward_impl.1} parent=1 // pred_check_branch
      %15 = sbr.rel (0) target = $region5
    $region4: #{_forward_impl.1} parent=1 // pred_region
      _
    $region5: #{_forward_impl.1} parent=1 // pred_fallthru
      _
    // Predicated region
    $region6: #{_forward_impl.1} parent=1 // pred_check
      _
    $region7: #{_forward_impl.1} parent=1 // pred_check_branch
      %17 = sbr.rel (0) target = $region9
    $region8: #{_forward_impl.1} parent=1 // pred_region
      _
    $region9: #{_forward_impl.1} parent=1 // pred_fallthru
      _
    // Predicated region
    $region10: #{_forward_impl.1} parent=1 // pred_check
      _
    $region11: #{_forward_impl.1} parent=1 // pred_check_branch
      %19 = sbr.rel (0) target = $region13
    $region12: #{_forward_impl.1} parent=1 // pred_region
      %s21 = ssub.s32 6144, 6144
      %22 = vsyncadd [#allocation5], %s21
      %s23 = sshll.u32 [#allocation4], 4
      %s24 = int_to_ptr.vmem [resolvable:$true] %s23
      %29 = dma.hbm_to_vmem [thread:$0]  %s2, 6144, %s24, [#allocation5], 512, 512, 32
    $region13: #{_forward_impl.1} parent=1 // pred_fallthru
      _
    // Predicated region
    $region14: #{_forward_impl.1} parent=1 // pred_check
      _
    $region15: #{_forward_impl.1} parent=1 // pred_check_branch
      %31 = sbr.rel (0) target = $region17
    $region16: #{_forward_impl.1} parent=1 // pred_region
      %s33 = ssub.s32 12288, 12288
      %34 = vsyncadd [#allocation7], %s33
      %s35 = sshll.u32 [#allocation6], 4
      %s36 = int_to_ptr.vmem [resolvable:$true] %s35
      %41 = dma.hbm_to_vmem [thread:$0]  %s3, 12288, %s36, [#allocation7], 512, 512, 32
    $region17: #{_forward_impl.1} parent=1 // pred_fallthru
      _
    // Predicated region
    $region18: #{_forward_impl.1} parent=1 // pred_check
      _
    $region19: #{_forward_impl.1} parent=1 // pred_check_branch
      %43 = sbr.rel (0) target = $region21
    $region20: #{_forward_impl.1} parent=1 // pred_region
      _
    $region21: #{_forward_impl.1} parent=1 // pred_fallthru
      _
    // Predicated region
    $region22: #{_forward_impl.1} parent=1 // pred_check
      _
    $region23: #{_forward_impl.1} parent=1 // pred_check_branch
      %45 = sbr.rel (0) target = $region25
    $region24: #{_forward_impl.1} parent=1 // pred_region
      _
    $region25: #{_forward_impl.1} parent=1 // pred_fallthru
      _
    // Predicated region
    $region26: #{_forward_impl.1} parent=1 // pred_check
      _
    $region27: #{_forward_impl.1} parent=1 // pred_check_branch
      %47 = sbr.rel (0) target = $region29
    $region28: #{_forward_impl.1} parent=1 // pred_region
      _
    $region29: #{_forward_impl.1} parent=1 // pred_fallthru
      _
    // Predicated region
    $region30: #{_forward_impl.1} parent=1 // pred_check
      _
    $region31: #{_forward_impl.1} parent=1 // pred_check_branch
      %49 = sbr.rel (0) target = $region33
    $region32: #{_forward_impl.1} parent=1 // pred_region
      %50 = dma.done [#allocation5], 6144
    $region33: #{_forward_impl.1} parent=1 // pred_fallthru
      _
    // Predicated region
    $region34: #{_forward_impl.1} parent=1 // pred_check
      _
    $region35: #{_forward_impl.1} parent=1 // pred_check_branch
      %52 = sbr.rel (0) target = $region37
    $region36: #{_forward_impl.1} parent=1 // pred_region
      %53 = dma.done [#allocation7], 12288
    $region37: #{_forward_impl.1} parent=1 // pred_fallthru
      _
    %v54 = vld [vmem:[%s0] sm:$0xff]
    %v55 = vld [vmem:[%s0 + $0x8] sm:$0xff]
    %v56 = vld [vmem:[%s1] sm:$0xff]
    %v57 = vld [vmem:[%s1 + $0x8] sm:$0xff]
    %v58 = vld [vmem:[%s1 + $0x10] sm:$0xff]
    %v59 = vld [vmem:[%s1 + $0x18] sm:$0xff]
    %v60 = vld [vmem:[%s1 + $0x20] sm:$0xff]
    %v61 = vld [vmem:[%s1 + $0x28] sm:$0xff]
    %v62 = vld [vmem:[%s1 + $0x30] sm:$0xff]
    %v63 = vld [vmem:[%s1 + $0x38] sm:$0xff]
    %v64 = vld [vmem:[%s1 + $0x40] sm:$0xff]
    %v65 = vld [vmem:[%s1 + $0x48] sm:$0xff]
    %v66 = vld [vmem:[%s1 + $0x50] sm:$0xff]
    %v67 = vld [vmem:[%s1 + $0x58] sm:$0xff]
    %v68 = vld [vmem:[#allocation6] sm:$0xff]
    %v69 = vld [vmem:[#allocation6 + $0x8] sm:$0xff]
    %v70 = vld [vmem:[#allocation6 + $0x10] sm:$0xff]
    %v71 = vld [vmem:[#allocation6 + $0x18] sm:$0xff]
    %v72 = vld [vmem:[#allocation6 + $0x20] sm:$0xff]
    %v73 = vld [vmem:[#allocation6 + $0x28] sm:$0xff]
    %v74 = vld [vmem:[#allocation6 + $0x30] sm:$0xff]
    %v75 = vld [vmem:[#allocation6 + $0x38] sm:$0xff]
    %v76 = vld [vmem:[#allocation6 + $0x40] sm:$0xff]
    %v77 = vld [vmem:[#allocation6 + $0x48] sm:$0xff]
    %v78 = vld [vmem:[#allocation6 + $0x50] sm:$0xff]
    %v79 = vld [vmem:[#allocation6 + $0x58] sm:$0xff]
    %v80 = vld [vmem:[#allocation6 + $0x60] sm:$0xff]
    %v81 = vld [vmem:[#allocation6 + $0x68] sm:$0xff]
    %v82 = vld [vmem:[#allocation6 + $0x70] sm:$0xff]
    %v83 = vld [vmem:[#allocation6 + $0x78] sm:$0xff]
    %v84 = vld [vmem:[#allocation6 + $0x80] sm:$0xff]
    %v85 = vld [vmem:[#allocation6 + $0x88] sm:$0xff]
    %v86 = vld [vmem:[#allocation6 + $0x90] sm:$0xff]
    %v87 = vld [vmem:[#allocation6 + $0x98] sm:$0xff]
    %v88 = vld [vmem:[#allocation6 + $0xa0] sm:$0xff]
    %v89 = vld [vmem:[#allocation6 + $0xa8] sm:$0xff]
    %v90 = vld [vmem:[#allocation6 + $0xb0] sm:$0xff]
    %v91 = vld [vmem:[#allocation6 + $0xb8] sm:$0xff]
    %v92 = vld [vmem:[#allocation6 + $0xc0] sm:$0xff]
    %v93 = vld [vmem:[#allocation6 + $0xc8] sm:$0xff]
    %v94 = vld [vmem:[#allocation6 + $0xd0] sm:$0xff]
    %v95 = vld [vmem:[#allocation6 + $0xd8] sm:$0xff]
    %v96 = vld [vmem:[#allocation6 + $0xe0] sm:$0xff]
    %v97 = vld [vmem:[#allocation6 + $0xe8] sm:$0xff]
    %v98 = vld [vmem:[#allocation6 + $0xf0] sm:$0xff]
    %v99 = vld [vmem:[#allocation6 + $0xf8] sm:$0xff]
    %v100 = vld [vmem:[#allocation6 + $0x100] sm:$0xff]
    %v101 = vld [vmem:[#allocation6 + $0x108] sm:$0xff]
    %v102 = vld [vmem:[#allocation6 + $0x110] sm:$0xff]
    %v103 = vld [vmem:[#allocation6 + $0x118] sm:$0xff]
    %v104 = vld [vmem:[#allocation6 + $0x120] sm:$0xff]
    %v105 = vld [vmem:[#allocation6 + $0x128] sm:$0xff]
    %v106 = vld [vmem:[#allocation6 + $0x130] sm:$0xff]
    %v107 = vld [vmem:[#allocation6 + $0x138] sm:$0xff]
    %v108 = vld [vmem:[#allocation6 + $0x140] sm:$0xff]
    %v109 = vld [vmem:[#allocation6 + $0x148] sm:$0xff]
    %v110 = vld [vmem:[#allocation6 + $0x150] sm:$0xff]
    %v111 = vld [vmem:[#allocation6 + $0x158] sm:$0xff]
    %v112 = vld [vmem:[#allocation6 + $0x160] sm:$0xff]
    %v113 = vld [vmem:[#allocation6 + $0x168] sm:$0xff]
    %v114 = vld [vmem:[#allocation6 + $0x170] sm:$0xff]
    %v115 = vld [vmem:[#allocation6 + $0x178] sm:$0xff]
    %v116 = vld [vmem:[%s4] sm:$0xf]
    %v118 = vlaneseq
    %v119 = vshrl.u32 %v118, 7
    %v120 = vsub.s32 0, %v119
    %v121 = vrot.slane %v116, %v120
    %v122 = vlaneseq
    %v123 = vshrl.u32 %v122, 7
    %v124 = vsub.s32 1, %v123
    %v125 = vrot.slane %v116, %v124
    %v126 = vlaneseq
    %v127 = vshrl.u32 %v126, 7
    %v128 = vsub.s32 2, %v127
    %v129 = vrot.slane %v116, %v128
    %v130 = vlaneseq
    %v131 = vshrl.u32 %v130, 7
    %v132 = vsub.s32 3, %v131
    %v133 = vrot.slane %v116, %v132
    %vm138 = vcmask 195584
    %v140 = vsel %vm138, %v54, 0
    %v143 = vsel %vm138, %v55, 0
    %145 = vmatprep.subr.mxu0 0.0
    %146 = vmatpush1.msra.mxu0 0.0
    %147 = vmatprep.subr.mxu0 0.0
    %148 = vmatpush1.msra.mxu0 0.0
    %149 = vmatprep.subr.mxu0 0.0
    %150 = vmatpush1.msra.mxu0 0.0
    %151 = vmatprep.subr.mxu0 0.0
    %152 = vmatpush1.msra.mxu0 0.0
    %153 = vmatprep.subr.mxu0 0.0
    %154 = vmatpush1.msra.mxu0 0.0
    %155 = vmatprep.subr.mxu0 0.0
    %156 = vmatpush1.msra.mxu0 0.0
    %157 = vmatprep.subr.mxu0 0.0
    %158 = vmatpush1.msra.mxu0 0.0
    %159 = vmatprep.subr.mxu0 0.0
    %160 = vmatpush1.msra.mxu0 0.0
    %161 = vmatprep.subr.mxu0 0.0
    %162 = vmatpush1.msra.mxu0 0.0
    %163 = vmatprep.subr.mxu0 0.0
    %164 = vmatpush1.msra.mxu0 0.0
    %165 = vmatprep.subr.mxu0 0.0
    %166 = vmatpush1.msra.mxu0 0.0
    %167 = vmatprep.subr.mxu0 0.0
    %168 = vmatpush1.msra.mxu0 0.0
    %169 = vmatprep.subr.mxu0 0.0
    %170 = vmatpush1.msra.mxu0 0.0
    %171 = vmatprep.subr.mxu0 %v65
    %172 = vmatpush1.msra.mxu0 %v64
    %173 = vmatprep.subr.mxu0 %v61
    %174 = vmatpush1.msra.mxu0 %v60
    %175 = vmatprep.subr.mxu0 %v57
    %176 = vmatpush1.msra.mxu0 %v56
    %177 = vmatprep.subr.mxu0 0.0
    %178 = vmatpush2.msra.mxu0 0.0
    %179 = vmatprep.subr.mxu0 0.0
    %180 = vmatpush2.msra.mxu0 0.0
    %181 = vmatprep.subr.mxu0 0.0
    %182 = vmatpush2.msra.mxu0 0.0
    %183 = vmatprep.subr.mxu0 0.0
    %184 = vmatpush2.msra.mxu0 0.0
    %185 = vmatprep.subr.mxu0 0.0
    %186 = vmatpush2.msra.mxu0 0.0
    %187 = vmatprep.subr.mxu0 0.0
    %188 = vmatpush2.msra.mxu0 0.0
    %189 = vmatprep.subr.mxu0 0.0
    %190 = vmatpush2.msra.mxu0 0.0
    %191 = vmatprep.subr.mxu0 0.0
    %192 = vmatpush2.msra.mxu0 0.0
    %193 = vmatprep.subr.mxu0 0.0
    %194 = vmatpush2.msra.mxu0 0.0
    %195 = vmatprep.subr.mxu0 0.0
    %196 = vmatpush2.msra.mxu0 0.0
    %197 = vmatprep.subr.mxu0 0.0
    %198 = vmatpush2.msra.mxu0 0.0
    %199 = vmatprep.subr.mxu0 0.0
    %200 = vmatpush2.msra.mxu0 0.0
    %201 = vmatprep.subr.mxu0 0.0
    %202 = vmatpush2.msra.mxu0 0.0
    %203 = vmatprep.subr.mxu0 0.0
    %204 = vmatpush2.msra.mxu0 0.0
    %205 = vmatprep.subr.mxu0 0.0
    %206 = vmatpush2.msra.mxu0 0.0
    %207 = vmatprep.subr.mxu0 0.0
    %208 = vmatpush2.msra.mxu0 0.0
    %209 = vmatprep.mubr.f32.mxu0 0.0
    %210 = vmatmul.mubr.f32.gmra.mxu0 %v140
    %v211 = vpop.f32.mrf.mxu0
    %v212 = vadd.f32 %v121, %v211
    %v213 = vpop.f32.mrf.mxu0
    %v214 = vadd.f32 %v125, %v213
    %215 = vmatprep.mubr.f32.mxu0 0.0
    %216 = vmatmul.mubr.f32.gmra.mxu0 %v143
    %v217 = vpop.f32.mrf.mxu0
    %v218 = vadd.f32 %v121, %v217
    %v219 = vpop.f32.mrf.mxu0
    %v220 = vadd.f32 %v125, %v219
    %221 = vdwg.mxu0
    %222 = vmatprep.subr.mxu0 0.0
    %223 = vmatpush1.msra.mxu0 0.0
    %224 = vmatprep.subr.mxu0 0.0
    %225 = vmatpush1.msra.mxu0 0.0
    %226 = vmatprep.subr.mxu0 0.0
    %227 = vmatpush1.msra.mxu0 0.0
    %228 = vmatprep.subr.mxu0 0.0
    %229 = vmatpush1.msra.mxu0 0.0
    %230 = vmatprep.subr.mxu0 0.0
    %231 = vmatpush1.msra.mxu0 0.0
    %232 = vmatprep.subr.mxu0 0.0
    %233 = vmatpush1.msra.mxu0 0.0
    %234 = vmatprep.subr.mxu0 0.0
    %235 = vmatpush1.msra.mxu0 0.0
    %236 = vmatprep.subr.mxu0 0.0
    %237 = vmatpush1.msra.mxu0 0.0
    %238 = vmatprep.subr.mxu0 0.0
    %239 = vmatpush1.msra.mxu0 0.0
    %240 = vmatprep.subr.mxu0 0.0
    %241 = vmatpush1.msra.mxu0 0.0
    %242 = vmatprep.subr.mxu0 0.0
    %243 = vmatpush1.msra.mxu0 0.0
    %244 = vmatprep.subr.mxu0 0.0
    %245 = vmatpush1.msra.mxu0 0.0
    %246 = vmatprep.subr.mxu0 0.0
    %247 = vmatpush1.msra.mxu0 0.0
    %248 = vmatprep.subr.mxu0 %v67
    %249 = vmatpush1.msra.mxu0 %v66
    %250 = vmatprep.subr.mxu0 %v63
    %251 = vmatpush1.msra.mxu0 %v62
    %252 = vmatprep.subr.mxu0 %v59
    %253 = vmatpush1.msra.mxu0 %v58
    %254 = vmatprep.subr.mxu0 0.0
    %255 = vmatpush2.msra.mxu0 0.0
    %256 = vmatprep.subr.mxu0 0.0
    %257 = vmatpush2.msra.mxu0 0.0
    %258 = vmatprep.subr.mxu0 0.0
    %259 = vmatpush2.msra.mxu0 0.0
    %260 = vmatprep.subr.mxu0 0.0
    %261 = vmatpush2.msra.mxu0 0.0
    %262 = vmatprep.subr.mxu0 0.0
    %263 = vmatpush2.msra.mxu0 0.0
    %264 = vmatprep.subr.mxu0 0.0
    %265 = vmatpush2.msra.mxu0 0.0
    %266 = vmatprep.subr.mxu0 0.0
    %267 = vmatpush2.msra.mxu0 0.0
    %268 = vmatprep.subr.mxu0 0.0
    %269 = vmatpush2.msra.mxu0 0.0
    %270 = vmatprep.subr.mxu0 0.0
    %271 = vmatpush2.msra.mxu0 0.0
    %272 = vmatprep.subr.mxu0 0.0
    %273 = vmatpush2.msra.mxu0 0.0
    %274 = vmatprep.subr.mxu0 0.0
    %275 = vmatpush2.msra.mxu0 0.0
    %276 = vmatprep.subr.mxu0 0.0
    %277 = vmatpush2.msra.mxu0 0.0
    %278 = vmatprep.subr.mxu0 0.0
    %279 = vmatpush2.msra.mxu0 0.0
    %280 = vmatprep.subr.mxu0 0.0
    %281 = vmatpush2.msra.mxu0 0.0
    %282 = vmatprep.subr.mxu0 0.0
    %283 = vmatpush2.msra.mxu0 0.0
    %284 = vmatprep.subr.mxu0 0.0
    %285 = vmatpush2.msra.mxu0 0.0
    %286 = vmatprep.mubr.f32.mxu0 0.0
    %287 = vmatmul.mubr.f32.gmra.mxu0 %v140
    %v288 = vpop.f32.mrf.mxu0
    %v289 = vadd.f32 %v129, %v288
    %v290 = vpop.f32.mrf.mxu0
    %v291 = vadd.f32 %v133, %v290
    %292 = vmatprep.mubr.f32.mxu0 0.0
    %293 = vmatmul.mubr.f32.gmra.mxu0 %v143
    %v294 = vpop.f32.mrf.mxu0
    %v295 = vadd.f32 %v129, %v294
    %v296 = vpop.f32.mrf.mxu0
    %v297 = vadd.f32 %v133, %v296
    %298 = vdwg.mxu0
    %vm299 = vcmask 785408
    %v301 = vsel %vm299, 0.0, 0
    %303 = vmatprep.subr.mxu0 0.0
    %304 = vmatpush1.msra.mxu0 0.0
    %305 = vmatprep.subr.mxu0 0.0
    %306 = vmatpush1.msra.mxu0 0.0
    %307 = vmatprep.subr.mxu0 0.0
    %308 = vmatpush1.msra.mxu0 0.0
    %309 = vmatprep.subr.mxu0 0.0
    %310 = vmatpush1.msra.mxu0 0.0
    %311 = vmatprep.subr.mxu0 %v113
    %312 = vmatpush1.msra.mxu0 %v112
    %313 = vmatprep.subr.mxu0 %v109
    %314 = vmatpush1.msra.mxu0 %v108
    %315 = vmatprep.subr.mxu0 %v105
    %316 = vmatpush1.msra.mxu0 %v104
    %317 = vmatprep.subr.mxu0 %v101
    %318 = vmatpush1.msra.mxu0 %v100
    %319 = vmatprep.subr.mxu0 %v97
    %320 = vmatpush1.msra.mxu0 %v96
    %321 = vmatprep.subr.mxu0 %v93
    %322 = vmatpush1.msra.mxu0 %v92
    %323 = vmatprep.subr.mxu0 %v89
    %324 = vmatpush1.msra.mxu0 %v88
    %325 = vmatprep.subr.mxu0 %v85
    %326 = vmatpush1.msra.mxu0 %v84
    %327 = vmatprep.subr.mxu0 %v81
    %328 = vmatpush1.msra.mxu0 %v80
    %329 = vmatprep.subr.mxu0 %v77
    %330 = vmatpush1.msra.mxu0 %v76
    %331 = vmatprep.subr.mxu0 %v73
    %332 = vmatpush1.msra.mxu0 %v72
    %333 = vmatprep.subr.mxu0 %v69
    %334 = vmatpush1.msra.mxu0 %v68
    %335 = vmatprep.subr.mxu0 0.0
    %336 = vmatpush2.msra.mxu0 0.0
    %337 = vmatprep.subr.mxu0 0.0
    %338 = vmatpush2.msra.mxu0 0.0
    %339 = vmatprep.subr.mxu0 0.0
    %340 = vmatpush2.msra.mxu0 0.0
    %341 = vmatprep.subr.mxu0 0.0
    %342 = vmatpush2.msra.mxu0 0.0
    %343 = vmatprep.subr.mxu0 0.0
    %344 = vmatpush2.msra.mxu0 0.0
    %345 = vmatprep.subr.mxu0 0.0
    %346 = vmatpush2.msra.mxu0 0.0
    %347 = vmatprep.subr.mxu0 0.0
    %348 = vmatpush2.msra.mxu0 0.0
    %349 = vmatprep.subr.mxu0 0.0
    %350 = vmatpush2.msra.mxu0 0.0
    %351 = vmatprep.subr.mxu0 0.0
    %352 = vmatpush2.msra.mxu0 0.0
    %353 = vmatprep.subr.mxu0 0.0
    %354 = vmatpush2.msra.mxu0 0.0
    %355 = vmatprep.subr.mxu0 0.0
    %356 = vmatpush2.msra.mxu0 0.0
    %357 = vmatprep.subr.mxu0 0.0
    %358 = vmatpush2.msra.mxu0 0.0
    %359 = vmatprep.subr.mxu0 0.0
    %360 = vmatpush2.msra.mxu0 0.0
    %361 = vmatprep.subr.mxu0 0.0
    %362 = vmatpush2.msra.mxu0 0.0
    %363 = vmatprep.subr.mxu0 0.0
    %364 = vmatpush2.msra.mxu0 0.0
    %365 = vmatprep.subr.mxu0 0.0
    %366 = vmatpush2.msra.mxu0 0.0
    %367 = vmatprep.mubr.f32.mxu0 0.0
    %368 = vmatmul.mubr.f32.gmra.mxu0 %v301
    %v369 = vpop.f32.mrf.mxu0
    %v370 = vadd.f32 0.0, %v369
    %v371 = vpop.f32.mrf.mxu0
    %v372 = vadd.f32 0.0, %v371
    %373 = vdwg.mxu0
    %374 = vmatprep.subr.mxu0 0.0
    %375 = vmatpush1.msra.mxu0 0.0
    %376 = vmatprep.subr.mxu0 0.0
    %377 = vmatpush1.msra.mxu0 0.0
    %378 = vmatprep.subr.mxu0 0.0
    %379 = vmatpush1.msra.mxu0 0.0
    %380 = vmatprep.subr.mxu0 0.0
    %381 = vmatpush1.msra.mxu0 0.0
    %382 = vmatprep.subr.mxu0 %v115
    %383 = vmatpush1.msra.mxu0 %v114
    %384 = vmatprep.subr.mxu0 %v111
    %385 = vmatpush1.msra.mxu0 %v110
    %386 = vmatprep.subr.mxu0 %v107
    %387 = vmatpush1.msra.mxu0 %v106
    %388 = vmatprep.subr.mxu0 %v103
    %389 = vmatpush1.msra.mxu0 %v102
    %390 = vmatprep.subr.mxu0 %v99
    %391 = vmatpush1.msra.mxu0 %v98
    %392 = vmatprep.subr.mxu0 %v95
    %393 = vmatpush1.msra.mxu0 %v94
    %394 = vmatprep.subr.mxu0 %v91
    %395 = vmatpush1.msra.mxu0 %v90
    %396 = vmatprep.subr.mxu0 %v87
    %397 = vmatpush1.msra.mxu0 %v86
    %398 = vmatprep.subr.mxu0 %v83
    %399 = vmatpush1.msra.mxu0 %v82
    %400 = vmatprep.subr.mxu0 %v79
    %401 = vmatpush1.msra.mxu0 %v78
    %402 = vmatprep.subr.mxu0 %v75
    %403 = vmatpush1.msra.mxu0 %v74
    %404 = vmatprep.subr.mxu0 %v71
    %405 = vmatpush1.msra.mxu0 %v70
    %406 = vmatprep.subr.mxu0 0.0
    %407 = vmatpush2.msra.mxu0 0.0
    %408 = vmatprep.subr.mxu0 0.0
    %409 = vmatpush2.msra.mxu0 0.0
    %410 = vmatprep.subr.mxu0 0.0
    %411 = vmatpush2.msra.mxu0 0.0
    %412 = vmatprep.subr.mxu0 0.0
    %413 = vmatpush2.msra.mxu0 0.0
    %414 = vmatprep.subr.mxu0 0.0
    %415 = vmatpush2.msra.mxu0 0.0
    %416 = vmatprep.subr.mxu0 0.0
    %417 = vmatpush2.msra.mxu0 0.0
    %418 = vmatprep.subr.mxu0 0.0
    %419 = vmatpush2.msra.mxu0 0.0
    %420 = vmatprep.subr.mxu0 0.0
    %421 = vmatpush2.msra.mxu0 0.0
    %422 = vmatprep.subr.mxu0 0.0
    %423 = vmatpush2.msra.mxu0 0.0
    %424 = vmatprep.subr.mxu0 0.0
    %425 = vmatpush2.msra.mxu0 0.0
    %426 = vmatprep.subr.mxu0 0.0
    %427 = vmatpush2.msra.mxu0 0.0
    %428 = vmatprep.subr.mxu0 0.0
    %429 = vmatpush2.msra.mxu0 0.0
    %430 = vmatprep.subr.mxu0 0.0
    %431 = vmatpush2.msra.mxu0 0.0
    %432 = vmatprep.subr.mxu0 0.0
    %433 = vmatpush2.msra.mxu0 0.0
    %434 = vmatprep.subr.mxu0 0.0
    %435 = vmatpush2.msra.mxu0 0.0
    %436 = vmatprep.subr.mxu0 0.0
    %437 = vmatpush2.msra.mxu0 0.0
    %438 = vmatprep.mubr.f32.mxu0 0.0
    %439 = vmatmul.mubr.f32.gmra.mxu0 %v301
    %v440 = vpop.f32.mrf.mxu0
    %v441 = vadd.f32 0.0, %v440
    %v442 = vpop.f32.mrf.mxu0
    %v443 = vadd.f32 0.0, %v442
    %444 = vdwg.mxu0
    %v445 = vadd.f32 %v212, %v370
    %v446 = vadd.f32 %v214, %v372
    %v447 = vadd.f32 %v289, %v441
    %v448 = vadd.f32 %v291, %v443
    %v449 = vxor.u32 %v445, 2147483648
    %v450 = vxor.u32 %v446, 2147483648
    %v451 = vxor.u32 %v447, 2147483648
    %v452 = vxor.u32 %v448, 2147483648
    %v453 = vmul.f32 %v449, 1.442695
    %v454 = vpow.pop %v453
    %v455 = vmul.f32 %v450, 1.442695
    %v456 = vpow.pop %v455
    %v457 = vmul.f32 %v451, 1.442695
    %v458 = vpow.pop %v457
    %v459 = vmul.f32 %v452, 1.442695
    %v460 = vpow.pop %v459
    %v461 = vadd.f32 %v454, 1.0
    %v462 = vadd.f32 %v456, 1.0
    %v463 = vadd.f32 %v458, 1.0
    %v464 = vadd.f32 %v460, 1.0
    %v465 = vrcp.pop %v461
    %v466 = vmul.f32 1.0, %v465
    %v467 = vrcp.pop %v462
    %v468 = vmul.f32 1.0, %v467
    %v469 = vrcp.pop %v463
    %v470 = vmul.f32 1.0, %v469
    %v471 = vrcp.pop %v464
    %v472 = vmul.f32 1.0, %v471
    %v473 = vmul.f32 %v470, 2.0
    %v474 = vsub.f32 %v473, 1.0
    %v475 = vmul.f32 %v468, 0.0
    %v476 = vmul.f32 %v466, %v474
    %v477 = vadd.f32 %v475, %v476
    %v478 = vtanh.pop %v477
    %v479 = vmul.f32 %v472, %v478
    %vm480 = vcmask 779264
    %481 = vst.msk [vmem:[#allocation2] sm:$0x3] %vm480, %v479
    %v483 = vsel %vm299, %v479, 0
    %485 = vmatprep.subr.mxu0 0.0
    %486 = vmatpush1.msra.mxu0 0.0
    %487 = vmatprep.subr.mxu0 0.0
    %488 = vmatpush1.msra.mxu0 0.0
    %489 = vmatprep.subr.mxu0 0.0
    %490 = vmatpush1.msra.mxu0 0.0
    %491 = vmatprep.subr.mxu0 0.0
    %492 = vmatpush1.msra.mxu0 0.0
    %493 = vmatprep.subr.mxu0 %v113
    %494 = vmatpush1.msra.mxu0 %v112
    %495 = vmatprep.subr.mxu0 %v109
    %496 = vmatpush1.msra.mxu0 %v108
    %497 = vmatprep.subr.mxu0 %v105
    %498 = vmatpush1.msra.mxu0 %v104
    %499 = vmatprep.subr.mxu0 %v101
    %500 = vmatpush1.msra.mxu0 %v100
    %501 = vmatprep.subr.mxu0 %v97
    %502 = vmatpush1.msra.mxu0 %v96
    %503 = vmatprep.subr.mxu0 %v93
    %504 = vmatpush1.msra.mxu0 %v92
    %505 = vmatprep.subr.mxu0 %v89
    %506 = vmatpush1.msra.mxu0 %v88
    %507 = vmatprep.subr.mxu0 %v85
    %508 = vmatpush1.msra.mxu0 %v84
    %509 = vmatprep.subr.mxu0 %v81
    %510 = vmatpush1.msra.mxu0 %v80
    %511 = vmatprep.subr.mxu0 %v77
    %512 = vmatpush1.msra.mxu0 %v76
    %513 = vmatprep.subr.mxu0 %v73
    %514 = vmatpush1.msra.mxu0 %v72
    %515 = vmatprep.subr.mxu0 %v69
    %516 = vmatpush1.msra.mxu0 %v68
    %517 = vmatprep.subr.mxu0 0.0
    %518 = vmatpush2.msra.mxu0 0.0
    %519 = vmatprep.subr.mxu0 0.0
    %520 = vmatpush2.msra.mxu0 0.0
    %521 = vmatprep.subr.mxu0 0.0
    %522 = vmatpush2.msra.mxu0 0.0
    %523 = vmatprep.subr.mxu0 0.0
    %524 = vmatpush2.msra.mxu0 0.0
    %525 = vmatprep.subr.mxu0 0.0
    %526 = vmatpush2.msra.mxu0 0.0
    %527 = vmatprep.subr.mxu0 0.0
    %528 = vmatpush2.msra.mxu0 0.0
    %529 = vmatprep.subr.mxu0 0.0
    %530 = vmatpush2.msra.mxu0 0.0
    %531 = vmatprep.subr.mxu0 0.0
    %532 = vmatpush2.msra.mxu0 0.0
    %533 = vmatprep.subr.mxu0 0.0
    %534 = vmatpush2.msra.mxu0 0.0
    %535 = vmatprep.subr.mxu0 0.0
    %536 = vmatpush2.msra.mxu0 0.0
    %537 = vmatprep.subr.mxu0 0.0
    %538 = vmatpush2.msra.mxu0 0.0
    %539 = vmatprep.subr.mxu0 0.0
    %540 = vmatpush2.msra.mxu0 0.0
    %541 = vmatprep.subr.mxu0 0.0
    %542 = vmatpush2.msra.mxu0 0.0
    %543 = vmatprep.subr.mxu0 0.0
    %544 = vmatpush2.msra.mxu0 0.0
    %545 = vmatprep.subr.mxu0 0.0
    %546 = vmatpush2.msra.mxu0 0.0
    %547 = vmatprep.subr.mxu0 0.0
    %548 = vmatpush2.msra.mxu0 0.0
    %549 = vmatprep.mubr.f32.mxu0 0.0
    %550 = vmatmul.mubr.f32.gmra.mxu0 %v483
    %v551 = vpop.f32.mrf.mxu0
    %v552 = vadd.f32 0.0, %v551
    %v553 = vpop.f32.mrf.mxu0
    %v554 = vadd.f32 0.0, %v553
    %555 = vdwg.mxu0
    %556 = vmatprep.subr.mxu0 0.0
    %557 = vmatpush1.msra.mxu0 0.0
    %558 = vmatprep.subr.mxu0 0.0
    %559 = vmatpush1.msra.mxu0 0.0
    %560 = vmatprep.subr.mxu0 0.0
    %561 = vmatpush1.msra.mxu0 0.0
    %562 = vmatprep.subr.mxu0 0.0
    %563 = vmatpush1.msra.mxu0 0.0
    %564 = vmatprep.subr.mxu0 %v115
    %565 = vmatpush1.msra.mxu0 %v114
    %566 = vmatprep.subr.mxu0 %v111
    %567 = vmatpush1.msra.mxu0 %v110
    %568 = vmatprep.subr.mxu0 %v107
    %569 = vmatpush1.msra.mxu0 %v106
    %570 = vmatprep.subr.mxu0 %v103
    %571 = vmatpush1.msra.mxu0 %v102
    %572 = vmatprep.subr.mxu0 %v99
    %573 = vmatpush1.msra.mxu0 %v98
    %574 = vmatprep.subr.mxu0 %v95
    %575 = vmatpush1.msra.mxu0 %v94
    %576 = vmatprep.subr.mxu0 %v91
    %577 = vmatpush1.msra.mxu0 %v90
    %578 = vmatprep.subr.mxu0 %v87
    %579 = vmatpush1.msra.mxu0 %v86
    %580 = vmatprep.subr.mxu0 %v83
    %581 = vmatpush1.msra.mxu0 %v82
    %582 = vmatprep.subr.mxu0 %v79
    %583 = vmatpush1.msra.mxu0 %v78
    %584 = vmatprep.subr.mxu0 %v75
    %585 = vmatpush1.msra.mxu0 %v74
    %586 = vmatprep.subr.mxu0 %v71
    %587 = vmatpush1.msra.mxu0 %v70
    %588 = vmatprep.subr.mxu0 0.0
    %589 = vmatpush2.msra.mxu0 0.0
    %590 = vmatprep.subr.mxu0 0.0
    %591 = vmatpush2.msra.mxu0 0.0
    %592 = vmatprep.subr.mxu0 0.0
    %593 = vmatpush2.msra.mxu0 0.0
    %594 = vmatprep.subr.mxu0 0.0
    %595 = vmatpush2.msra.mxu0 0.0
    %596 = vmatprep.subr.mxu0 0.0
    %597 = vmatpush2.msra.mxu0 0.0
    %598 = vmatprep.subr.mxu0 0.0
    %599 = vmatpush2.msra.mxu0 0.0
    %600 = vmatprep.subr.mxu0 0.0
    %601 = vmatpush2.msra.mxu0 0.0
    %602 = vmatprep.subr.mxu0 0.0
    %603 = vmatpush2.msra.mxu0 0.0
    %604 = vmatprep.subr.mxu0 0.0
    %605 = vmatpush2.msra.mxu0 0.0
    %606 = vmatprep.subr.mxu0 0.0
    %607 = vmatpush2.msra.mxu0 0.0
    %608 = vmatprep.subr.mxu0 0.0
    %609 = vmatpush2.msra.mxu0 0.0
    %610 = vmatprep.subr.mxu0 0.0
    %611 = vmatpush2.msra.mxu0 0.0
    %612 = vmatprep.subr.mxu0 0.0
    %613 = vmatpush2.msra.mxu0 0.0
    %614 = vmatprep.subr.mxu0 0.0
    %615 = vmatpush2.msra.mxu0 0.0
    %616 = vmatprep.subr.mxu0 0.0
    %617 = vmatpush2.msra.mxu0 0.0
    %618 = vmatprep.subr.mxu0 0.0
    %619 = vmatpush2.msra.mxu0 0.0
    %620 = vmatprep.mubr.f32.mxu0 0.0
    %621 = vmatmul.mubr.f32.gmra.mxu0 %v483
    %v622 = vpop.f32.mrf.mxu0
    %v623 = vadd.f32 0.0, %v622
    %v624 = vpop.f32.mrf.mxu0
    %v625 = vadd.f32 0.0, %v624
    %626 = vdwg.mxu0
    %v631 = vrot.slane %v552, 6
    %v632 = vrot.slane %v554, 6
    %v633 = vrot.slane %v623, 6
    %v634 = vrot.slane %v625, 6
    %v639 = vadd.f32 %v212, %v631
    %v640 = vadd.f32 %v214, %v632
    %v641 = vadd.f32 %v289, %v633
    %v642 = vadd.f32 %v291, %v634
    %v643 = vxor.u32 %v639, 2147483648
    %v644 = vxor.u32 %v640, 2147483648
    %v645 = vxor.u32 %v641, 2147483648
    %v646 = vxor.u32 %v642, 2147483648
    %v647 = vmul.f32 %v643, 1.442695
    %v648 = vpow.pop %v647
    %v649 = vmul.f32 %v644, 1.442695
    %v650 = vpow.pop %v649
    %v651 = vmul.f32 %v645, 1.442695
    %v652 = vpow.pop %v651
    %v653 = vmul.f32 %v646, 1.442695
    %v654 = vpow.pop %v653
    %v655 = vadd.f32 %v648, 1.0
    %v656 = vadd.f32 %v650, 1.0
    %v657 = vadd.f32 %v652, 1.0
    %v658 = vadd.f32 %v654, 1.0
    %v659 = vrcp.pop %v655
    %v660 = vmul.f32 1.0, %v659
    %v661 = vrcp.pop %v656
    %v662 = vmul.f32 1.0, %v661
    %v663 = vrcp.pop %v657
    %v664 = vmul.f32 1.0, %v663
    %v665 = vrcp.pop %v658
    %v666 = vmul.f32 1.0, %v665
    %v667 = vmul.f32 %v664, 2.0
    %v668 = vsub.f32 %v667, 1.0
    %v670 = vrot.slane %v477, 6
    %v672 = vmul.f32 %v662, %v670
    %v673 = vmul.f32 %v660, %v668
    %v674 = vadd.f32 %v672, %v673
    %v675 = vtanh.pop %v674
    %v676 = vmul.f32 %v666, %v675
    %vm677 = vcmask 781314
    %678 = vst.msk [vmem:[#allocation2] sm:$0xc] %vm677, %v676
    %v680 = vrot.slane %v676, 2
    %v681 = vsel %vm299, %v680, 0
    %683 = vmatprep.subr.mxu0 0.0
    %684 = vmatpush1.msra.mxu0 0.0
    %685 = vmatprep.subr.mxu0 0.0
    %686 = vmatpush1.msra.mxu0 0.0
    %687 = vmatprep.subr.mxu0 0.0
    %688 = vmatpush1.msra.mxu0 0.0
    %689 = vmatprep.subr.mxu0 0.0
    %690 = vmatpush1.msra.mxu0 0.0
    %691 = vmatprep.subr.mxu0 %v113
    %692 = vmatpush1.msra.mxu0 %v112
    %693 = vmatprep.subr.mxu0 %v109
    %694 = vmatpush1.msra.mxu0 %v108
    %695 = vmatprep.subr.mxu0 %v105
    %696 = vmatpush1.msra.mxu0 %v104
    %697 = vmatprep.subr.mxu0 %v101
    %698 = vmatpush1.msra.mxu0 %v100
    %699 = vmatprep.subr.mxu0 %v97
    %700 = vmatpush1.msra.mxu0 %v96
    %701 = vmatprep.subr.mxu0 %v93
    %702 = vmatpush1.msra.mxu0 %v92
    %703 = vmatprep.subr.mxu0 %v89
    %704 = vmatpush1.msra.mxu0 %v88
    %705 = vmatprep.subr.mxu0 %v85
    %706 = vmatpush1.msra.mxu0 %v84
    %707 = vmatprep.subr.mxu0 %v81
    %708 = vmatpush1.msra.mxu0 %v80
    %709 = vmatprep.subr.mxu0 %v77
    %710 = vmatpush1.msra.mxu0 %v76
    %711 = vmatprep.subr.mxu0 %v73
    %712 = vmatpush1.msra.mxu0 %v72
    %713 = vmatprep.subr.mxu0 %v69
    %714 = vmatpush1.msra.mxu0 %v68
    %715 = vmatprep.subr.mxu0 0.0
    %716 = vmatpush2.msra.mxu0 0.0
    %717 = vmatprep.subr.mxu0 0.0
    %718 = vmatpush2.msra.mxu0 0.0
    %719 = vmatprep.subr.mxu0 0.0
    %720 = vmatpush2.msra.mxu0 0.0
    %721 = vmatprep.subr.mxu0 0.0
    %722 = vmatpush2.msra.mxu0 0.0
    %723 = vmatprep.subr.mxu0 0.0
    %724 = vmatpush2.msra.mxu0 0.0
    %725 = vmatprep.subr.mxu0 0.0
    %726 = vmatpush2.msra.mxu0 0.0
    %727 = vmatprep.subr.mxu0 0.0
    %728 = vmatpush2.msra.mxu0 0.0
    %729 = vmatprep.subr.mxu0 0.0
    %730 = vmatpush2.msra.mxu0 0.0
    %731 = vmatprep.subr.mxu0 0.0
    %732 = vmatpush2.msra.mxu0 0.0
    %733 = vmatprep.subr.mxu0 0.0
    %734 = vmatpush2.msra.mxu0 0.0
    %735 = vmatprep.subr.mxu0 0.0
    %736 = vmatpush2.msra.mxu0 0.0
    %737 = vmatprep.subr.mxu0 0.0
    %738 = vmatpush2.msra.mxu0 0.0
    %739 = vmatprep.subr.mxu0 0.0
    %740 = vmatpush2.msra.mxu0 0.0
    %741 = vmatprep.subr.mxu0 0.0
    %742 = vmatpush2.msra.mxu0 0.0
    %743 = vmatprep.subr.mxu0 0.0
    %744 = vmatpush2.msra.mxu0 0.0
    %745 = vmatprep.subr.mxu0 0.0
    %746 = vmatpush2.msra.mxu0 0.0
    %747 = vmatprep.mubr.f32.mxu0 0.0
    %748 = vmatmul.mubr.f32.gmra.mxu0 %v681
    %v749 = vpop.f32.mrf.mxu0
    %v750 = vadd.f32 0.0, %v749
    %v751 = vpop.f32.mrf.mxu0
    %v752 = vadd.f32 0.0, %v751
    %753 = vdwg.mxu0
    %754 = vmatprep.subr.mxu0 0.0
    %755 = vmatpush1.msra.mxu0 0.0
    %756 = vmatprep.subr.mxu0 0.0
    %757 = vmatpush1.msra.mxu0 0.0
    %758 = vmatprep.subr.mxu0 0.0
    %759 = vmatpush1.msra.mxu0 0.0
    %760 = vmatprep.subr.mxu0 0.0
    %761 = vmatpush1.msra.mxu0 0.0
    %762 = vmatprep.subr.mxu0 %v115
    %763 = vmatpush1.msra.mxu0 %v114
    %764 = vmatprep.subr.mxu0 %v111
    %765 = vmatpush1.msra.mxu0 %v110
    %766 = vmatprep.subr.mxu0 %v107
    %767 = vmatpush1.msra.mxu0 %v106
    %768 = vmatprep.subr.mxu0 %v103
    %769 = vmatpush1.msra.mxu0 %v102
    %770 = vmatprep.subr.mxu0 %v99
    %771 = vmatpush1.msra.mxu0 %v98
    %772 = vmatprep.subr.mxu0 %v95
    %773 = vmatpush1.msra.mxu0 %v94
    %774 = vmatprep.subr.mxu0 %v91
    %775 = vmatpush1.msra.mxu0 %v90
    %776 = vmatprep.subr.mxu0 %v87
    %777 = vmatpush1.msra.mxu0 %v86
    %778 = vmatprep.subr.mxu0 %v83
    %779 = vmatpush1.msra.mxu0 %v82
    %780 = vmatprep.subr.mxu0 %v79
    %781 = vmatpush1.msra.mxu0 %v78
    %782 = vmatprep.subr.mxu0 %v75
    %783 = vmatpush1.msra.mxu0 %v74
    %784 = vmatprep.subr.mxu0 %v71
    %785 = vmatpush1.msra.mxu0 %v70
    %786 = vmatprep.subr.mxu0 0.0
    %787 = vmatpush2.msra.mxu0 0.0
    %788 = vmatprep.subr.mxu0 0.0
    %789 = vmatpush2.msra.mxu0 0.0
    %790 = vmatprep.subr.mxu0 0.0
    %791 = vmatpush2.msra.mxu0 0.0
    %792 = vmatprep.subr.mxu0 0.0
    %793 = vmatpush2.msra.mxu0 0.0
    %794 = vmatprep.subr.mxu0 0.0
    %795 = vmatpush2.msra.mxu0 0.0
    %796 = vmatprep.subr.mxu0 0.0
    %797 = vmatpush2.msra.mxu0 0.0
    %798 = vmatprep.subr.mxu0 0.0
    %799 = vmatpush2.msra.mxu0 0.0
    %800 = vmatprep.subr.mxu0 0.0
    %801 = vmatpush2.msra.mxu0 0.0
    %802 = vmatprep.subr.mxu0 0.0
    %803 = vmatpush2.msra.mxu0 0.0
    %804 = vmatprep.subr.mxu0 0.0
    %805 = vmatpush2.msra.mxu0 0.0
    %806 = vmatprep.subr.mxu0 0.0
    %807 = vmatpush2.msra.mxu0 0.0
    %808 = vmatprep.subr.mxu0 0.0
    %809 = vmatpush2.msra.mxu0 0.0
    %810 = vmatprep.subr.mxu0 0.0
    %811 = vmatpush2.msra.mxu0 0.0
    %812 = vmatprep.subr.mxu0 0.0
    %813 = vmatpush2.msra.mxu0 0.0
    %814 = vmatprep.subr.mxu0 0.0
    %815 = vmatpush2.msra.mxu0 0.0
    %816 = vmatprep.subr.mxu0 0.0
    %817 = vmatpush2.msra.mxu0 0.0
    %818 = vmatprep.mubr.f32.mxu0 0.0
    %819 = vmatmul.mubr.f32.gmra.mxu0 %v681
    %v820 = vpop.f32.mrf.mxu0
    %v821 = vadd.f32 0.0, %v820
    %v822 = vpop.f32.mrf.mxu0
    %v823 = vadd.f32 0.0, %v822
    %824 = vdwg.mxu0
    %v829 = vrot.slane %v750, 4
    %v830 = vrot.slane %v752, 4
    %v831 = vrot.slane %v821, 4
    %v832 = vrot.slane %v823, 4
    %v837 = vadd.f32 %v212, %v829
    %v838 = vadd.f32 %v214, %v830
    %v839 = vadd.f32 %v289, %v831
    %v840 = vadd.f32 %v291, %v832
    %v841 = vxor.u32 %v837, 2147483648
    %v842 = vxor.u32 %v838, 2147483648
    %v843 = vxor.u32 %v839, 2147483648
    %v844 = vxor.u32 %v840, 2147483648
    %v845 = vmul.f32 %v841, 1.442695
    %v846 = vpow.pop %v845
    %v847 = vmul.f32 %v842, 1.442695
    %v848 = vpow.pop %v847
    %v849 = vmul.f32 %v843, 1.442695
    %v850 = vpow.pop %v849
    %v851 = vmul.f32 %v844, 1.442695
    %v852 = vpow.pop %v851
    %v853 = vadd.f32 %v846, 1.0
    %v854 = vadd.f32 %v848, 1.0
    %v855 = vadd.f32 %v850, 1.0
    %v856 = vadd.f32 %v852, 1.0
    %v857 = vrcp.pop %v853
    %v858 = vmul.f32 1.0, %v857
    %v859 = vrcp.pop %v854
    %v860 = vmul.f32 1.0, %v859
    %v861 = vrcp.pop %v855
    %v862 = vmul.f32 1.0, %v861
    %v863 = vrcp.pop %v856
    %v864 = vmul.f32 1.0, %v863
    %v865 = vmul.f32 %v862, 2.0
    %v866 = vsub.f32 %v865, 1.0
    %v868 = vrot.slane %v674, 6
    %v870 = vmul.f32 %v860, %v868
    %v871 = vmul.f32 %v858, %v866
    %v872 = vadd.f32 %v870, %v871
    %v873 = vtanh.pop %v872
    %v874 = vmul.f32 %v864, %v873
    %vm875 = vcmask 783364
    %876 = vst.msk [vmem:[#allocation2] sm:$0x30] %vm875, %v874
    %v878 = vrot.slane %v874, 4
    %v879 = vsel %vm299, %v878, 0
    %881 = vmatprep.subr.mxu0 0.0
    %882 = vmatpush1.msra.mxu0 0.0
    %883 = vmatprep.subr.mxu0 0.0
    %884 = vmatpush1.msra.mxu0 0.0
    %885 = vmatprep.subr.mxu0 0.0
    %886 = vmatpush1.msra.mxu0 0.0
    %887 = vmatprep.subr.mxu0 0.0
    %888 = vmatpush1.msra.mxu0 0.0
    %889 = vmatprep.subr.mxu0 %v113
    %890 = vmatpush1.msra.mxu0 %v112
    %891 = vmatprep.subr.mxu0 %v109
    %892 = vmatpush1.msra.mxu0 %v108
    %893 = vmatprep.subr.mxu0 %v105
    %894 = vmatpush1.msra.mxu0 %v104
    %895 = vmatprep.subr.mxu0 %v101
    %896 = vmatpush1.msra.mxu0 %v100
    %897 = vmatprep.subr.mxu0 %v97
    %898 = vmatpush1.msra.mxu0 %v96
    %899 = vmatprep.subr.mxu0 %v93
    %900 = vmatpush1.msra.mxu0 %v92
    %901 = vmatprep.subr.mxu0 %v89
    %902 = vmatpush1.msra.mxu0 %v88
    %903 = vmatprep.subr.mxu0 %v85
    %904 = vmatpush1.msra.mxu0 %v84
    %905 = vmatprep.subr.mxu0 %v81
    %906 = vmatpush1.msra.mxu0 %v80
    %907 = vmatprep.subr.mxu0 %v77
    %908 = vmatpush1.msra.mxu0 %v76
    %909 = vmatprep.subr.mxu0 %v73
    %910 = vmatpush1.msra.mxu0 %v72
    %911 = vmatprep.subr.mxu0 %v69
    %912 = vmatpush1.msra.mxu0 %v68
    %913 = vmatprep.subr.mxu0 0.0
    %914 = vmatpush2.msra.mxu0 0.0
    %915 = vmatprep.subr.mxu0 0.0
    %916 = vmatpush2.msra.mxu0 0.0
    %917 = vmatprep.subr.mxu0 0.0
    %918 = vmatpush2.msra.mxu0 0.0
    %919 = vmatprep.subr.mxu0 0.0
    %920 = vmatpush2.msra.mxu0 0.0
    %921 = vmatprep.subr.mxu0 0.0
    %922 = vmatpush2.msra.mxu0 0.0
    %923 = vmatprep.subr.mxu0 0.0
    %924 = vmatpush2.msra.mxu0 0.0
    %925 = vmatprep.subr.mxu0 0.0
    %926 = vmatpush2.msra.mxu0 0.0
    %927 = vmatprep.subr.mxu0 0.0
    %928 = vmatpush2.msra.mxu0 0.0
    %929 = vmatprep.subr.mxu0 0.0
    %930 = vmatpush2.msra.mxu0 0.0
    %931 = vmatprep.subr.mxu0 0.0
    %932 = vmatpush2.msra.mxu0 0.0
    %933 = vmatprep.subr.mxu0 0.0
    %934 = vmatpush2.msra.mxu0 0.0
    %935 = vmatprep.subr.mxu0 0.0
    %936 = vmatpush2.msra.mxu0 0.0
    %937 = vmatprep.subr.mxu0 0.0
    %938 = vmatpush2.msra.mxu0 0.0
    %939 = vmatprep.subr.mxu0 0.0
    %940 = vmatpush2.msra.mxu0 0.0
    %941 = vmatprep.subr.mxu0 0.0
    %942 = vmatpush2.msra.mxu0 0.0
    %943 = vmatprep.subr.mxu0 0.0
    %944 = vmatpush2.msra.mxu0 0.0
    %945 = vmatprep.mubr.f32.mxu0 0.0
    %946 = vmatmul.mubr.f32.gmra.mxu0 %v879
    %v947 = vpop.f32.mrf.mxu0
    %v948 = vadd.f32 0.0, %v947
    %v949 = vpop.f32.mrf.mxu0
    %v950 = vadd.f32 0.0, %v949
    %951 = vdwg.mxu0
    %952 = vmatprep.subr.mxu0 0.0
    %953 = vmatpush1.msra.mxu0 0.0
    %954 = vmatprep.subr.mxu0 0.0
    %955 = vmatpush1.msra.mxu0 0.0
    %956 = vmatprep.subr.mxu0 0.0
    %957 = vmatpush1.msra.mxu0 0.0
    %958 = vmatprep.subr.mxu0 0.0
    %959 = vmatpush1.msra.mxu0 0.0
    %960 = vmatprep.subr.mxu0 %v115
    %961 = vmatpush1.msra.mxu0 %v114
    %962 = vmatprep.subr.mxu0 %v111
    %963 = vmatpush1.msra.mxu0 %v110
    %964 = vmatprep.subr.mxu0 %v107
    %965 = vmatpush1.msra.mxu0 %v106
    %966 = vmatprep.subr.mxu0 %v103
    %967 = vmatpush1.msra.mxu0 %v102
    %968 = vmatprep.subr.mxu0 %v99
    %969 = vmatpush1.msra.mxu0 %v98
    %970 = vmatprep.subr.mxu0 %v95
    %971 = vmatpush1.msra.mxu0 %v94
    %972 = vmatprep.subr.mxu0 %v91
    %973 = vmatpush1.msra.mxu0 %v90
    %974 = vmatprep.subr.mxu0 %v87
    %975 = vmatpush1.msra.mxu0 %v86
    %976 = vmatprep.subr.mxu0 %v83
    %977 = vmatpush1.msra.mxu0 %v82
    %978 = vmatprep.subr.mxu0 %v79
    %979 = vmatpush1.msra.mxu0 %v78
    %980 = vmatprep.subr.mxu0 %v75
    %981 = vmatpush1.msra.mxu0 %v74
    %982 = vmatprep.subr.mxu0 %v71
    %983 = vmatpush1.msra.mxu0 %v70
    %984 = vmatprep.subr.mxu0 0.0
    %985 = vmatpush2.msra.mxu0 0.0
    %986 = vmatprep.subr.mxu0 0.0
    %987 = vmatpush2.msra.mxu0 0.0
    %988 = vmatprep.subr.mxu0 0.0
    %989 = vmatpush2.msra.mxu0 0.0
    %990 = vmatprep.subr.mxu0 0.0
    %991 = vmatpush2.msra.mxu0 0.0
    %992 = vmatprep.subr.mxu0 0.0
    %993 = vmatpush2.msra.mxu0 0.0
    %994 = vmatprep.subr.mxu0 0.0
    %995 = vmatpush2.msra.mxu0 0.0
    %996 = vmatprep.subr.mxu0 0.0
    %997 = vmatpush2.msra.mxu0 0.0
    %998 = vmatprep.subr.mxu0 0.0
    %999 = vmatpush2.msra.mxu0 0.0
    %1000 = vmatprep.subr.mxu0 0.0
    %1001 = vmatpush2.msra.mxu0 0.0
    %1002 = vmatprep.subr.mxu0 0.0
    %1003 = vmatpush2.msra.mxu0 0.0
    %1004 = vmatprep.subr.mxu0 0.0
    %1005 = vmatpush2.msra.mxu0 0.0
    %1006 = vmatprep.subr.mxu0 0.0
    %1007 = vmatpush2.msra.mxu0 0.0
    %1008 = vmatprep.subr.mxu0 0.0
    %1009 = vmatpush2.msra.mxu0 0.0
    %1010 = vmatprep.subr.mxu0 0.0
    %1011 = vmatpush2.msra.mxu0 0.0
    %1012 = vmatprep.subr.mxu0 0.0
    %1013 = vmatpush2.msra.mxu0 0.0
    %1014 = vmatprep.subr.mxu0 0.0
    %1015 = vmatpush2.msra.mxu0 0.0
    %1016 = vmatprep.mubr.f32.mxu0 0.0
    %1017 = vmatmul.mubr.f32.gmra.mxu0 %v879
    %v1018 = vpop.f32.mrf.mxu0
    %v1019 = vadd.f32 0.0, %v1018
    %v1020 = vpop.f32.mrf.mxu0
    %v1021 = vadd.f32 0.0, %v1020
    %1022 = vdwg.mxu0
    %v1027 = vrot.slane %v948, 2
    %v1028 = vrot.slane %v950, 2
    %v1029 = vrot.slane %v1019, 2
    %v1030 = vrot.slane %v1021, 2
    %v1035 = vadd.f32 %v212, %v1027
    %v1036 = vadd.f32 %v214, %v1028
    %v1037 = vadd.f32 %v289, %v1029
    %v1038 = vadd.f32 %v291, %v1030
    %v1039 = vxor.u32 %v1035, 2147483648
    %v1040 = vxor.u32 %v1036, 2147483648
    %v1041 = vxor.u32 %v1037, 2147483648
    %v1042 = vxor.u32 %v1038, 2147483648
    %v1043 = vmul.f32 %v1039, 1.442695
    %v1044 = vpow.pop %v1043
    %v1045 = vmul.f32 %v1040, 1.442695
    %v1046 = vpow.pop %v1045
    %v1047 = vmul.f32 %v1041, 1.442695
    %v1048 = vpow.pop %v1047
    %v1049 = vmul.f32 %v1042, 1.442695
    %v1050 = vpow.pop %v1049
    %v1051 = vadd.f32 %v1044, 1.0
    %v1052 = vadd.f32 %v1046, 1.0
    %v1053 = vadd.f32 %v1048, 1.0
    %v1054 = vadd.f32 %v1050, 1.0
    %v1055 = vrcp.pop %v1051
    %v1056 = vmul.f32 1.0, %v1055
    %v1057 = vrcp.pop %v1052
    %v1058 = vmul.f32 1.0, %v1057
    %v1059 = vrcp.pop %v1053
    %v1060 = vmul.f32 1.0, %v1059
    %v1061 = vrcp.pop %v1054
    %v1062 = vmul.f32 1.0, %v1061
    %v1063 = vmul.f32 %v1060, 2.0
    %v1064 = vsub.f32 %v1063, 1.0
    %v1066 = vrot.slane %v872, 6
    %v1068 = vmul.f32 %v1058, %v1066
    %v1069 = vmul.f32 %v1056, %v1064
    %v1070 = vadd.f32 %v1068, %v1069
    %v1071 = vtanh.pop %v1070
    %v1072 = vmul.f32 %v1062, %v1071
    %vm1073 = vcmask 785414
    %1074 = vst.msk [vmem:[#allocation2] sm:$0xc0] %vm1073, %v1072
    %v1076 = vrot.slane %v1072, 6
    %v1077 = vsel %vm299, %v1076, 0
    %1079 = vmatprep.subr.mxu0 0.0
    %1080 = vmatpush1.msra.mxu0 0.0
    %1081 = vmatprep.subr.mxu0 0.0
    %1082 = vmatpush1.msra.mxu0 0.0
    %1083 = vmatprep.subr.mxu0 0.0
    %1084 = vmatpush1.msra.mxu0 0.0
    %1085 = vmatprep.subr.mxu0 0.0
    %1086 = vmatpush1.msra.mxu0 0.0
    %1087 = vmatprep.subr.mxu0 %v113
    %1088 = vmatpush1.msra.mxu0 %v112
    %1089 = vmatprep.subr.mxu0 %v109
    %1090 = vmatpush1.msra.mxu0 %v108
    %1091 = vmatprep.subr.mxu0 %v105
    %1092 = vmatpush1.msra.mxu0 %v104
    %1093 = vmatprep.subr.mxu0 %v101
    %1094 = vmatpush1.msra.mxu0 %v100
    %1095 = vmatprep.subr.mxu0 %v97
    %1096 = vmatpush1.msra.mxu0 %v96
    %1097 = vmatprep.subr.mxu0 %v93
    %1098 = vmatpush1.msra.mxu0 %v92
    %1099 = vmatprep.subr.mxu0 %v89
    %1100 = vmatpush1.msra.mxu0 %v88
    %1101 = vmatprep.subr.mxu0 %v85
    %1102 = vmatpush1.msra.mxu0 %v84
    %1103 = vmatprep.subr.mxu0 %v81
    %1104 = vmatpush1.msra.mxu0 %v80
    %1105 = vmatprep.subr.mxu0 %v77
    %1106 = vmatpush1.msra.mxu0 %v76
    %1107 = vmatprep.subr.mxu0 %v73
    %1108 = vmatpush1.msra.mxu0 %v72
    %1109 = vmatprep.subr.mxu0 %v69
    %1110 = vmatpush1.msra.mxu0 %v68
    %1111 = vmatprep.subr.mxu0 0.0
    %1112 = vmatpush2.msra.mxu0 0.0
    %1113 = vmatprep.subr.mxu0 0.0
    %1114 = vmatpush2.msra.mxu0 0.0
    %1115 = vmatprep.subr.mxu0 0.0
    %1116 = vmatpush2.msra.mxu0 0.0
    %1117 = vmatprep.subr.mxu0 0.0
    %1118 = vmatpush2.msra.mxu0 0.0
    %1119 = vmatprep.subr.mxu0 0.0
    %1120 = vmatpush2.msra.mxu0 0.0
    %1121 = vmatprep.subr.mxu0 0.0
    %1122 = vmatpush2.msra.mxu0 0.0
    %1123 = vmatprep.subr.mxu0 0.0
    %1124 = vmatpush2.msra.mxu0 0.0
    %1125 = vmatprep.subr.mxu0 0.0
    %1126 = vmatpush2.msra.mxu0 0.0
    %1127 = vmatprep.subr.mxu0 0.0
    %1128 = vmatpush2.msra.mxu0 0.0
    %1129 = vmatprep.subr.mxu0 0.0
    %1130 = vmatpush2.msra.mxu0 0.0
    %1131 = vmatprep.subr.mxu0 0.0
    %1132 = vmatpush2.msra.mxu0 0.0
    %1133 = vmatprep.subr.mxu0 0.0
    %1134 = vmatpush2.msra.mxu0 0.0
    %1135 = vmatprep.subr.mxu0 0.0
    %1136 = vmatpush2.msra.mxu0 0.0
    %1137 = vmatprep.subr.mxu0 0.0
    %1138 = vmatpush2.msra.mxu0 0.0
    %1139 = vmatprep.subr.mxu0 0.0
    %1140 = vmatpush2.msra.mxu0 0.0
    %1141 = vmatprep.subr.mxu0 0.0
    %1142 = vmatpush2.msra.mxu0 0.0
    %1143 = vmatprep.mubr.f32.mxu0 0.0
    %1144 = vmatmul.mubr.f32.gmra.mxu0 %v1077
    %v1145 = vpop.f32.mrf.mxu0
    %v1146 = vadd.f32 0.0, %v1145
    %v1147 = vpop.f32.mrf.mxu0
    %v1148 = vadd.f32 0.0, %v1147
    %1149 = vdwg.mxu0
    %1150 = vmatprep.subr.mxu0 0.0
    %1151 = vmatpush1.msra.mxu0 0.0
    %1152 = vmatprep.subr.mxu0 0.0
    %1153 = vmatpush1.msra.mxu0 0.0
    %1154 = vmatprep.subr.mxu0 0.0
    %1155 = vmatpush1.msra.mxu0 0.0
    %1156 = vmatprep.subr.mxu0 0.0
    %1157 = vmatpush1.msra.mxu0 0.0
    %1158 = vmatprep.subr.mxu0 %v115
    %1159 = vmatpush1.msra.mxu0 %v114
    %1160 = vmatprep.subr.mxu0 %v111
    %1161 = vmatpush1.msra.mxu0 %v110
    %1162 = vmatprep.subr.mxu0 %v107
    %1163 = vmatpush1.msra.mxu0 %v106
    %1164 = vmatprep.subr.mxu0 %v103
    %1165 = vmatpush1.msra.mxu0 %v102
    %1166 = vmatprep.subr.mxu0 %v99
    %1167 = vmatpush1.msra.mxu0 %v98
    %1168 = vmatprep.subr.mxu0 %v95
    %1169 = vmatpush1.msra.mxu0 %v94
    %1170 = vmatprep.subr.mxu0 %v91
    %1171 = vmatpush1.msra.mxu0 %v90
    %1172 = vmatprep.subr.mxu0 %v87
    %1173 = vmatpush1.msra.mxu0 %v86
    %1174 = vmatprep.subr.mxu0 %v83
    %1175 = vmatpush1.msra.mxu0 %v82
    %1176 = vmatprep.subr.mxu0 %v79
    %1177 = vmatpush1.msra.mxu0 %v78
    %1178 = vmatprep.subr.mxu0 %v75
    %1179 = vmatpush1.msra.mxu0 %v74
    %1180 = vmatprep.subr.mxu0 %v71
    %1181 = vmatpush1.msra.mxu0 %v70
    %1182 = vmatprep.subr.mxu0 0.0
    %1183 = vmatpush2.msra.mxu0 0.0
    %1184 = vmatprep.subr.mxu0 0.0
    %1185 = vmatpush2.msra.mxu0 0.0
    %1186 = vmatprep.subr.mxu0 0.0
    %1187 = vmatpush2.msra.mxu0 0.0
    %1188 = vmatprep.subr.mxu0 0.0
    %1189 = vmatpush2.msra.mxu0 0.0
    %1190 = vmatprep.subr.mxu0 0.0
    %1191 = vmatpush2.msra.mxu0 0.0
    %1192 = vmatprep.subr.mxu0 0.0
    %1193 = vmatpush2.msra.mxu0 0.0
    %1194 = vmatprep.subr.mxu0 0.0
    %1195 = vmatpush2.msra.mxu0 0.0
    %1196 = vmatprep.subr.mxu0 0.0
    %1197 = vmatpush2.msra.mxu0 0.0
    %1198 = vmatprep.subr.mxu0 0.0
    %1199 = vmatpush2.msra.mxu0 0.0
    %1200 = vmatprep.subr.mxu0 0.0
    %1201 = vmatpush2.msra.mxu0 0.0
    %1202 = vmatprep.subr.mxu0 0.0
    %1203 = vmatpush2.msra.mxu0 0.0
    %1204 = vmatprep.subr.mxu0 0.0
    %1205 = vmatpush2.msra.mxu0 0.0
    %1206 = vmatprep.subr.mxu0 0.0
    %1207 = vmatpush2.msra.mxu0 0.0
    %1208 = vmatprep.subr.mxu0 0.0
    %1209 = vmatpush2.msra.mxu0 0.0
    %1210 = vmatprep.subr.mxu0 0.0
    %1211 = vmatpush2.msra.mxu0 0.0
    %1212 = vmatprep.subr.mxu0 0.0
    %1213 = vmatpush2.msra.mxu0 0.0
    %1214 = vmatprep.mubr.f32.mxu0 0.0
    %1215 = vmatmul.mubr.f32.gmra.mxu0 %v1077
    %v1216 = vpop.f32.mrf.mxu0
    %v1217 = vadd.f32 0.0, %v1216
    %v1218 = vpop.f32.mrf.mxu0
    %v1219 = vadd.f32 0.0, %v1218
    %1220 = vdwg.mxu0
    %v1221 = vadd.f32 %v218, %v1146
    %v1222 = vadd.f32 %v220, %v1148
    %v1223 = vadd.f32 %v295, %v1217
    %v1224 = vadd.f32 %v297, %v1219
    %v1225 = vxor.u32 %v1221, 2147483648
    %v1226 = vxor.u32 %v1222, 2147483648
    %v1227 = vxor.u32 %v1223, 2147483648
    %v1228 = vxor.u32 %v1224, 2147483648
    %v1229 = vmul.f32 %v1225, 1.442695
    %v1230 = vpow.pop %v1229
    %v1231 = vmul.f32 %v1226, 1.442695
    %v1232 = vpow.pop %v1231
    %v1233 = vmul.f32 %v1227, 1.442695
    %v1234 = vpow.pop %v1233
    %v1235 = vmul.f32 %v1228, 1.442695
    %v1236 = vpow.pop %v1235
    %v1237 = vadd.f32 %v1230, 1.0
    %v1238 = vadd.f32 %v1232, 1.0
    %v1239 = vadd.f32 %v1234, 1.0
    %v1240 = vadd.f32 %v1236, 1.0
    %v1241 = vrcp.pop %v1237
    %v1242 = vmul.f32 1.0, %v1241
    %v1243 = vrcp.pop %v1238
    %v1244 = vmul.f32 1.0, %v1243
    %v1245 = vrcp.pop %v1239
    %v1246 = vmul.f32 1.0, %v1245
    %v1247 = vrcp.pop %v1240
    %v1248 = vmul.f32 1.0, %v1247
    %v1249 = vmul.f32 %v1246, 2.0
    %v1250 = vsub.f32 %v1249, 1.0
    %v1252 = vrot.slane %v1070, 6
    %v1254 = vmul.f32 %v1244, %v1252
    %v1255 = vmul.f32 %v1242, %v1250
    %v1256 = vadd.f32 %v1254, %v1255
    %v1257 = vtanh.pop %v1256
    %v1258 = vmul.f32 %v1248, %v1257
    %1259 = vst.msk [vmem:[#allocation2 + $0x8] sm:$0x3] %vm480, %v1258
    %v1261 = vsel %vm299, %v1258, 0
    %1263 = vmatprep.subr.mxu0 0.0
    %1264 = vmatpush1.msra.mxu0 0.0
    %1265 = vmatprep.subr.mxu0 0.0
    %1266 = vmatpush1.msra.mxu0 0.0
    %1267 = vmatprep.subr.mxu0 0.0
    %1268 = vmatpush1.msra.mxu0 0.0
    %1269 = vmatprep.subr.mxu0 0.0
    %1270 = vmatpush1.msra.mxu0 0.0
    %1271 = vmatprep.subr.mxu0 %v113
    %1272 = vmatpush1.msra.mxu0 %v112
    %1273 = vmatprep.subr.mxu0 %v109
    %1274 = vmatpush1.msra.mxu0 %v108
    %1275 = vmatprep.subr.mxu0 %v105
    %1276 = vmatpush1.msra.mxu0 %v104
    %1277 = vmatprep.subr.mxu0 %v101
    %1278 = vmatpush1.msra.mxu0 %v100
    %1279 = vmatprep.subr.mxu0 %v97
    %1280 = vmatpush1.msra.mxu0 %v96
    %1281 = vmatprep.subr.mxu0 %v93
    %1282 = vmatpush1.msra.mxu0 %v92
    %1283 = vmatprep.subr.mxu0 %v89
    %1284 = vmatpush1.msra.mxu0 %v88
    %1285 = vmatprep.subr.mxu0 %v85
    %1286 = vmatpush1.msra.mxu0 %v84
    %1287 = vmatprep.subr.mxu0 %v81
    %1288 = vmatpush1.msra.mxu0 %v80
    %1289 = vmatprep.subr.mxu0 %v77
    %1290 = vmatpush1.msra.mxu0 %v76
    %1291 = vmatprep.subr.mxu0 %v73
    %1292 = vmatpush1.msra.mxu0 %v72
    %1293 = vmatprep.subr.mxu0 %v69
    %1294 = vmatpush1.msra.mxu0 %v68
    %1295 = vmatprep.subr.mxu0 0.0
    %1296 = vmatpush2.msra.mxu0 0.0
    %1297 = vmatprep.subr.mxu0 0.0
    %1298 = vmatpush2.msra.mxu0 0.0
    %1299 = vmatprep.subr.mxu0 0.0
    %1300 = vmatpush2.msra.mxu0 0.0
    %1301 = vmatprep.subr.mxu0 0.0
    %1302 = vmatpush2.msra.mxu0 0.0
    %1303 = vmatprep.subr.mxu0 0.0
    %1304 = vmatpush2.msra.mxu0 0.0
    %1305 = vmatprep.subr.mxu0 0.0
    %1306 = vmatpush2.msra.mxu0 0.0
    %1307 = vmatprep.subr.mxu0 0.0
    %1308 = vmatpush2.msra.mxu0 0.0
    %1309 = vmatprep.subr.mxu0 0.0
    %1310 = vmatpush2.msra.mxu0 0.0
    %1311 = vmatprep.subr.mxu0 0.0
    %1312 = vmatpush2.msra.mxu0 0.0
    %1313 = vmatprep.subr.mxu0 0.0
    %1314 = vmatpush2.msra.mxu0 0.0
    %1315 = vmatprep.subr.mxu0 0.0
    %1316 = vmatpush2.msra.mxu0 0.0
    %1317 = vmatprep.subr.mxu0 0.0
    %1318 = vmatpush2.msra.mxu0 0.0
    %1319 = vmatprep.subr.mxu0 0.0
    %1320 = vmatpush2.msra.mxu0 0.0
    %1321 = vmatprep.subr.mxu0 0.0
    %1322 = vmatpush2.msra.mxu0 0.0
    %1323 = vmatprep.subr.mxu0 0.0
    %1324 = vmatpush2.msra.mxu0 0.0
    %1325 = vmatprep.subr.mxu0 0.0
    %1326 = vmatpush2.msra.mxu0 0.0
    %1327 = vmatprep.mubr.f32.mxu0 0.0
    %1328 = vmatmul.mubr.f32.gmra.mxu0 %v1261
    %v1329 = vpop.f32.mrf.mxu0
    %v1330 = vadd.f32 0.0, %v1329
    %v1331 = vpop.f32.mrf.mxu0
    %v1332 = vadd.f32 0.0, %v1331
    %1333 = vdwg.mxu0
    %1334 = vmatprep.subr.mxu0 0.0
    %1335 = vmatpush1.msra.mxu0 0.0
    %1336 = vmatprep.subr.mxu0 0.0
    %1337 = vmatpush1.msra.mxu0 0.0
    %1338 = vmatprep.subr.mxu0 0.0
    %1339 = vmatpush1.msra.mxu0 0.0
    %1340 = vmatprep.subr.mxu0 0.0
    %1341 = vmatpush1.msra.mxu0 0.0
    %1342 = vmatprep.subr.mxu0 %v115
    %1343 = vmatpush1.msra.mxu0 %v114
    %1344 = vmatprep.subr.mxu0 %v111
    %1345 = vmatpush1.msra.mxu0 %v110
    %1346 = vmatprep.subr.mxu0 %v107
    %1347 = vmatpush1.msra.mxu0 %v106
    %1348 = vmatprep.subr.mxu0 %v103
    %1349 = vmatpush1.msra.mxu0 %v102
    %1350 = vmatprep.subr.mxu0 %v99
    %1351 = vmatpush1.msra.mxu0 %v98
    %1352 = vmatprep.subr.mxu0 %v95
    %1353 = vmatpush1.msra.mxu0 %v94
    %1354 = vmatprep.subr.mxu0 %v91
    %1355 = vmatpush1.msra.mxu0 %v90
    %1356 = vmatprep.subr.mxu0 %v87
    %1357 = vmatpush1.msra.mxu0 %v86
    %1358 = vmatprep.subr.mxu0 %v83
    %1359 = vmatpush1.msra.mxu0 %v82
    %1360 = vmatprep.subr.mxu0 %v79
    %1361 = vmatpush1.msra.mxu0 %v78
    %1362 = vmatprep.subr.mxu0 %v75
    %1363 = vmatpush1.msra.mxu0 %v74
    %1364 = vmatprep.subr.mxu0 %v71
    %1365 = vmatpush1.msra.mxu0 %v70
    %1366 = vmatprep.subr.mxu0 0.0
    %1367 = vmatpush2.msra.mxu0 0.0
    %1368 = vmatprep.subr.mxu0 0.0
    %1369 = vmatpush2.msra.mxu0 0.0
    %1370 = vmatprep.subr.mxu0 0.0
    %1371 = vmatpush2.msra.mxu0 0.0
    %1372 = vmatprep.subr.mxu0 0.0
    %1373 = vmatpush2.msra.mxu0 0.0
    %1374 = vmatprep.subr.mxu0 0.0
    %1375 = vmatpush2.msra.mxu0 0.0
    %1376 = vmatprep.subr.mxu0 0.0
    %1377 = vmatpush2.msra.mxu0 0.0
    %1378 = vmatprep.subr.mxu0 0.0
    %1379 = vmatpush2.msra.mxu0 0.0
    %1380 = vmatprep.subr.mxu0 0.0
    %1381 = vmatpush2.msra.mxu0 0.0
    %1382 = vmatprep.subr.mxu0 0.0
    %1383 = vmatpush2.msra.mxu0 0.0
    %1384 = vmatprep.subr.mxu0 0.0
    %1385 = vmatpush2.msra.mxu0 0.0
    %1386 = vmatprep.subr.mxu0 0.0
    %1387 = vmatpush2.msra.mxu0 0.0
    %1388 = vmatprep.subr.mxu0 0.0
    %1389 = vmatpush2.msra.mxu0 0.0
    %1390 = vmatprep.subr.mxu0 0.0
    %1391 = vmatpush2.msra.mxu0 0.0
    %1392 = vmatprep.subr.mxu0 0.0
    %1393 = vmatpush2.msra.mxu0 0.0
    %1394 = vmatprep.subr.mxu0 0.0
    %1395 = vmatpush2.msra.mxu0 0.0
    %1396 = vmatprep.subr.mxu0 0.0
    %1397 = vmatpush2.msra.mxu0 0.0
    %1398 = vmatprep.mubr.f32.mxu0 0.0
    %1399 = vmatmul.mubr.f32.gmra.mxu0 %v1261
    %v1400 = vpop.f32.mrf.mxu0
    %v1401 = vadd.f32 0.0, %v1400
    %v1402 = vpop.f32.mrf.mxu0
    %v1403 = vadd.f32 0.0, %v1402
    %1404 = vdwg.mxu0
    %v1409 = vrot.slane %v1330, 6
    %v1410 = vrot.slane %v1332, 6
    %v1411 = vrot.slane %v1401, 6
    %v1412 = vrot.slane %v1403, 6
    %v1417 = vadd.f32 %v218, %v1409
    %v1418 = vadd.f32 %v220, %v1410
    %v1419 = vadd.f32 %v295, %v1411
    %v1420 = vadd.f32 %v297, %v1412
    %v1421 = vxor.u32 %v1417, 2147483648
    %v1422 = vxor.u32 %v1418, 2147483648
    %v1423 = vxor.u32 %v1419, 2147483648
    %v1424 = vxor.u32 %v1420, 2147483648
    %v1425 = vmul.f32 %v1421, 1.442695
    %v1426 = vpow.pop %v1425
    %v1427 = vmul.f32 %v1422, 1.442695
    %v1428 = vpow.pop %v1427
    %v1429 = vmul.f32 %v1423, 1.442695
    %v1430 = vpow.pop %v1429
    %v1431 = vmul.f32 %v1424, 1.442695
    %v1432 = vpow.pop %v1431
    %v1433 = vadd.f32 %v1426, 1.0
    %v1434 = vadd.f32 %v1428, 1.0
    %v1435 = vadd.f32 %v1430, 1.0
    %v1436 = vadd.f32 %v1432, 1.0
    %v1437 = vrcp.pop %v1433
    %v1438 = vmul.f32 1.0, %v1437
    %v1439 = vrcp.pop %v1434
    %v1440 = vmul.f32 1.0, %v1439
    %v1441 = vrcp.pop %v1435
    %v1442 = vmul.f32 1.0, %v1441
    %v1443 = vrcp.pop %v1436
    %v1444 = vmul.f32 1.0, %v1443
    %v1445 = vmul.f32 %v1442, 2.0
    %v1446 = vsub.f32 %v1445, 1.0
    %v1448 = vrot.slane %v1256, 6
    %v1450 = vmul.f32 %v1440, %v1448
    %v1451 = vmul.f32 %v1438, %v1446
    %v1452 = vadd.f32 %v1450, %v1451
    %v1453 = vtanh.pop %v1452
    %v1454 = vmul.f32 %v1444, %v1453
    %1455 = vst.msk [vmem:[#allocation2 + $0x8] sm:$0xc] %vm677, %v1454
    %v1457 = vrot.slane %v1454, 2
    %v1458 = vsel %vm299, %v1457, 0
    %1460 = vmatprep.subr.mxu0 0.0
    %1461 = vmatpush1.msra.mxu0 0.0
    %1462 = vmatprep.subr.mxu0 0.0
    %1463 = vmatpush1.msra.mxu0 0.0
    %1464 = vmatprep.subr.mxu0 0.0
    %1465 = vmatpush1.msra.mxu0 0.0
    %1466 = vmatprep.subr.mxu0 0.0
    %1467 = vmatpush1.msra.mxu0 0.0
    %1468 = vmatprep.subr.mxu0 %v113
    %1469 = vmatpush1.msra.mxu0 %v112
    %1470 = vmatprep.subr.mxu0 %v109
    %1471 = vmatpush1.msra.mxu0 %v108
    %1472 = vmatprep.subr.mxu0 %v105
    %1473 = vmatpush1.msra.mxu0 %v104
    %1474 = vmatprep.subr.mxu0 %v101
    %1475 = vmatpush1.msra.mxu0 %v100
    %1476 = vmatprep.subr.mxu0 %v97
    %1477 = vmatpush1.msra.mxu0 %v96
    %1478 = vmatprep.subr.mxu0 %v93
    %1479 = vmatpush1.msra.mxu0 %v92
    %1480 = vmatprep.subr.mxu0 %v89
    %1481 = vmatpush1.msra.mxu0 %v88
    %1482 = vmatprep.subr.mxu0 %v85
    %1483 = vmatpush1.msra.mxu0 %v84
    %1484 = vmatprep.subr.mxu0 %v81
    %1485 = vmatpush1.msra.mxu0 %v80
    %1486 = vmatprep.subr.mxu0 %v77
    %1487 = vmatpush1.msra.mxu0 %v76
    %1488 = vmatprep.subr.mxu0 %v73
    %1489 = vmatpush1.msra.mxu0 %v72
    %1490 = vmatprep.subr.mxu0 %v69
    %1491 = vmatpush1.msra.mxu0 %v68
    %1492 = vmatprep.subr.mxu0 0.0
    %1493 = vmatpush2.msra.mxu0 0.0
    %1494 = vmatprep.subr.mxu0 0.0
    %1495 = vmatpush2.msra.mxu0 0.0
    %1496 = vmatprep.subr.mxu0 0.0
    %1497 = vmatpush2.msra.mxu0 0.0
    %1498 = vmatprep.subr.mxu0 0.0
    %1499 = vmatpush2.msra.mxu0 0.0
    %1500 = vmatprep.subr.mxu0 0.0
    %1501 = vmatpush2.msra.mxu0 0.0
    %1502 = vmatprep.subr.mxu0 0.0
    %1503 = vmatpush2.msra.mxu0 0.0
    %1504 = vmatprep.subr.mxu0 0.0
    %1505 = vmatpush2.msra.mxu0 0.0
    %1506 = vmatprep.subr.mxu0 0.0
    %1507 = vmatpush2.msra.mxu0 0.0
    %1508 = vmatprep.subr.mxu0 0.0
    %1509 = vmatpush2.msra.mxu0 0.0
    %1510 = vmatprep.subr.mxu0 0.0
    %1511 = vmatpush2.msra.mxu0 0.0
    %1512 = vmatprep.subr.mxu0 0.0
    %1513 = vmatpush2.msra.mxu0 0.0
    %1514 = vmatprep.subr.mxu0 0.0
    %1515 = vmatpush2.msra.mxu0 0.0
    %1516 = vmatprep.subr.mxu0 0.0
    %1517 = vmatpush2.msra.mxu0 0.0
    %1518 = vmatprep.subr.mxu0 0.0
    %1519 = vmatpush2.msra.mxu0 0.0
    %1520 = vmatprep.subr.mxu0 0.0
    %1521 = vmatpush2.msra.mxu0 0.0
    %1522 = vmatprep.subr.mxu0 0.0
    %1523 = vmatpush2.msra.mxu0 0.0
    %1524 = vmatprep.mubr.f32.mxu0 0.0
    %1525 = vmatmul.mubr.f32.gmra.mxu0 %v1458
    %v1526 = vpop.f32.mrf.mxu0
    %v1527 = vadd.f32 0.0, %v1526
    %v1528 = vpop.f32.mrf.mxu0
    %v1529 = vadd.f32 0.0, %v1528
    %1530 = vdwg.mxu0
    %1531 = vmatprep.subr.mxu0 0.0
    %1532 = vmatpush1.msra.mxu0 0.0
    %1533 = vmatprep.subr.mxu0 0.0
    %1534 = vmatpush1.msra.mxu0 0.0
    %1535 = vmatprep.subr.mxu0 0.0
    %1536 = vmatpush1.msra.mxu0 0.0
    %1537 = vmatprep.subr.mxu0 0.0
    %1538 = vmatpush1.msra.mxu0 0.0
    %1539 = vmatprep.subr.mxu0 %v115
    %1540 = vmatpush1.msra.mxu0 %v114
    %1541 = vmatprep.subr.mxu0 %v111
    %1542 = vmatpush1.msra.mxu0 %v110
    %1543 = vmatprep.subr.mxu0 %v107
    %1544 = vmatpush1.msra.mxu0 %v106
    %1545 = vmatprep.subr.mxu0 %v103
    %1546 = vmatpush1.msra.mxu0 %v102
    %1547 = vmatprep.subr.mxu0 %v99
    %1548 = vmatpush1.msra.mxu0 %v98
    %1549 = vmatprep.subr.mxu0 %v95
    %1550 = vmatpush1.msra.mxu0 %v94
    %1551 = vmatprep.subr.mxu0 %v91
    %1552 = vmatpush1.msra.mxu0 %v90
    %1553 = vmatprep.subr.mxu0 %v87
    %1554 = vmatpush1.msra.mxu0 %v86
    %1555 = vmatprep.subr.mxu0 %v83
    %1556 = vmatpush1.msra.mxu0 %v82
    %1557 = vmatprep.subr.mxu0 %v79
    %1558 = vmatpush1.msra.mxu0 %v78
    %1559 = vmatprep.subr.mxu0 %v75
    %1560 = vmatpush1.msra.mxu0 %v74
    %1561 = vmatprep.subr.mxu0 %v71
    %1562 = vmatpush1.msra.mxu0 %v70
    %1563 = vmatprep.subr.mxu0 0.0
    %1564 = vmatpush2.msra.mxu0 0.0
    %1565 = vmatprep.subr.mxu0 0.0
    %1566 = vmatpush2.msra.mxu0 0.0
    %1567 = vmatprep.subr.mxu0 0.0
    %1568 = vmatpush2.msra.mxu0 0.0
    %1569 = vmatprep.subr.mxu0 0.0
    %1570 = vmatpush2.msra.mxu0 0.0
    %1571 = vmatprep.subr.mxu0 0.0
    %1572 = vmatpush2.msra.mxu0 0.0
    %1573 = vmatprep.subr.mxu0 0.0
    %1574 = vmatpush2.msra.mxu0 0.0
    %1575 = vmatprep.subr.mxu0 0.0
    %1576 = vmatpush2.msra.mxu0 0.0
    %1577 = vmatprep.subr.mxu0 0.0
    %1578 = vmatpush2.msra.mxu0 0.0
    %1579 = vmatprep.subr.mxu0 0.0
    %1580 = vmatpush2.msra.mxu0 0.0
    %1581 = vmatprep.subr.mxu0 0.0
    %1582 = vmatpush2.msra.mxu0 0.0
    %1583 = vmatprep.subr.mxu0 0.0
    %1584 = vmatpush2.msra.mxu0 0.0
    %1585 = vmatprep.subr.mxu0 0.0
    %1586 = vmatpush2.msra.mxu0 0.0
    %1587 = vmatprep.subr.mxu0 0.0
    %1588 = vmatpush2.msra.mxu0 0.0
    %1589 = vmatprep.subr.mxu0 0.0
    %1590 = vmatpush2.msra.mxu0 0.0
    %1591 = vmatprep.subr.mxu0 0.0
    %1592 = vmatpush2.msra.mxu0 0.0
    %1593 = vmatprep.subr.mxu0 0.0
    %1594 = vmatpush2.msra.mxu0 0.0
    %1595 = vmatprep.mubr.f32.mxu0 0.0
    %1596 = vmatmul.mubr.f32.gmra.mxu0 %v1458
    %v1597 = vpop.f32.mrf.mxu0
    %v1598 = vadd.f32 0.0, %v1597
    %v1599 = vpop.f32.mrf.mxu0
    %v1600 = vadd.f32 0.0, %v1599
    %1601 = vdwg.mxu0
    %v1606 = vrot.slane %v1527, 4
    %v1607 = vrot.slane %v1529, 4
    %v1608 = vrot.slane %v1598, 4
    %v1609 = vrot.slane %v1600, 4
    %v1614 = vadd.f32 %v218, %v1606
    %v1615 = vadd.f32 %v220, %v1607
    %v1616 = vadd.f32 %v295, %v1608
    %v1617 = vadd.f32 %v297, %v1609
    %v1618 = vxor.u32 %v1614, 2147483648
    %v1619 = vxor.u32 %v1615, 2147483648
    %v1620 = vxor.u32 %v1616, 2147483648
    %v1621 = vxor.u32 %v1617, 2147483648
    %v1622 = vmul.f32 %v1618, 1.442695
    %v1623 = vpow.pop %v1622
    %v1624 = vmul.f32 %v1619, 1.442695
    %v1625 = vpow.pop %v1624
    %v1626 = vmul.f32 %v1620, 1.442695
    %v1627 = vpow.pop %v1626
    %v1628 = vmul.f32 %v1621, 1.442695
    %v1629 = vpow.pop %v1628
    %v1630 = vadd.f32 %v1623, 1.0
    %v1631 = vadd.f32 %v1625, 1.0
    %v1632 = vadd.f32 %v1627, 1.0
    %v1633 = vadd.f32 %v1629, 1.0
    %v1634 = vrcp.pop %v1630
    %v1635 = vmul.f32 1.0, %v1634
    %v1636 = vrcp.pop %v1631
    %v1637 = vmul.f32 1.0, %v1636
    %v1638 = vrcp.pop %v1632
    %v1639 = vmul.f32 1.0, %v1638
    %v1640 = vrcp.pop %v1633
    %v1641 = vmul.f32 1.0, %v1640
    %v1642 = vmul.f32 %v1639, 2.0
    %v1643 = vsub.f32 %v1642, 1.0
    %v1645 = vrot.slane %v1452, 6
    %v1647 = vmul.f32 %v1637, %v1645
    %v1648 = vmul.f32 %v1635, %v1643
    %v1649 = vadd.f32 %v1647, %v1648
    %v1650 = vtanh.pop %v1649
    %v1651 = vmul.f32 %v1641, %v1650
    %1652 = vst.msk [vmem:[#allocation2 + $0x8] sm:$0x30] %vm875, %v1651
    %v1654 = vrot.slane %v1651, 4
    %v1655 = vsel %vm299, %v1654, 0
    %1657 = vmatprep.subr.mxu0 0.0
    %1658 = vmatpush1.msra.mxu0 0.0
    %1659 = vmatprep.subr.mxu0 0.0
    %1660 = vmatpush1.msra.mxu0 0.0
    %1661 = vmatprep.subr.mxu0 0.0
    %1662 = vmatpush1.msra.mxu0 0.0
    %1663 = vmatprep.subr.mxu0 0.0
    %1664 = vmatpush1.msra.mxu0 0.0
    %1665 = vmatprep.subr.mxu0 %v113
    %1666 = vmatpush1.msra.mxu0 %v112
    %1667 = vmatprep.subr.mxu0 %v109
    %1668 = vmatpush1.msra.mxu0 %v108
    %1669 = vmatprep.subr.mxu0 %v105
    %1670 = vmatpush1.msra.mxu0 %v104
    %1671 = vmatprep.subr.mxu0 %v101
    %1672 = vmatpush1.msra.mxu0 %v100
    %1673 = vmatprep.subr.mxu0 %v97
    %1674 = vmatpush1.msra.mxu0 %v96
    %1675 = vmatprep.subr.mxu0 %v93
    %1676 = vmatpush1.msra.mxu0 %v92
    %1677 = vmatprep.subr.mxu0 %v89
    %1678 = vmatpush1.msra.mxu0 %v88
    %1679 = vmatprep.subr.mxu0 %v85
    %1680 = vmatpush1.msra.mxu0 %v84
    %1681 = vmatprep.subr.mxu0 %v81
    %1682 = vmatpush1.msra.mxu0 %v80
    %1683 = vmatprep.subr.mxu0 %v77
    %1684 = vmatpush1.msra.mxu0 %v76
    %1685 = vmatprep.subr.mxu0 %v73
    %1686 = vmatpush1.msra.mxu0 %v72
    %1687 = vmatprep.subr.mxu0 %v69
    %1688 = vmatpush1.msra.mxu0 %v68
    %1689 = vmatprep.subr.mxu0 0.0
    %1690 = vmatpush2.msra.mxu0 0.0
    %1691 = vmatprep.subr.mxu0 0.0
    %1692 = vmatpush2.msra.mxu0 0.0
    %1693 = vmatprep.subr.mxu0 0.0
    %1694 = vmatpush2.msra.mxu0 0.0
    %1695 = vmatprep.subr.mxu0 0.0
    %1696 = vmatpush2.msra.mxu0 0.0
    %1697 = vmatprep.subr.mxu0 0.0
    %1698 = vmatpush2.msra.mxu0 0.0
    %1699 = vmatprep.subr.mxu0 0.0
    %1700 = vmatpush2.msra.mxu0 0.0
    %1701 = vmatprep.subr.mxu0 0.0
    %1702 = vmatpush2.msra.mxu0 0.0
    %1703 = vmatprep.subr.mxu0 0.0
    %1704 = vmatpush2.msra.mxu0 0.0
    %1705 = vmatprep.subr.mxu0 0.0
    %1706 = vmatpush2.msra.mxu0 0.0
    %1707 = vmatprep.subr.mxu0 0.0
    %1708 = vmatpush2.msra.mxu0 0.0
    %1709 = vmatprep.subr.mxu0 0.0
    %1710 = vmatpush2.msra.mxu0 0.0
    %1711 = vmatprep.subr.mxu0 0.0
    %1712 = vmatpush2.msra.mxu0 0.0
    %1713 = vmatprep.subr.mxu0 0.0
    %1714 = vmatpush2.msra.mxu0 0.0
    %1715 = vmatprep.subr.mxu0 0.0
    %1716 = vmatpush2.msra.mxu0 0.0
    %1717 = vmatprep.subr.mxu0 0.0
    %1718 = vmatpush2.msra.mxu0 0.0
    %1719 = vmatprep.subr.mxu0 0.0
    %1720 = vmatpush2.msra.mxu0 0.0
    %1721 = vmatprep.mubr.f32.mxu0 0.0
    %1722 = vmatmul.mubr.f32.gmra.mxu0 %v1655
    %v1723 = vpop.f32.mrf.mxu0
    %v1724 = vadd.f32 0.0, %v1723
    %v1725 = vpop.f32.mrf.mxu0
    %v1726 = vadd.f32 0.0, %v1725
    %1727 = vdwg.mxu0
    %1728 = vmatprep.subr.mxu0 0.0
    %1729 = vmatpush1.msra.mxu0 0.0
    %1730 = vmatprep.subr.mxu0 0.0
    %1731 = vmatpush1.msra.mxu0 0.0
    %1732 = vmatprep.subr.mxu0 0.0
    %1733 = vmatpush1.msra.mxu0 0.0
    %1734 = vmatprep.subr.mxu0 0.0
    %1735 = vmatpush1.msra.mxu0 0.0
    %1736 = vmatprep.subr.mxu0 %v115
    %1737 = vmatpush1.msra.mxu0 %v114
    %1738 = vmatprep.subr.mxu0 %v111
    %1739 = vmatpush1.msra.mxu0 %v110
    %1740 = vmatprep.subr.mxu0 %v107
    %1741 = vmatpush1.msra.mxu0 %v106
    %1742 = vmatprep.subr.mxu0 %v103
    %1743 = vmatpush1.msra.mxu0 %v102
    %1744 = vmatprep.subr.mxu0 %v99
    %1745 = vmatpush1.msra.mxu0 %v98
    %1746 = vmatprep.subr.mxu0 %v95
    %1747 = vmatpush1.msra.mxu0 %v94
    %1748 = vmatprep.subr.mxu0 %v91
    %1749 = vmatpush1.msra.mxu0 %v90
    %1750 = vmatprep.subr.mxu0 %v87
    %1751 = vmatpush1.msra.mxu0 %v86
    %1752 = vmatprep.subr.mxu0 %v83
    %1753 = vmatpush1.msra.mxu0 %v82
    %1754 = vmatprep.subr.mxu0 %v79
    %1755 = vmatpush1.msra.mxu0 %v78
    %1756 = vmatprep.subr.mxu0 %v75
    %1757 = vmatpush1.msra.mxu0 %v74
    %1758 = vmatprep.subr.mxu0 %v71
    %1759 = vmatpush1.msra.mxu0 %v70
    %1760 = vmatprep.subr.mxu0 0.0
    %1761 = vmatpush2.msra.mxu0 0.0
    %1762 = vmatprep.subr.mxu0 0.0
    %1763 = vmatpush2.msra.mxu0 0.0
    %1764 = vmatprep.subr.mxu0 0.0
    %1765 = vmatpush2.msra.mxu0 0.0
    %1766 = vmatprep.subr.mxu0 0.0
    %1767 = vmatpush2.msra.mxu0 0.0
    %1768 = vmatprep.subr.mxu0 0.0
    %1769 = vmatpush2.msra.mxu0 0.0
    %1770 = vmatprep.subr.mxu0 0.0
    %1771 = vmatpush2.msra.mxu0 0.0
    %1772 = vmatprep.subr.mxu0 0.0
    %1773 = vmatpush2.msra.mxu0 0.0
    %1774 = vmatprep.subr.mxu0 0.0
    %1775 = vmatpush2.msra.mxu0 0.0
    %1776 = vmatprep.subr.mxu0 0.0
    %1777 = vmatpush2.msra.mxu0 0.0
    %1778 = vmatprep.subr.mxu0 0.0
    %1779 = vmatpush2.msra.mxu0 0.0
    %1780 = vmatprep.subr.mxu0 0.0
    %1781 = vmatpush2.msra.mxu0 0.0
    %1782 = vmatprep.subr.mxu0 0.0
    %1783 = vmatpush2.msra.mxu0 0.0
    %1784 = vmatprep.subr.mxu0 0.0
    %1785 = vmatpush2.msra.mxu0 0.0
    %1786 = vmatprep.subr.mxu0 0.0
    %1787 = vmatpush2.msra.mxu0 0.0
    %1788 = vmatprep.subr.mxu0 0.0
    %1789 = vmatpush2.msra.mxu0 0.0
    %1790 = vmatprep.subr.mxu0 0.0
    %1791 = vmatpush2.msra.mxu0 0.0
    %1792 = vmatprep.mubr.f32.mxu0 0.0
    %1793 = vmatmul.mubr.f32.gmra.mxu0 %v1655
    %v1794 = vpop.f32.mrf.mxu0
    %v1795 = vadd.f32 0.0, %v1794
    %v1796 = vpop.f32.mrf.mxu0
    %v1797 = vadd.f32 0.0, %v1796
    %1798 = vdwg.mxu0
    %v1803 = vrot.slane %v1724, 2
    %v1804 = vrot.slane %v1726, 2
    %v1805 = vrot.slane %v1795, 2
    %v1806 = vrot.slane %v1797, 2
    %v1811 = vadd.f32 %v218, %v1803
    %v1812 = vadd.f32 %v220, %v1804
    %v1813 = vadd.f32 %v295, %v1805
    %v1814 = vadd.f32 %v297, %v1806
    %v1815 = vxor.u32 %v1811, 2147483648
    %v1816 = vxor.u32 %v1812, 2147483648
    %v1817 = vxor.u32 %v1813, 2147483648
    %v1818 = vxor.u32 %v1814, 2147483648
    %v1819 = vmul.f32 %v1815, 1.442695
    %v1820 = vpow.pop %v1819
    %v1821 = vmul.f32 %v1816, 1.442695
    %v1822 = vpow.pop %v1821
    %v1823 = vmul.f32 %v1817, 1.442695
    %v1824 = vpow.pop %v1823
    %v1825 = vmul.f32 %v1818, 1.442695
    %v1826 = vpow.pop %v1825
    %v1827 = vadd.f32 %v1820, 1.0
    %v1828 = vadd.f32 %v1822, 1.0
    %v1829 = vadd.f32 %v1824, 1.0
    %v1830 = vadd.f32 %v1826, 1.0
    %v1831 = vrcp.pop %v1827
    %v1832 = vmul.f32 1.0, %v1831
    %v1833 = vrcp.pop %v1828
    %v1834 = vmul.f32 1.0, %v1833
    %v1835 = vrcp.pop %v1829
    %v1836 = vmul.f32 1.0, %v1835
    %v1837 = vrcp.pop %v1830
    %v1838 = vmul.f32 1.0, %v1837
    %v1839 = vmul.f32 %v1836, 2.0
    %v1840 = vsub.f32 %v1839, 1.0
    %v1842 = vrot.slane %v1649, 6
    %v1844 = vmul.f32 %v1834, %v1842
    %v1845 = vmul.f32 %v1832, %v1840
    %v1846 = vadd.f32 %v1844, %v1845
    %v1847 = vtanh.pop %v1846
    %v1848 = vmul.f32 %v1838, %v1847
    %1849 = vst.msk [vmem:[#allocation2 + $0x8] sm:$0xc0] %vm1073, %v1848
    %v1850 = vld [vmem:[#allocation2] sm:$0xff]
    %v1851 = vld [vmem:[#allocation2 + $0x8] sm:$0xff]
    %v1852 = vld [vmem:[#allocation4] sm:$0xff]
    %v1853 = vld [vmem:[#allocation4 + $0x8] sm:$0xff]
    %v1854 = vld [vmem:[#allocation4 + $0x10] sm:$0xff]
    %v1855 = vld [vmem:[#allocation4 + $0x18] sm:$0xff]
    %v1856 = vld [vmem:[#allocation4 + $0x20] sm:$0xff]
    %v1857 = vld [vmem:[#allocation4 + $0x28] sm:$0xff]
    %v1858 = vld [vmem:[#allocation4 + $0x30] sm:$0xff]
    %v1859 = vld [vmem:[#allocation4 + $0x38] sm:$0xff]
    %v1860 = vld [vmem:[#allocation4 + $0x40] sm:$0xff]
    %v1861 = vld [vmem:[#allocation4 + $0x48] sm:$0xff]
    %v1862 = vld [vmem:[#allocation4 + $0x50] sm:$0xff]
    %v1863 = vld [vmem:[#allocation4 + $0x58] sm:$0xff]
    %v1864 = vld [vmem:[#allocation4 + $0x60] sm:$0xff]
    %v1865 = vld [vmem:[#allocation4 + $0x68] sm:$0xff]
    %v1866 = vld [vmem:[#allocation4 + $0x70] sm:$0xff]
    %v1867 = vld [vmem:[#allocation4 + $0x78] sm:$0xff]
    %v1868 = vld [vmem:[#allocation4 + $0x80] sm:$0xff]
    %v1869 = vld [vmem:[#allocation4 + $0x88] sm:$0xff]
    %v1870 = vld [vmem:[#allocation4 + $0x90] sm:$0xff]
    %v1871 = vld [vmem:[#allocation4 + $0x98] sm:$0xff]
    %v1872 = vld [vmem:[#allocation4 + $0xa0] sm:$0xff]
    %v1873 = vld [vmem:[#allocation4 + $0xa8] sm:$0xff]
    %v1874 = vld [vmem:[#allocation4 + $0xb0] sm:$0xff]
    %v1875 = vld [vmem:[#allocation4 + $0xb8] sm:$0xff]
    %v1876 = vld [vmem:[#allocation4 + $0xc0] sm:$0xff]
    %v1877 = vld [vmem:[#allocation4 + $0xc8] sm:$0xff]
    %v1878 = vld [vmem:[#allocation4 + $0xd0] sm:$0xff]
    %v1879 = vld [vmem:[#allocation4 + $0xd8] sm:$0xff]
    %v1880 = vld [vmem:[#allocation4 + $0xe0] sm:$0xff]
    %v1881 = vld [vmem:[#allocation4 + $0xe8] sm:$0xff]
    %v1882 = vld [vmem:[#allocation4 + $0xf0] sm:$0xff]
    %v1883 = vld [vmem:[#allocation4 + $0xf8] sm:$0xff]
    %v1884 = vld [vmem:[#allocation4 + $0x100] sm:$0xff]
    %v1885 = vld [vmem:[#allocation4 + $0x108] sm:$0xff]
    %v1886 = vld [vmem:[#allocation4 + $0x110] sm:$0xff]
    %v1887 = vld [vmem:[#allocation4 + $0x118] sm:$0xff]
    %v1888 = vld [vmem:[#allocation4 + $0x120] sm:$0xff]
    %v1889 = vld [vmem:[#allocation4 + $0x128] sm:$0xff]
    %v1890 = vld [vmem:[#allocation4 + $0x130] sm:$0xff]
    %v1891 = vld [vmem:[#allocation4 + $0x138] sm:$0xff]
    %v1892 = vld [vmem:[#allocation4 + $0x140] sm:$0xff]
    %v1893 = vld [vmem:[#allocation4 + $0x148] sm:$0xff]
    %v1894 = vld [vmem:[#allocation4 + $0x150] sm:$0xff]
    %v1895 = vld [vmem:[#allocation4 + $0x158] sm:$0xff]
    %v1896 = vld [vmem:[#allocation4 + $0x160] sm:$0xff]
    %v1897 = vld [vmem:[#allocation4 + $0x168] sm:$0xff]
    %v1898 = vld [vmem:[#allocation4 + $0x170] sm:$0xff]
    %v1899 = vld [vmem:[#allocation4 + $0x178] sm:$0xff]
    %s1900 = scalar_lea.vmem [#allocation6], 384
    %v1901 = vld [vmem:[%s1900] sm:$0xff]
    %v1902 = vld [vmem:[%s1900 + $0x8] sm:$0xff]
    %v1903 = vld [vmem:[%s1900 + $0x10] sm:$0xff]
    %v1904 = vld [vmem:[%s1900 + $0x18] sm:$0xff]
    %v1905 = vld [vmem:[%s1900 + $0x20] sm:$0xff]
    %v1906 = vld [vmem:[%s1900 + $0x28] sm:$0xff]
    %v1907 = vld [vmem:[%s1900 + $0x30] sm:$0xff]
    %v1908 = vld [vmem:[%s1900 + $0x38] sm:$0xff]
    %v1909 = vld [vmem:[%s1900 + $0x40] sm:$0xff]
    %v1910 = vld [vmem:[%s1900 + $0x48] sm:$0xff]
    %v1911 = vld [vmem:[%s1900 + $0x50] sm:$0xff]
    %v1912 = vld [vmem:[%s1900 + $0x58] sm:$0xff]
    %v1913 = vld [vmem:[%s1900 + $0x60] sm:$0xff]
    %v1914 = vld [vmem:[%s1900 + $0x68] sm:$0xff]
    %v1915 = vld [vmem:[%s1900 + $0x70] sm:$0xff]
    %v1916 = vld [vmem:[%s1900 + $0x78] sm:$0xff]
    %v1917 = vld [vmem:[%s1900 + $0x80] sm:$0xff]
    %v1918 = vld [vmem:[%s1900 + $0x88] sm:$0xff]
    %v1919 = vld [vmem:[%s1900 + $0x90] sm:$0xff]
    %v1920 = vld [vmem:[%s1900 + $0x98] sm:$0xff]
    %v1921 = vld [vmem:[%s1900 + $0xa0] sm:$0xff]
    %v1922 = vld [vmem:[%s1900 + $0xa8] sm:$0xff]
    %v1923 = vld [vmem:[%s1900 + $0xb0] sm:$0xff]
    %v1924 = vld [vmem:[%s1900 + $0xb8] sm:$0xff]
    %v1925 = vld [vmem:[%s1900 + $0xc0] sm:$0xff]
    %v1926 = vld [vmem:[%s1900 + $0xc8] sm:$0xff]
    %v1927 = vld [vmem:[%s1900 + $0xd0] sm:$0xff]
    %v1928 = vld [vmem:[%s1900 + $0xd8] sm:$0xff]
    %v1929 = vld [vmem:[%s1900 + $0xe0] sm:$0xff]
    %v1930 = vld [vmem:[%s1900 + $0xe8] sm:$0xff]
    %v1931 = vld [vmem:[%s1900 + $0xf0] sm:$0xff]
    %v1932 = vld [vmem:[%s1900 + $0xf8] sm:$0xff]
    %v1933 = vld [vmem:[%s1900 + $0x100] sm:$0xff]
    %v1934 = vld [vmem:[%s1900 + $0x108] sm:$0xff]
    %v1935 = vld [vmem:[%s1900 + $0x110] sm:$0xff]
    %v1936 = vld [vmem:[%s1900 + $0x118] sm:$0xff]
    %v1937 = vld [vmem:[%s1900 + $0x120] sm:$0xff]
    %v1938 = vld [vmem:[%s1900 + $0x128] sm:$0xff]
    %v1939 = vld [vmem:[%s1900 + $0x130] sm:$0xff]
    %v1940 = vld [vmem:[%s1900 + $0x138] sm:$0xff]
    %v1941 = vld [vmem:[%s1900 + $0x140] sm:$0xff]
    %v1942 = vld [vmem:[%s1900 + $0x148] sm:$0xff]
    %v1943 = vld [vmem:[%s1900 + $0x150] sm:$0xff]
    %v1944 = vld [vmem:[%s1900 + $0x158] sm:$0xff]
    %v1945 = vld [vmem:[%s1900 + $0x160] sm:$0xff]
    %v1946 = vld [vmem:[%s1900 + $0x168] sm:$0xff]
    %v1947 = vld [vmem:[%s1900 + $0x170] sm:$0xff]
    %v1948 = vld [vmem:[%s1900 + $0x178] sm:$0xff]
    %s1949 = scalar_lea.vmem %s4, 4
    %v1950 = vld [vmem:[%s1949] sm:$0xf]
    %v1952 = vlaneseq
    %v1953 = vshrl.u32 %v1952, 7
    %v1954 = vsub.s32 0, %v1953
    %v1955 = vrot.slane %v1950, %v1954
    %v1956 = vlaneseq
    %v1957 = vshrl.u32 %v1956, 7
    %v1958 = vsub.s32 1, %v1957
    %v1959 = vrot.slane %v1950, %v1958
    %v1960 = vlaneseq
    %v1961 = vshrl.u32 %v1960, 7
    %v1962 = vsub.s32 2, %v1961
    %v1963 = vrot.slane %v1950, %v1962
    %v1964 = vlaneseq
    %v1965 = vshrl.u32 %v1964, 7
    %v1966 = vsub.s32 3, %v1965
    %v1967 = vrot.slane %v1950, %v1966
    %v1973 = vsel %vm299, %v1850, 0
    %v1976 = vsel %vm299, %v1851, 0
    %1978 = vmatprep.subr.mxu0 0.0
    %1979 = vmatpush1.msra.mxu0 0.0
    %1980 = vmatprep.subr.mxu0 0.0
    %1981 = vmatpush1.msra.mxu0 0.0
    %1982 = vmatprep.subr.mxu0 0.0
    %1983 = vmatpush1.msra.mxu0 0.0
    %1984 = vmatprep.subr.mxu0 0.0
    %1985 = vmatpush1.msra.mxu0 0.0
    %1986 = vmatprep.subr.mxu0 %v1897
    %1987 = vmatpush1.msra.mxu0 %v1896
    %1988 = vmatprep.subr.mxu0 %v1893
    %1989 = vmatpush1.msra.mxu0 %v1892
    %1990 = vmatprep.subr.mxu0 %v1889
    %1991 = vmatpush1.msra.mxu0 %v1888
    %1992 = vmatprep.subr.mxu0 %v1885
    %1993 = vmatpush1.msra.mxu0 %v1884
    %1994 = vmatprep.subr.mxu0 %v1881
    %1995 = vmatpush1.msra.mxu0 %v1880
    %1996 = vmatprep.subr.mxu0 %v1877
    %1997 = vmatpush1.msra.mxu0 %v1876
    %1998 = vmatprep.subr.mxu0 %v1873
    %1999 = vmatpush1.msra.mxu0 %v1872
    %2000 = vmatprep.subr.mxu0 %v1869
    %2001 = vmatpush1.msra.mxu0 %v1868
    %2002 = vmatprep.subr.mxu0 %v1865
    %2003 = vmatpush1.msra.mxu0 %v1864
    %2004 = vmatprep.subr.mxu0 %v1861
    %2005 = vmatpush1.msra.mxu0 %v1860
    %2006 = vmatprep.subr.mxu0 %v1857
    %2007 = vmatpush1.msra.mxu0 %v1856
    %2008 = vmatprep.subr.mxu0 %v1853
    %2009 = vmatpush1.msra.mxu0 %v1852
    %2010 = vmatprep.subr.mxu0 0.0
    %2011 = vmatpush2.msra.mxu0 0.0
    %2012 = vmatprep.subr.mxu0 0.0
    %2013 = vmatpush2.msra.mxu0 0.0
    %2014 = vmatprep.subr.mxu0 0.0
    %2015 = vmatpush2.msra.mxu0 0.0
    %2016 = vmatprep.subr.mxu0 0.0
    %2017 = vmatpush2.msra.mxu0 0.0
    %2018 = vmatprep.subr.mxu0 0.0
    %2019 = vmatpush2.msra.mxu0 0.0
    %2020 = vmatprep.subr.mxu0 0.0
    %2021 = vmatpush2.msra.mxu0 0.0
    %2022 = vmatprep.subr.mxu0 0.0
    %2023 = vmatpush2.msra.mxu0 0.0
    %2024 = vmatprep.subr.mxu0 0.0
    %2025 = vmatpush2.msra.mxu0 0.0
    %2026 = vmatprep.subr.mxu0 0.0
    %2027 = vmatpush2.msra.mxu0 0.0
    %2028 = vmatprep.subr.mxu0 0.0
    %2029 = vmatpush2.msra.mxu0 0.0
    %2030 = vmatprep.subr.mxu0 0.0
    %2031 = vmatpush2.msra.mxu0 0.0
    %2032 = vmatprep.subr.mxu0 0.0
    %2033 = vmatpush2.msra.mxu0 0.0
    %2034 = vmatprep.subr.mxu0 0.0
    %2035 = vmatpush2.msra.mxu0 0.0
    %2036 = vmatprep.subr.mxu0 0.0
    %2037 = vmatpush2.msra.mxu0 0.0
    %2038 = vmatprep.subr.mxu0 0.0
    %2039 = vmatpush2.msra.mxu0 0.0
    %2040 = vmatprep.subr.mxu0 0.0
    %2041 = vmatpush2.msra.mxu0 0.0
    %2042 = vmatprep.mubr.f32.mxu0 0.0
    %2043 = vmatmul.mubr.f32.gmra.mxu0 %v1973
    %v2044 = vpop.f32.mrf.mxu0
    %v2045 = vadd.f32 %v1955, %v2044
    %v2046 = vpop.f32.mrf.mxu0
    %v2047 = vadd.f32 %v1959, %v2046
    %2048 = vmatprep.mubr.f32.mxu0 0.0
    %2049 = vmatmul.mubr.f32.gmra.mxu0 %v1976
    %v2050 = vpop.f32.mrf.mxu0
    %v2051 = vadd.f32 %v1955, %v2050
    %v2052 = vpop.f32.mrf.mxu0
    %v2053 = vadd.f32 %v1959, %v2052
    %2054 = vdwg.mxu0
    %2055 = vmatprep.subr.mxu0 0.0
    %2056 = vmatpush1.msra.mxu0 0.0
    %2057 = vmatprep.subr.mxu0 0.0
    %2058 = vmatpush1.msra.mxu0 0.0
    %2059 = vmatprep.subr.mxu0 0.0
    %2060 = vmatpush1.msra.mxu0 0.0
    %2061 = vmatprep.subr.mxu0 0.0
    %2062 = vmatpush1.msra.mxu0 0.0
    %2063 = vmatprep.subr.mxu0 %v1899
    %2064 = vmatpush1.msra.mxu0 %v1898
    %2065 = vmatprep.subr.mxu0 %v1895
    %2066 = vmatpush1.msra.mxu0 %v1894
    %2067 = vmatprep.subr.mxu0 %v1891
    %2068 = vmatpush1.msra.mxu0 %v1890
    %2069 = vmatprep.subr.mxu0 %v1887
    %2070 = vmatpush1.msra.mxu0 %v1886
    %2071 = vmatprep.subr.mxu0 %v1883
    %2072 = vmatpush1.msra.mxu0 %v1882
    %2073 = vmatprep.subr.mxu0 %v1879
    %2074 = vmatpush1.msra.mxu0 %v1878
    %2075 = vmatprep.subr.mxu0 %v1875
    %2076 = vmatpush1.msra.mxu0 %v1874
    %2077 = vmatprep.subr.mxu0 %v1871
    %2078 = vmatpush1.msra.mxu0 %v1870
    %2079 = vmatprep.subr.mxu0 %v1867
    %2080 = vmatpush1.msra.mxu0 %v1866
    %2081 = vmatprep.subr.mxu0 %v1863
    %2082 = vmatpush1.msra.mxu0 %v1862
    %2083 = vmatprep.subr.mxu0 %v1859
    %2084 = vmatpush1.msra.mxu0 %v1858
    %2085 = vmatprep.subr.mxu0 %v1855
    %2086 = vmatpush1.msra.mxu0 %v1854
    %2087 = vmatprep.subr.mxu0 0.0
    %2088 = vmatpush2.msra.mxu0 0.0
    %2089 = vmatprep.subr.mxu0 0.0
    %2090 = vmatpush2.msra.mxu0 0.0
    %2091 = vmatprep.subr.mxu0 0.0
    %2092 = vmatpush2.msra.mxu0 0.0
    %2093 = vmatprep.subr.mxu0 0.0
    %2094 = vmatpush2.msra.mxu0 0.0
    %2095 = vmatprep.subr.mxu0 0.0
    %2096 = vmatpush2.msra.mxu0 0.0
    %2097 = vmatprep.subr.mxu0 0.0
    %2098 = vmatpush2.msra.mxu0 0.0
    %2099 = vmatprep.subr.mxu0 0.0
    %2100 = vmatpush2.msra.mxu0 0.0
    %2101 = vmatprep.subr.mxu0 0.0
    %2102 = vmatpush2.msra.mxu0 0.0
    %2103 = vmatprep.subr.mxu0 0.0
    %2104 = vmatpush2.msra.mxu0 0.0
    %2105 = vmatprep.subr.mxu0 0.0
    %2106 = vmatpush2.msra.mxu0 0.0
    %2107 = vmatprep.subr.mxu0 0.0
    %2108 = vmatpush2.msra.mxu0 0.0
    %2109 = vmatprep.subr.mxu0 0.0
    %2110 = vmatpush2.msra.mxu0 0.0
    %2111 = vmatprep.subr.mxu0 0.0
    %2112 = vmatpush2.msra.mxu0 0.0
    %2113 = vmatprep.subr.mxu0 0.0
    %2114 = vmatpush2.msra.mxu0 0.0
    %2115 = vmatprep.subr.mxu0 0.0
    %2116 = vmatpush2.msra.mxu0 0.0
    %2117 = vmatprep.subr.mxu0 0.0
    %2118 = vmatpush2.msra.mxu0 0.0
    %2119 = vmatprep.mubr.f32.mxu0 0.0
    %2120 = vmatmul.mubr.f32.gmra.mxu0 %v1973
    %v2121 = vpop.f32.mrf.mxu0
    %v2122 = vadd.f32 %v1963, %v2121
    %v2123 = vpop.f32.mrf.mxu0
    %v2124 = vadd.f32 %v1967, %v2123
    %2125 = vmatprep.mubr.f32.mxu0 0.0
    %2126 = vmatmul.mubr.f32.gmra.mxu0 %v1976
    %v2127 = vpop.f32.mrf.mxu0
    %v2128 = vadd.f32 %v1963, %v2127
    %v2129 = vpop.f32.mrf.mxu0
    %v2130 = vadd.f32 %v1967, %v2129
    %2131 = vdwg.mxu0
    %2132 = vmatprep.subr.mxu0 0.0
    %2133 = vmatpush1.msra.mxu0 0.0
    %2134 = vmatprep.subr.mxu0 0.0
    %2135 = vmatpush1.msra.mxu0 0.0
    %2136 = vmatprep.subr.mxu0 0.0
    %2137 = vmatpush1.msra.mxu0 0.0
    %2138 = vmatprep.subr.mxu0 0.0
    %2139 = vmatpush1.msra.mxu0 0.0
    %2140 = vmatprep.subr.mxu0 %v1946
    %2141 = vmatpush1.msra.mxu0 %v1945
    %2142 = vmatprep.subr.mxu0 %v1942
    %2143 = vmatpush1.msra.mxu0 %v1941
    %2144 = vmatprep.subr.mxu0 %v1938
    %2145 = vmatpush1.msra.mxu0 %v1937
    %2146 = vmatprep.subr.mxu0 %v1934
    %2147 = vmatpush1.msra.mxu0 %v1933
    %2148 = vmatprep.subr.mxu0 %v1930
    %2149 = vmatpush1.msra.mxu0 %v1929
    %2150 = vmatprep.subr.mxu0 %v1926
    %2151 = vmatpush1.msra.mxu0 %v1925
    %2152 = vmatprep.subr.mxu0 %v1922
    %2153 = vmatpush1.msra.mxu0 %v1921
    %2154 = vmatprep.subr.mxu0 %v1918
    %2155 = vmatpush1.msra.mxu0 %v1917
    %2156 = vmatprep.subr.mxu0 %v1914
    %2157 = vmatpush1.msra.mxu0 %v1913
    %2158 = vmatprep.subr.mxu0 %v1910
    %2159 = vmatpush1.msra.mxu0 %v1909
    %2160 = vmatprep.subr.mxu0 %v1906
    %2161 = vmatpush1.msra.mxu0 %v1905
    %2162 = vmatprep.subr.mxu0 %v1902
    %2163 = vmatpush1.msra.mxu0 %v1901
    %2164 = vmatprep.subr.mxu0 0.0
    %2165 = vmatpush2.msra.mxu0 0.0
    %2166 = vmatprep.subr.mxu0 0.0
    %2167 = vmatpush2.msra.mxu0 0.0
    %2168 = vmatprep.subr.mxu0 0.0
    %2169 = vmatpush2.msra.mxu0 0.0
    %2170 = vmatprep.subr.mxu0 0.0
    %2171 = vmatpush2.msra.mxu0 0.0
    %2172 = vmatprep.subr.mxu0 0.0
    %2173 = vmatpush2.msra.mxu0 0.0
    %2174 = vmatprep.subr.mxu0 0.0
    %2175 = vmatpush2.msra.mxu0 0.0
    %2176 = vmatprep.subr.mxu0 0.0
    %2177 = vmatpush2.msra.mxu0 0.0
    %2178 = vmatprep.subr.mxu0 0.0
    %2179 = vmatpush2.msra.mxu0 0.0
    %2180 = vmatprep.subr.mxu0 0.0
    %2181 = vmatpush2.msra.mxu0 0.0
    %2182 = vmatprep.subr.mxu0 0.0
    %2183 = vmatpush2.msra.mxu0 0.0
    %2184 = vmatprep.subr.mxu0 0.0
    %2185 = vmatpush2.msra.mxu0 0.0
    %2186 = vmatprep.subr.mxu0 0.0
    %2187 = vmatpush2.msra.mxu0 0.0
    %2188 = vmatprep.subr.mxu0 0.0
    %2189 = vmatpush2.msra.mxu0 0.0
    %2190 = vmatprep.subr.mxu0 0.0
    %2191 = vmatpush2.msra.mxu0 0.0
    %2192 = vmatprep.subr.mxu0 0.0
    %2193 = vmatpush2.msra.mxu0 0.0
    %2194 = vmatprep.subr.mxu0 0.0
    %2195 = vmatpush2.msra.mxu0 0.0
    %2196 = vmatprep.mubr.f32.mxu0 0.0
    %2197 = vmatmul.mubr.f32.gmra.mxu0 %v301
    %v2198 = vpop.f32.mrf.mxu0
    %v2199 = vadd.f32 0.0, %v2198
    %v2200 = vpop.f32.mrf.mxu0
    %v2201 = vadd.f32 0.0, %v2200
    %2202 = vdwg.mxu0
    %2203 = vmatprep.subr.mxu0 0.0
    %2204 = vmatpush1.msra.mxu0 0.0
    %2205 = vmatprep.subr.mxu0 0.0
    %2206 = vmatpush1.msra.mxu0 0.0
    %2207 = vmatprep.subr.mxu0 0.0
    %2208 = vmatpush1.msra.mxu0 0.0
    %2209 = vmatprep.subr.mxu0 0.0
    %2210 = vmatpush1.msra.mxu0 0.0
    %2211 = vmatprep.subr.mxu0 %v1948
    %2212 = vmatpush1.msra.mxu0 %v1947
    %2213 = vmatprep.subr.mxu0 %v1944
    %2214 = vmatpush1.msra.mxu0 %v1943
    %2215 = vmatprep.subr.mxu0 %v1940
    %2216 = vmatpush1.msra.mxu0 %v1939
    %2217 = vmatprep.subr.mxu0 %v1936
    %2218 = vmatpush1.msra.mxu0 %v1935
    %2219 = vmatprep.subr.mxu0 %v1932
    %2220 = vmatpush1.msra.mxu0 %v1931
    %2221 = vmatprep.subr.mxu0 %v1928
    %2222 = vmatpush1.msra.mxu0 %v1927
    %2223 = vmatprep.subr.mxu0 %v1924
    %2224 = vmatpush1.msra.mxu0 %v1923
    %2225 = vmatprep.subr.mxu0 %v1920
    %2226 = vmatpush1.msra.mxu0 %v1919
    %2227 = vmatprep.subr.mxu0 %v1916
    %2228 = vmatpush1.msra.mxu0 %v1915
    %2229 = vmatprep.subr.mxu0 %v1912
    %2230 = vmatpush1.msra.mxu0 %v1911
    %2231 = vmatprep.subr.mxu0 %v1908
    %2232 = vmatpush1.msra.mxu0 %v1907
    %2233 = vmatprep.subr.mxu0 %v1904
    %2234 = vmatpush1.msra.mxu0 %v1903
    %2235 = vmatprep.subr.mxu0 0.0
    %2236 = vmatpush2.msra.mxu0 0.0
    %2237 = vmatprep.subr.mxu0 0.0
    %2238 = vmatpush2.msra.mxu0 0.0
    %2239 = vmatprep.subr.mxu0 0.0
    %2240 = vmatpush2.msra.mxu0 0.0
    %2241 = vmatprep.subr.mxu0 0.0
    %2242 = vmatpush2.msra.mxu0 0.0
    %2243 = vmatprep.subr.mxu0 0.0
    %2244 = vmatpush2.msra.mxu0 0.0
    %2245 = vmatprep.subr.mxu0 0.0
    %2246 = vmatpush2.msra.mxu0 0.0
    %2247 = vmatprep.subr.mxu0 0.0
    %2248 = vmatpush2.msra.mxu0 0.0
    %2249 = vmatprep.subr.mxu0 0.0
    %2250 = vmatpush2.msra.mxu0 0.0
    %2251 = vmatprep.subr.mxu0 0.0
    %2252 = vmatpush2.msra.mxu0 0.0
    %2253 = vmatprep.subr.mxu0 0.0
    %2254 = vmatpush2.msra.mxu0 0.0
    %2255 = vmatprep.subr.mxu0 0.0
    %2256 = vmatpush2.msra.mxu0 0.0
    %2257 = vmatprep.subr.mxu0 0.0
    %2258 = vmatpush2.msra.mxu0 0.0
    %2259 = vmatprep.subr.mxu0 0.0
    %2260 = vmatpush2.msra.mxu0 0.0
    %2261 = vmatprep.subr.mxu0 0.0
    %2262 = vmatpush2.msra.mxu0 0.0
    %2263 = vmatprep.subr.mxu0 0.0
    %2264 = vmatpush2.msra.mxu0 0.0
    %2265 = vmatprep.subr.mxu0 0.0
    %2266 = vmatpush2.msra.mxu0 0.0
    %2267 = vmatprep.mubr.f32.mxu0 0.0
    %2268 = vmatmul.mubr.f32.gmra.mxu0 %v301
    %v2269 = vpop.f32.mrf.mxu0
    %v2270 = vadd.f32 0.0, %v2269
    %v2271 = vpop.f32.mrf.mxu0
    %v2272 = vadd.f32 0.0, %v2271
    %2273 = vdwg.mxu0
    %v2274 = vadd.f32 %v2045, %v2199
    %v2275 = vadd.f32 %v2047, %v2201
    %v2276 = vadd.f32 %v2122, %v2270
    %v2277 = vadd.f32 %v2124, %v2272
    %v2278 = vxor.u32 %v2274, 2147483648
    %v2279 = vxor.u32 %v2275, 2147483648
    %v2280 = vxor.u32 %v2276, 2147483648
    %v2281 = vxor.u32 %v2277, 2147483648
    %v2282 = vmul.f32 %v2278, 1.442695
    %v2283 = vpow.pop %v2282
    %v2284 = vmul.f32 %v2279, 1.442695
    %v2285 = vpow.pop %v2284
    %v2286 = vmul.f32 %v2280, 1.442695
    %v2287 = vpow.pop %v2286
    %v2288 = vmul.f32 %v2281, 1.442695
    %v2289 = vpow.pop %v2288
    %v2290 = vadd.f32 %v2283, 1.0
    %v2291 = vadd.f32 %v2285, 1.0
    %v2292 = vadd.f32 %v2287, 1.0
    %v2293 = vadd.f32 %v2289, 1.0
    %v2294 = vrcp.pop %v2290
    %v2295 = vmul.f32 1.0, %v2294
    %v2296 = vrcp.pop %v2291
    %v2297 = vmul.f32 1.0, %v2296
    %v2298 = vrcp.pop %v2292
    %v2299 = vmul.f32 1.0, %v2298
    %v2300 = vrcp.pop %v2293
    %v2301 = vmul.f32 1.0, %v2300
    %v2302 = vmul.f32 %v2299, 2.0
    %v2303 = vsub.f32 %v2302, 1.0
    %v2304 = vmul.f32 %v2297, 0.0
    %v2305 = vmul.f32 %v2295, %v2303
    %v2306 = vadd.f32 %v2304, %v2305
    %v2307 = vtanh.pop %v2306
    %v2308 = vmul.f32 %v2301, %v2307
    %2309 = vst.msk [vmem:[#allocation3] sm:$0x3] %vm480, %v2308
    %v2311 = vsel %vm299, %v2308, 0
    %2313 = vmatprep.subr.mxu0 0.0
    %2314 = vmatpush1.msra.mxu0 0.0
    %2315 = vmatprep.subr.mxu0 0.0
    %2316 = vmatpush1.msra.mxu0 0.0
    %2317 = vmatprep.subr.mxu0 0.0
    %2318 = vmatpush1.msra.mxu0 0.0
    %2319 = vmatprep.subr.mxu0 0.0
    %2320 = vmatpush1.msra.mxu0 0.0
    %2321 = vmatprep.subr.mxu0 %v1946
    %2322 = vmatpush1.msra.mxu0 %v1945
    %2323 = vmatprep.subr.mxu0 %v1942
    %2324 = vmatpush1.msra.mxu0 %v1941
    %2325 = vmatprep.subr.mxu0 %v1938
    %2326 = vmatpush1.msra.mxu0 %v1937
    %2327 = vmatprep.subr.mxu0 %v1934
    %2328 = vmatpush1.msra.mxu0 %v1933
    %2329 = vmatprep.subr.mxu0 %v1930
    %2330 = vmatpush1.msra.mxu0 %v1929
    %2331 = vmatprep.subr.mxu0 %v1926
    %2332 = vmatpush1.msra.mxu0 %v1925
    %2333 = vmatprep.subr.mxu0 %v1922
    %2334 = vmatpush1.msra.mxu0 %v1921
    %2335 = vmatprep.subr.mxu0 %v1918
    %2336 = vmatpush1.msra.mxu0 %v1917
    %2337 = vmatprep.subr.mxu0 %v1914
    %2338 = vmatpush1.msra.mxu0 %v1913
    %2339 = vmatprep.subr.mxu0 %v1910
    %2340 = vmatpush1.msra.mxu0 %v1909
    %2341 = vmatprep.subr.mxu0 %v1906
    %2342 = vmatpush1.msra.mxu0 %v1905
    %2343 = vmatprep.subr.mxu0 %v1902
    %2344 = vmatpush1.msra.mxu0 %v1901
    %2345 = vmatprep.subr.mxu0 0.0
    %2346 = vmatpush2.msra.mxu0 0.0
    %2347 = vmatprep.subr.mxu0 0.0
    %2348 = vmatpush2.msra.mxu0 0.0
    %2349 = vmatprep.subr.mxu0 0.0
    %2350 = vmatpush2.msra.mxu0 0.0
    %2351 = vmatprep.subr.mxu0 0.0
    %2352 = vmatpush2.msra.mxu0 0.0
    %2353 = vmatprep.subr.mxu0 0.0
    %2354 = vmatpush2.msra.mxu0 0.0
    %2355 = vmatprep.subr.mxu0 0.0
    %2356 = vmatpush2.msra.mxu0 0.0
    %2357 = vmatprep.subr.mxu0 0.0
    %2358 = vmatpush2.msra.mxu0 0.0
    %2359 = vmatprep.subr.mxu0 0.0
    %2360 = vmatpush2.msra.mxu0 0.0
    %2361 = vmatprep.subr.mxu0 0.0
    %2362 = vmatpush2.msra.mxu0 0.0
    %2363 = vmatprep.subr.mxu0 0.0
    %2364 = vmatpush2.msra.mxu0 0.0
    %2365 = vmatprep.subr.mxu0 0.0
    %2366 = vmatpush2.msra.mxu0 0.0
    %2367 = vmatprep.subr.mxu0 0.0
    %2368 = vmatpush2.msra.mxu0 0.0
    %2369 = vmatprep.subr.mxu0 0.0
    %2370 = vmatpush2.msra.mxu0 0.0
    %2371 = vmatprep.subr.mxu0 0.0
    %2372 = vmatpush2.msra.mxu0 0.0
    %2373 = vmatprep.subr.mxu0 0.0
    %2374 = vmatpush2.msra.mxu0 0.0
    %2375 = vmatprep.subr.mxu0 0.0
    %2376 = vmatpush2.msra.mxu0 0.0
    %2377 = vmatprep.mubr.f32.mxu0 0.0
    %2378 = vmatmul.mubr.f32.gmra.mxu0 %v2311
    %v2379 = vpop.f32.mrf.mxu0
    %v2380 = vadd.f32 0.0, %v2379
    %v2381 = vpop.f32.mrf.mxu0
    %v2382 = vadd.f32 0.0, %v2381
    %2383 = vdwg.mxu0
    %2384 = vmatprep.subr.mxu0 0.0
    %2385 = vmatpush1.msra.mxu0 0.0
    %2386 = vmatprep.subr.mxu0 0.0
    %2387 = vmatpush1.msra.mxu0 0.0
    %2388 = vmatprep.subr.mxu0 0.0
    %2389 = vmatpush1.msra.mxu0 0.0
    %2390 = vmatprep.subr.mxu0 0.0
    %2391 = vmatpush1.msra.mxu0 0.0
    %2392 = vmatprep.subr.mxu0 %v1948
    %2393 = vmatpush1.msra.mxu0 %v1947
    %2394 = vmatprep.subr.mxu0 %v1944
    %2395 = vmatpush1.msra.mxu0 %v1943
    %2396 = vmatprep.subr.mxu0 %v1940
    %2397 = vmatpush1.msra.mxu0 %v1939
    %2398 = vmatprep.subr.mxu0 %v1936
    %2399 = vmatpush1.msra.mxu0 %v1935
    %2400 = vmatprep.subr.mxu0 %v1932
    %2401 = vmatpush1.msra.mxu0 %v1931
    %2402 = vmatprep.subr.mxu0 %v1928
    %2403 = vmatpush1.msra.mxu0 %v1927
    %2404 = vmatprep.subr.mxu0 %v1924
    %2405 = vmatpush1.msra.mxu0 %v1923
    %2406 = vmatprep.subr.mxu0 %v1920
    %2407 = vmatpush1.msra.mxu0 %v1919
    %2408 = vmatprep.subr.mxu0 %v1916
    %2409 = vmatpush1.msra.mxu0 %v1915
    %2410 = vmatprep.subr.mxu0 %v1912
    %2411 = vmatpush1.msra.mxu0 %v1911
    %2412 = vmatprep.subr.mxu0 %v1908
    %2413 = vmatpush1.msra.mxu0 %v1907
    %2414 = vmatprep.subr.mxu0 %v1904
    %2415 = vmatpush1.msra.mxu0 %v1903
    %2416 = vmatprep.subr.mxu0 0.0
    %2417 = vmatpush2.msra.mxu0 0.0
    %2418 = vmatprep.subr.mxu0 0.0
    %2419 = vmatpush2.msra.mxu0 0.0
    %2420 = vmatprep.subr.mxu0 0.0
    %2421 = vmatpush2.msra.mxu0 0.0
    %2422 = vmatprep.subr.mxu0 0.0
    %2423 = vmatpush2.msra.mxu0 0.0
    %2424 = vmatprep.subr.mxu0 0.0
    %2425 = vmatpush2.msra.mxu0 0.0
    %2426 = vmatprep.subr.mxu0 0.0
    %2427 = vmatpush2.msra.mxu0 0.0
    %2428 = vmatprep.subr.mxu0 0.0
    %2429 = vmatpush2.msra.mxu0 0.0
    %2430 = vmatprep.subr.mxu0 0.0
    %2431 = vmatpush2.msra.mxu0 0.0
    %2432 = vmatprep.subr.mxu0 0.0
    %2433 = vmatpush2.msra.mxu0 0.0
    %2434 = vmatprep.subr.mxu0 0.0
    %2435 = vmatpush2.msra.mxu0 0.0
    %2436 = vmatprep.subr.mxu0 0.0
    %2437 = vmatpush2.msra.mxu0 0.0
    %2438 = vmatprep.subr.mxu0 0.0
    %2439 = vmatpush2.msra.mxu0 0.0
    %2440 = vmatprep.subr.mxu0 0.0
    %2441 = vmatpush2.msra.mxu0 0.0
    %2442 = vmatprep.subr.mxu0 0.0
    %2443 = vmatpush2.msra.mxu0 0.0
    %2444 = vmatprep.subr.mxu0 0.0
    %2445 = vmatpush2.msra.mxu0 0.0
    %2446 = vmatprep.subr.mxu0 0.0
    %2447 = vmatpush2.msra.mxu0 0.0
    %2448 = vmatprep.mubr.f32.mxu0 0.0
    %2449 = vmatmul.mubr.f32.gmra.mxu0 %v2311
    %v2450 = vpop.f32.mrf.mxu0
    %v2451 = vadd.f32 0.0, %v2450
    %v2452 = vpop.f32.mrf.mxu0
    %v2453 = vadd.f32 0.0, %v2452
    %2454 = vdwg.mxu0
    %v2459 = vrot.slane %v2380, 6
    %v2460 = vrot.slane %v2382, 6
    %v2461 = vrot.slane %v2451, 6
    %v2462 = vrot.slane %v2453, 6
    %v2467 = vadd.f32 %v2045, %v2459
    %v2468 = vadd.f32 %v2047, %v2460
    %v2469 = vadd.f32 %v2122, %v2461
    %v2470 = vadd.f32 %v2124, %v2462
    %v2471 = vxor.u32 %v2467, 2147483648
    %v2472 = vxor.u32 %v2468, 2147483648
    %v2473 = vxor.u32 %v2469, 2147483648
    %v2474 = vxor.u32 %v2470, 2147483648
    %v2475 = vmul.f32 %v2471, 1.442695
    %v2476 = vpow.pop %v2475
    %v2477 = vmul.f32 %v2472, 1.442695
    %v2478 = vpow.pop %v2477
    %v2479 = vmul.f32 %v2473, 1.442695
    %v2480 = vpow.pop %v2479
    %v2481 = vmul.f32 %v2474, 1.442695
    %v2482 = vpow.pop %v2481
    %v2483 = vadd.f32 %v2476, 1.0
    %v2484 = vadd.f32 %v2478, 1.0
    %v2485 = vadd.f32 %v2480, 1.0
    %v2486 = vadd.f32 %v2482, 1.0
    %v2487 = vrcp.pop %v2483
    %v2488 = vmul.f32 1.0, %v2487
    %v2489 = vrcp.pop %v2484
    %v2490 = vmul.f32 1.0, %v2489
    %v2491 = vrcp.pop %v2485
    %v2492 = vmul.f32 1.0, %v2491
    %v2493 = vrcp.pop %v2486
    %v2494 = vmul.f32 1.0, %v2493
    %v2495 = vmul.f32 %v2492, 2.0
    %v2496 = vsub.f32 %v2495, 1.0
    %v2498 = vrot.slane %v2306, 6
    %v2500 = vmul.f32 %v2490, %v2498
    %v2501 = vmul.f32 %v2488, %v2496
    %v2502 = vadd.f32 %v2500, %v2501
    %v2503 = vtanh.pop %v2502
    %v2504 = vmul.f32 %v2494, %v2503
    %2505 = vst.msk [vmem:[#allocation3] sm:$0xc] %vm677, %v2504
    %v2507 = vrot.slane %v2504, 2
    %v2508 = vsel %vm299, %v2507, 0
    %2510 = vmatprep.subr.mxu0 0.0
    %2511 = vmatpush1.msra.mxu0 0.0
    %2512 = vmatprep.subr.mxu0 0.0
    %2513 = vmatpush1.msra.mxu0 0.0
    %2514 = vmatprep.subr.mxu0 0.0
    %2515 = vmatpush1.msra.mxu0 0.0
    %2516 = vmatprep.subr.mxu0 0.0
    %2517 = vmatpush1.msra.mxu0 0.0
    %2518 = vmatprep.subr.mxu0 %v1946
    %2519 = vmatpush1.msra.mxu0 %v1945
    %2520 = vmatprep.subr.mxu0 %v1942
    %2521 = vmatpush1.msra.mxu0 %v1941
    %2522 = vmatprep.subr.mxu0 %v1938
    %2523 = vmatpush1.msra.mxu0 %v1937
    %2524 = vmatprep.subr.mxu0 %v1934
    %2525 = vmatpush1.msra.mxu0 %v1933
    %2526 = vmatprep.subr.mxu0 %v1930
    %2527 = vmatpush1.msra.mxu0 %v1929
    %2528 = vmatprep.subr.mxu0 %v1926
    %2529 = vmatpush1.msra.mxu0 %v1925
    %2530 = vmatprep.subr.mxu0 %v1922
    %2531 = vmatpush1.msra.mxu0 %v1921
    %2532 = vmatprep.subr.mxu0 %v1918
    %2533 = vmatpush1.msra.mxu0 %v1917
    %2534 = vmatprep.subr.mxu0 %v1914
    %2535 = vmatpush1.msra.mxu0 %v1913
    %2536 = vmatprep.subr.mxu0 %v1910
    %2537 = vmatpush1.msra.mxu0 %v1909
    %2538 = vmatprep.subr.mxu0 %v1906
    %2539 = vmatpush1.msra.mxu0 %v1905
    %2540 = vmatprep.subr.mxu0 %v1902
    %2541 = vmatpush1.msra.mxu0 %v1901
    %2542 = vmatprep.subr.mxu0 0.0
    %2543 = vmatpush2.msra.mxu0 0.0
    %2544 = vmatprep.subr.mxu0 0.0
    %2545 = vmatpush2.msra.mxu0 0.0
    %2546 = vmatprep.subr.mxu0 0.0
    %2547 = vmatpush2.msra.mxu0 0.0
    %2548 = vmatprep.subr.mxu0 0.0
    %2549 = vmatpush2.msra.mxu0 0.0
    %2550 = vmatprep.subr.mxu0 0.0
    %2551 = vmatpush2.msra.mxu0 0.0
    %2552 = vmatprep.subr.mxu0 0.0
    %2553 = vmatpush2.msra.mxu0 0.0
    %2554 = vmatprep.subr.mxu0 0.0
    %2555 = vmatpush2.msra.mxu0 0.0
    %2556 = vmatprep.subr.mxu0 0.0
    %2557 = vmatpush2.msra.mxu0 0.0
    %2558 = vmatprep.subr.mxu0 0.0
    %2559 = vmatpush2.msra.mxu0 0.0
    %2560 = vmatprep.subr.mxu0 0.0
    %2561 = vmatpush2.msra.mxu0 0.0
    %2562 = vmatprep.subr.mxu0 0.0
    %2563 = vmatpush2.msra.mxu0 0.0
    %2564 = vmatprep.subr.mxu0 0.0
    %2565 = vmatpush2.msra.mxu0 0.0
    %2566 = vmatprep.subr.mxu0 0.0
    %2567 = vmatpush2.msra.mxu0 0.0
    %2568 = vmatprep.subr.mxu0 0.0
    %2569 = vmatpush2.msra.mxu0 0.0
    %2570 = vmatprep.subr.mxu0 0.0
    %2571 = vmatpush2.msra.mxu0 0.0
    %2572 = vmatprep.subr.mxu0 0.0
    %2573 = vmatpush2.msra.mxu0 0.0
    %2574 = vmatprep.mubr.f32.mxu0 0.0
    %2575 = vmatmul.mubr.f32.gmra.mxu0 %v2508
    %v2576 = vpop.f32.mrf.mxu0
    %v2577 = vadd.f32 0.0, %v2576
    %v2578 = vpop.f32.mrf.mxu0
    %v2579 = vadd.f32 0.0, %v2578
    %2580 = vdwg.mxu0
    %2581 = vmatprep.subr.mxu0 0.0
    %2582 = vmatpush1.msra.mxu0 0.0
    %2583 = vmatprep.subr.mxu0 0.0
    %2584 = vmatpush1.msra.mxu0 0.0
    %2585 = vmatprep.subr.mxu0 0.0
    %2586 = vmatpush1.msra.mxu0 0.0
    %2587 = vmatprep.subr.mxu0 0.0
    %2588 = vmatpush1.msra.mxu0 0.0
    %2589 = vmatprep.subr.mxu0 %v1948
    %2590 = vmatpush1.msra.mxu0 %v1947
    %2591 = vmatprep.subr.mxu0 %v1944
    %2592 = vmatpush1.msra.mxu0 %v1943
    %2593 = vmatprep.subr.mxu0 %v1940
    %2594 = vmatpush1.msra.mxu0 %v1939
    %2595 = vmatprep.subr.mxu0 %v1936
    %2596 = vmatpush1.msra.mxu0 %v1935
    %2597 = vmatprep.subr.mxu0 %v1932
    %2598 = vmatpush1.msra.mxu0 %v1931
    %2599 = vmatprep.subr.mxu0 %v1928
    %2600 = vmatpush1.msra.mxu0 %v1927
    %2601 = vmatprep.subr.mxu0 %v1924
    %2602 = vmatpush1.msra.mxu0 %v1923
    %2603 = vmatprep.subr.mxu0 %v1920
    %2604 = vmatpush1.msra.mxu0 %v1919
    %2605 = vmatprep.subr.mxu0 %v1916
    %2606 = vmatpush1.msra.mxu0 %v1915
    %2607 = vmatprep.subr.mxu0 %v1912
    %2608 = vmatpush1.msra.mxu0 %v1911
    %2609 = vmatprep.subr.mxu0 %v1908
    %2610 = vmatpush1.msra.mxu0 %v1907
    %2611 = vmatprep.subr.mxu0 %v1904
    %2612 = vmatpush1.msra.mxu0 %v1903
    %2613 = vmatprep.subr.mxu0 0.0
    %2614 = vmatpush2.msra.mxu0 0.0
    %2615 = vmatprep.subr.mxu0 0.0
    %2616 = vmatpush2.msra.mxu0 0.0
    %2617 = vmatprep.subr.mxu0 0.0
    %2618 = vmatpush2.msra.mxu0 0.0
    %2619 = vmatprep.subr.mxu0 0.0
    %2620 = vmatpush2.msra.mxu0 0.0
    %2621 = vmatprep.subr.mxu0 0.0
    %2622 = vmatpush2.msra.mxu0 0.0
    %2623 = vmatprep.subr.mxu0 0.0
    %2624 = vmatpush2.msra.mxu0 0.0
    %2625 = vmatprep.subr.mxu0 0.0
    %2626 = vmatpush2.msra.mxu0 0.0
    %2627 = vmatprep.subr.mxu0 0.0
    %2628 = vmatpush2.msra.mxu0 0.0
    %2629 = vmatprep.subr.mxu0 0.0
    %2630 = vmatpush2.msra.mxu0 0.0
    %2631 = vmatprep.subr.mxu0 0.0
    %2632 = vmatpush2.msra.mxu0 0.0
    %2633 = vmatprep.subr.mxu0 0.0
    %2634 = vmatpush2.msra.mxu0 0.0
    %2635 = vmatprep.subr.mxu0 0.0
    %2636 = vmatpush2.msra.mxu0 0.0
    %2637 = vmatprep.subr.mxu0 0.0
    %2638 = vmatpush2.msra.mxu0 0.0
    %2639 = vmatprep.subr.mxu0 0.0
    %2640 = vmatpush2.msra.mxu0 0.0
    %2641 = vmatprep.subr.mxu0 0.0
    %2642 = vmatpush2.msra.mxu0 0.0
    %2643 = vmatprep.subr.mxu0 0.0
    %2644 = vmatpush2.msra.mxu0 0.0
    %2645 = vmatprep.mubr.f32.mxu0 0.0
    %2646 = vmatmul.mubr.f32.gmra.mxu0 %v2508
    %v2647 = vpop.f32.mrf.mxu0
    %v2648 = vadd.f32 0.0, %v2647
    %v2649 = vpop.f32.mrf.mxu0
    %v2650 = vadd.f32 0.0, %v2649
    %2651 = vdwg.mxu0
    %v2656 = vrot.slane %v2577, 4
    %v2657 = vrot.slane %v2579, 4
    %v2658 = vrot.slane %v2648, 4
    %v2659 = vrot.slane %v2650, 4
    %v2664 = vadd.f32 %v2045, %v2656
    %v2665 = vadd.f32 %v2047, %v2657
    %v2666 = vadd.f32 %v2122, %v2658
    %v2667 = vadd.f32 %v2124, %v2659
    %v2668 = vxor.u32 %v2664, 2147483648
    %v2669 = vxor.u32 %v2665, 2147483648
    %v2670 = vxor.u32 %v2666, 2147483648
    %v2671 = vxor.u32 %v2667, 2147483648
    %v2672 = vmul.f32 %v2668, 1.442695
    %v2673 = vpow.pop %v2672
    %v2674 = vmul.f32 %v2669, 1.442695
    %v2675 = vpow.pop %v2674
    %v2676 = vmul.f32 %v2670, 1.442695
    %v2677 = vpow.pop %v2676
    %v2678 = vmul.f32 %v2671, 1.442695
    %v2679 = vpow.pop %v2678
    %v2680 = vadd.f32 %v2673, 1.0
    %v2681 = vadd.f32 %v2675, 1.0
    %v2682 = vadd.f32 %v2677, 1.0
    %v2683 = vadd.f32 %v2679, 1.0
    %v2684 = vrcp.pop %v2680
    %v2685 = vmul.f32 1.0, %v2684
    %v2686 = vrcp.pop %v2681
    %v2687 = vmul.f32 1.0, %v2686
    %v2688 = vrcp.pop %v2682
    %v2689 = vmul.f32 1.0, %v2688
    %v2690 = vrcp.pop %v2683
    %v2691 = vmul.f32 1.0, %v2690
    %v2692 = vmul.f32 %v2689, 2.0
    %v2693 = vsub.f32 %v2692, 1.0
    %v2695 = vrot.slane %v2502, 6
    %v2697 = vmul.f32 %v2687, %v2695
    %v2698 = vmul.f32 %v2685, %v2693
    %v2699 = vadd.f32 %v2697, %v2698
    %v2700 = vtanh.pop %v2699
    %v2701 = vmul.f32 %v2691, %v2700
    %2702 = vst.msk [vmem:[#allocation3] sm:$0x30] %vm875, %v2701
    %v2704 = vrot.slane %v2701, 4
    %v2705 = vsel %vm299, %v2704, 0
    %2707 = vmatprep.subr.mxu0 0.0
    %2708 = vmatpush1.msra.mxu0 0.0
    %2709 = vmatprep.subr.mxu0 0.0
    %2710 = vmatpush1.msra.mxu0 0.0
    %2711 = vmatprep.subr.mxu0 0.0
    %2712 = vmatpush1.msra.mxu0 0.0
    %2713 = vmatprep.subr.mxu0 0.0
    %2714 = vmatpush1.msra.mxu0 0.0
    %2715 = vmatprep.subr.mxu0 %v1946
    %2716 = vmatpush1.msra.mxu0 %v1945
    %2717 = vmatprep.subr.mxu0 %v1942
    %2718 = vmatpush1.msra.mxu0 %v1941
    %2719 = vmatprep.subr.mxu0 %v1938
    %2720 = vmatpush1.msra.mxu0 %v1937
    %2721 = vmatprep.subr.mxu0 %v1934
    %2722 = vmatpush1.msra.mxu0 %v1933
    %2723 = vmatprep.subr.mxu0 %v1930
    %2724 = vmatpush1.msra.mxu0 %v1929
    %2725 = vmatprep.subr.mxu0 %v1926
    %2726 = vmatpush1.msra.mxu0 %v1925
    %2727 = vmatprep.subr.mxu0 %v1922
    %2728 = vmatpush1.msra.mxu0 %v1921
    %2729 = vmatprep.subr.mxu0 %v1918
    %2730 = vmatpush1.msra.mxu0 %v1917
    %2731 = vmatprep.subr.mxu0 %v1914
    %2732 = vmatpush1.msra.mxu0 %v1913
    %2733 = vmatprep.subr.mxu0 %v1910
    %2734 = vmatpush1.msra.mxu0 %v1909
    %2735 = vmatprep.subr.mxu0 %v1906
    %2736 = vmatpush1.msra.mxu0 %v1905
    %2737 = vmatprep.subr.mxu0 %v1902
    %2738 = vmatpush1.msra.mxu0 %v1901
    %2739 = vmatprep.subr.mxu0 0.0
    %2740 = vmatpush2.msra.mxu0 0.0
    %2741 = vmatprep.subr.mxu0 0.0
    %2742 = vmatpush2.msra.mxu0 0.0
    %2743 = vmatprep.subr.mxu0 0.0
    %2744 = vmatpush2.msra.mxu0 0.0
    %2745 = vmatprep.subr.mxu0 0.0
    %2746 = vmatpush2.msra.mxu0 0.0
    %2747 = vmatprep.subr.mxu0 0.0
    %2748 = vmatpush2.msra.mxu0 0.0
    %2749 = vmatprep.subr.mxu0 0.0
    %2750 = vmatpush2.msra.mxu0 0.0
    %2751 = vmatprep.subr.mxu0 0.0
    %2752 = vmatpush2.msra.mxu0 0.0
    %2753 = vmatprep.subr.mxu0 0.0
    %2754 = vmatpush2.msra.mxu0 0.0
    %2755 = vmatprep.subr.mxu0 0.0
    %2756 = vmatpush2.msra.mxu0 0.0
    %2757 = vmatprep.subr.mxu0 0.0
    %2758 = vmatpush2.msra.mxu0 0.0
    %2759 = vmatprep.subr.mxu0 0.0
    %2760 = vmatpush2.msra.mxu0 0.0
    %2761 = vmatprep.subr.mxu0 0.0
    %2762 = vmatpush2.msra.mxu0 0.0
    %2763 = vmatprep.subr.mxu0 0.0
    %2764 = vmatpush2.msra.mxu0 0.0
    %2765 = vmatprep.subr.mxu0 0.0
    %2766 = vmatpush2.msra.mxu0 0.0
    %2767 = vmatprep.subr.mxu0 0.0
    %2768 = vmatpush2.msra.mxu0 0.0
    %2769 = vmatprep.subr.mxu0 0.0
    %2770 = vmatpush2.msra.mxu0 0.0
    %2771 = vmatprep.mubr.f32.mxu0 0.0
    %2772 = vmatmul.mubr.f32.gmra.mxu0 %v2705
    %v2773 = vpop.f32.mrf.mxu0
    %v2774 = vadd.f32 0.0, %v2773
    %v2775 = vpop.f32.mrf.mxu0
    %v2776 = vadd.f32 0.0, %v2775
    %2777 = vdwg.mxu0
    %2778 = vmatprep.subr.mxu0 0.0
    %2779 = vmatpush1.msra.mxu0 0.0
    %2780 = vmatprep.subr.mxu0 0.0
    %2781 = vmatpush1.msra.mxu0 0.0
    %2782 = vmatprep.subr.mxu0 0.0
    %2783 = vmatpush1.msra.mxu0 0.0
    %2784 = vmatprep.subr.mxu0 0.0
    %2785 = vmatpush1.msra.mxu0 0.0
    %2786 = vmatprep.subr.mxu0 %v1948
    %2787 = vmatpush1.msra.mxu0 %v1947
    %2788 = vmatprep.subr.mxu0 %v1944
    %2789 = vmatpush1.msra.mxu0 %v1943
    %2790 = vmatprep.subr.mxu0 %v1940
    %2791 = vmatpush1.msra.mxu0 %v1939
    %2792 = vmatprep.subr.mxu0 %v1936
    %2793 = vmatpush1.msra.mxu0 %v1935
    %2794 = vmatprep.subr.mxu0 %v1932
    %2795 = vmatpush1.msra.mxu0 %v1931
    %2796 = vmatprep.subr.mxu0 %v1928
    %2797 = vmatpush1.msra.mxu0 %v1927
    %2798 = vmatprep.subr.mxu0 %v1924
    %2799 = vmatpush1.msra.mxu0 %v1923
    %2800 = vmatprep.subr.mxu0 %v1920
    %2801 = vmatpush1.msra.mxu0 %v1919
    %2802 = vmatprep.subr.mxu0 %v1916
    %2803 = vmatpush1.msra.mxu0 %v1915
    %2804 = vmatprep.subr.mxu0 %v1912
    %2805 = vmatpush1.msra.mxu0 %v1911
    %2806 = vmatprep.subr.mxu0 %v1908
    %2807 = vmatpush1.msra.mxu0 %v1907
    %2808 = vmatprep.subr.mxu0 %v1904
    %2809 = vmatpush1.msra.mxu0 %v1903
    %2810 = vmatprep.subr.mxu0 0.0
    %2811 = vmatpush2.msra.mxu0 0.0
    %2812 = vmatprep.subr.mxu0 0.0
    %2813 = vmatpush2.msra.mxu0 0.0
    %2814 = vmatprep.subr.mxu0 0.0
    %2815 = vmatpush2.msra.mxu0 0.0
    %2816 = vmatprep.subr.mxu0 0.0
    %2817 = vmatpush2.msra.mxu0 0.0
    %2818 = vmatprep.subr.mxu0 0.0
    %2819 = vmatpush2.msra.mxu0 0.0
    %2820 = vmatprep.subr.mxu0 0.0
    %2821 = vmatpush2.msra.mxu0 0.0
    %2822 = vmatprep.subr.mxu0 0.0
    %2823 = vmatpush2.msra.mxu0 0.0
    %2824 = vmatprep.subr.mxu0 0.0
    %2825 = vmatpush2.msra.mxu0 0.0
    %2826 = vmatprep.subr.mxu0 0.0
    %2827 = vmatpush2.msra.mxu0 0.0
    %2828 = vmatprep.subr.mxu0 0.0
    %2829 = vmatpush2.msra.mxu0 0.0
    %2830 = vmatprep.subr.mxu0 0.0
    %2831 = vmatpush2.msra.mxu0 0.0
    %2832 = vmatprep.subr.mxu0 0.0
    %2833 = vmatpush2.msra.mxu0 0.0
    %2834 = vmatprep.subr.mxu0 0.0
    %2835 = vmatpush2.msra.mxu0 0.0
    %2836 = vmatprep.subr.mxu0 0.0
    %2837 = vmatpush2.msra.mxu0 0.0
    %2838 = vmatprep.subr.mxu0 0.0
    %2839 = vmatpush2.msra.mxu0 0.0
    %2840 = vmatprep.subr.mxu0 0.0
    %2841 = vmatpush2.msra.mxu0 0.0
    %2842 = vmatprep.mubr.f32.mxu0 0.0
    %2843 = vmatmul.mubr.f32.gmra.mxu0 %v2705
    %v2844 = vpop.f32.mrf.mxu0
    %v2845 = vadd.f32 0.0, %v2844
    %v2846 = vpop.f32.mrf.mxu0
    %v2847 = vadd.f32 0.0, %v2846
    %2848 = vdwg.mxu0
    %v2853 = vrot.slane %v2774, 2
    %v2854 = vrot.slane %v2776, 2
    %v2855 = vrot.slane %v2845, 2
    %v2856 = vrot.slane %v2847, 2
    %v2861 = vadd.f32 %v2045, %v2853
    %v2862 = vadd.f32 %v2047, %v2854
    %v2863 = vadd.f32 %v2122, %v2855
    %v2864 = vadd.f32 %v2124, %v2856
    %v2865 = vxor.u32 %v2861, 2147483648
    %v2866 = vxor.u32 %v2862, 2147483648
    %v2867 = vxor.u32 %v2863, 2147483648
    %v2868 = vxor.u32 %v2864, 2147483648
    %v2869 = vmul.f32 %v2865, 1.442695
    %v2870 = vpow.pop %v2869
    %v2871 = vmul.f32 %v2866, 1.442695
    %v2872 = vpow.pop %v2871
    %v2873 = vmul.f32 %v2867, 1.442695
    %v2874 = vpow.pop %v2873
    %v2875 = vmul.f32 %v2868, 1.442695
    %v2876 = vpow.pop %v2875
    %v2877 = vadd.f32 %v2870, 1.0
    %v2878 = vadd.f32 %v2872, 1.0
    %v2879 = vadd.f32 %v2874, 1.0
    %v2880 = vadd.f32 %v2876, 1.0
    %v2881 = vrcp.pop %v2877
    %v2882 = vmul.f32 1.0, %v2881
    %v2883 = vrcp.pop %v2878
    %v2884 = vmul.f32 1.0, %v2883
    %v2885 = vrcp.pop %v2879
    %v2886 = vmul.f32 1.0, %v2885
    %v2887 = vrcp.pop %v2880
    %v2888 = vmul.f32 1.0, %v2887
    %v2889 = vmul.f32 %v2886, 2.0
    %v2890 = vsub.f32 %v2889, 1.0
    %v2892 = vrot.slane %v2699, 6
    %v2894 = vmul.f32 %v2884, %v2892
    %v2895 = vmul.f32 %v2882, %v2890
    %v2896 = vadd.f32 %v2894, %v2895
    %v2897 = vtanh.pop %v2896
    %v2898 = vmul.f32 %v2888, %v2897
    %2899 = vst.msk [vmem:[#allocation3] sm:$0xc0] %vm1073, %v2898
    %v2901 = vrot.slane %v2898, 6
    %v2902 = vsel %vm299, %v2901, 0
    %2904 = vmatprep.subr.mxu0 0.0
    %2905 = vmatpush1.msra.mxu0 0.0
    %2906 = vmatprep.subr.mxu0 0.0
    %2907 = vmatpush1.msra.mxu0 0.0
    %2908 = vmatprep.subr.mxu0 0.0
    %2909 = vmatpush1.msra.mxu0 0.0
    %2910 = vmatprep.subr.mxu0 0.0
    %2911 = vmatpush1.msra.mxu0 0.0
    %2912 = vmatprep.subr.mxu0 %v1946
    %2913 = vmatpush1.msra.mxu0 %v1945
    %2914 = vmatprep.subr.mxu0 %v1942
    %2915 = vmatpush1.msra.mxu0 %v1941
    %2916 = vmatprep.subr.mxu0 %v1938
    %2917 = vmatpush1.msra.mxu0 %v1937
    %2918 = vmatprep.subr.mxu0 %v1934
    %2919 = vmatpush1.msra.mxu0 %v1933
    %2920 = vmatprep.subr.mxu0 %v1930
    %2921 = vmatpush1.msra.mxu0 %v1929
    %2922 = vmatprep.subr.mxu0 %v1926
    %2923 = vmatpush1.msra.mxu0 %v1925
    %2924 = vmatprep.subr.mxu0 %v1922
    %2925 = vmatpush1.msra.mxu0 %v1921
    %2926 = vmatprep.subr.mxu0 %v1918
    %2927 = vmatpush1.msra.mxu0 %v1917
    %2928 = vmatprep.subr.mxu0 %v1914
    %2929 = vmatpush1.msra.mxu0 %v1913
    %2930 = vmatprep.subr.mxu0 %v1910
    %2931 = vmatpush1.msra.mxu0 %v1909
    %2932 = vmatprep.subr.mxu0 %v1906
    %2933 = vmatpush1.msra.mxu0 %v1905
    %2934 = vmatprep.subr.mxu0 %v1902
    %2935 = vmatpush1.msra.mxu0 %v1901
    %2936 = vmatprep.subr.mxu0 0.0
    %2937 = vmatpush2.msra.mxu0 0.0
    %2938 = vmatprep.subr.mxu0 0.0
    %2939 = vmatpush2.msra.mxu0 0.0
    %2940 = vmatprep.subr.mxu0 0.0
    %2941 = vmatpush2.msra.mxu0 0.0
    %2942 = vmatprep.subr.mxu0 0.0
    %2943 = vmatpush2.msra.mxu0 0.0
    %2944 = vmatprep.subr.mxu0 0.0
    %2945 = vmatpush2.msra.mxu0 0.0
    %2946 = vmatprep.subr.mxu0 0.0
    %2947 = vmatpush2.msra.mxu0 0.0
    %2948 = vmatprep.subr.mxu0 0.0
    %2949 = vmatpush2.msra.mxu0 0.0
    %2950 = vmatprep.subr.mxu0 0.0
    %2951 = vmatpush2.msra.mxu0 0.0
    %2952 = vmatprep.subr.mxu0 0.0
    %2953 = vmatpush2.msra.mxu0 0.0
    %2954 = vmatprep.subr.mxu0 0.0
    %2955 = vmatpush2.msra.mxu0 0.0
    %2956 = vmatprep.subr.mxu0 0.0
    %2957 = vmatpush2.msra.mxu0 0.0
    %2958 = vmatprep.subr.mxu0 0.0
    %2959 = vmatpush2.msra.mxu0 0.0
    %2960 = vmatprep.subr.mxu0 0.0
    %2961 = vmatpush2.msra.mxu0 0.0
    %2962 = vmatprep.subr.mxu0 0.0
    %2963 = vmatpush2.msra.mxu0 0.0
    %2964 = vmatprep.subr.mxu0 0.0
    %2965 = vmatpush2.msra.mxu0 0.0
    %2966 = vmatprep.subr.mxu0 0.0
    %2967 = vmatpush2.msra.mxu0 0.0
    %2968 = vmatprep.mubr.f32.mxu0 0.0
    %2969 = vmatmul.mubr.f32.gmra.mxu0 %v2902
    %v2970 = vpop.f32.mrf.mxu0
    %v2971 = vadd.f32 0.0, %v2970
    %v2972 = vpop.f32.mrf.mxu0
    %v2973 = vadd.f32 0.0, %v2972
    %2974 = vdwg.mxu0
    %2975 = vmatprep.subr.mxu0 0.0
    %2976 = vmatpush1.msra.mxu0 0.0
    %2977 = vmatprep.subr.mxu0 0.0
    %2978 = vmatpush1.msra.mxu0 0.0
    %2979 = vmatprep.subr.mxu0 0.0
    %2980 = vmatpush1.msra.mxu0 0.0
    %2981 = vmatprep.subr.mxu0 0.0
    %2982 = vmatpush1.msra.mxu0 0.0
    %2983 = vmatprep.subr.mxu0 %v1948
    %2984 = vmatpush1.msra.mxu0 %v1947
    %2985 = vmatprep.subr.mxu0 %v1944
    %2986 = vmatpush1.msra.mxu0 %v1943
    %2987 = vmatprep.subr.mxu0 %v1940
    %2988 = vmatpush1.msra.mxu0 %v1939
    %2989 = vmatprep.subr.mxu0 %v1936
    %2990 = vmatpush1.msra.mxu0 %v1935
    %2991 = vmatprep.subr.mxu0 %v1932
    %2992 = vmatpush1.msra.mxu0 %v1931
    %2993 = vmatprep.subr.mxu0 %v1928
    %2994 = vmatpush1.msra.mxu0 %v1927
    %2995 = vmatprep.subr.mxu0 %v1924
    %2996 = vmatpush1.msra.mxu0 %v1923
    %2997 = vmatprep.subr.mxu0 %v1920
    %2998 = vmatpush1.msra.mxu0 %v1919
    %2999 = vmatprep.subr.mxu0 %v1916
    %3000 = vmatpush1.msra.mxu0 %v1915
    %3001 = vmatprep.subr.mxu0 %v1912
    %3002 = vmatpush1.msra.mxu0 %v1911
    %3003 = vmatprep.subr.mxu0 %v1908
    %3004 = vmatpush1.msra.mxu0 %v1907
    %3005 = vmatprep.subr.mxu0 %v1904
    %3006 = vmatpush1.msra.mxu0 %v1903
    %3007 = vmatprep.subr.mxu0 0.0
    %3008 = vmatpush2.msra.mxu0 0.0
    %3009 = vmatprep.subr.mxu0 0.0
    %3010 = vmatpush2.msra.mxu0 0.0
    %3011 = vmatprep.subr.mxu0 0.0
    %3012 = vmatpush2.msra.mxu0 0.0
    %3013 = vmatprep.subr.mxu0 0.0
    %3014 = vmatpush2.msra.mxu0 0.0
    %3015 = vmatprep.subr.mxu0 0.0
    %3016 = vmatpush2.msra.mxu0 0.0
    %3017 = vmatprep.subr.mxu0 0.0
    %3018 = vmatpush2.msra.mxu0 0.0
    %3019 = vmatprep.subr.mxu0 0.0
    %3020 = vmatpush2.msra.mxu0 0.0
    %3021 = vmatprep.subr.mxu0 0.0
    %3022 = vmatpush2.msra.mxu0 0.0
    %3023 = vmatprep.subr.mxu0 0.0
    %3024 = vmatpush2.msra.mxu0 0.0
    %3025 = vmatprep.subr.mxu0 0.0
    %3026 = vmatpush2.msra.mxu0 0.0
    %3027 = vmatprep.subr.mxu0 0.0
    %3028 = vmatpush2.msra.mxu0 0.0
    %3029 = vmatprep.subr.mxu0 0.0
    %3030 = vmatpush2.msra.mxu0 0.0
    %3031 = vmatprep.subr.mxu0 0.0
    %3032 = vmatpush2.msra.mxu0 0.0
    %3033 = vmatprep.subr.mxu0 0.0
    %3034 = vmatpush2.msra.mxu0 0.0
    %3035 = vmatprep.subr.mxu0 0.0
    %3036 = vmatpush2.msra.mxu0 0.0
    %3037 = vmatprep.subr.mxu0 0.0
    %3038 = vmatpush2.msra.mxu0 0.0
    %3039 = vmatprep.mubr.f32.mxu0 0.0
    %3040 = vmatmul.mubr.f32.gmra.mxu0 %v2902
    %v3041 = vpop.f32.mrf.mxu0
    %v3042 = vadd.f32 0.0, %v3041
    %v3043 = vpop.f32.mrf.mxu0
    %v3044 = vadd.f32 0.0, %v3043
    %3045 = vdwg.mxu0
    %v3046 = vadd.f32 %v2051, %v2971
    %v3047 = vadd.f32 %v2053, %v2973
    %v3048 = vadd.f32 %v2128, %v3042
    %v3049 = vadd.f32 %v2130, %v3044
    %v3050 = vxor.u32 %v3046, 2147483648
    %v3051 = vxor.u32 %v3047, 2147483648
    %v3052 = vxor.u32 %v3048, 2147483648
    %v3053 = vxor.u32 %v3049, 2147483648
    %v3054 = vmul.f32 %v3050, 1.442695
    %v3055 = vpow.pop %v3054
    %v3056 = vmul.f32 %v3051, 1.442695
    %v3057 = vpow.pop %v3056
    %v3058 = vmul.f32 %v3052, 1.442695
    %v3059 = vpow.pop %v3058
    %v3060 = vmul.f32 %v3053, 1.442695
    %v3061 = vpow.pop %v3060
    %v3062 = vadd.f32 %v3055, 1.0
    %v3063 = vadd.f32 %v3057, 1.0
    %v3064 = vadd.f32 %v3059, 1.0
    %v3065 = vadd.f32 %v3061, 1.0
    %v3066 = vrcp.pop %v3062
    %v3067 = vmul.f32 1.0, %v3066
    %v3068 = vrcp.pop %v3063
    %v3069 = vmul.f32 1.0, %v3068
    %v3070 = vrcp.pop %v3064
    %v3071 = vmul.f32 1.0, %v3070
    %v3072 = vrcp.pop %v3065
    %v3073 = vmul.f32 1.0, %v3072
    %v3074 = vmul.f32 %v3071, 2.0
    %v3075 = vsub.f32 %v3074, 1.0
    %v3077 = vrot.slane %v2896, 6
    %v3079 = vmul.f32 %v3069, %v3077
    %v3080 = vmul.f32 %v3067, %v3075
    %v3081 = vadd.f32 %v3079, %v3080
    %v3082 = vtanh.pop %v3081
    %v3083 = vmul.f32 %v3073, %v3082
    %3084 = vst.msk [vmem:[#allocation3 + $0x8] sm:$0x3] %vm480, %v3083
    %v3086 = vsel %vm299, %v3083, 0
    %3088 = vmatprep.subr.mxu0 0.0
    %3089 = vmatpush1.msra.mxu0 0.0
    %3090 = vmatprep.subr.mxu0 0.0
    %3091 = vmatpush1.msra.mxu0 0.0
    %3092 = vmatprep.subr.mxu0 0.0
    %3093 = vmatpush1.msra.mxu0 0.0
    %3094 = vmatprep.subr.mxu0 0.0
    %3095 = vmatpush1.msra.mxu0 0.0
    %3096 = vmatprep.subr.mxu0 %v1946
    %3097 = vmatpush1.msra.mxu0 %v1945
    %3098 = vmatprep.subr.mxu0 %v1942
    %3099 = vmatpush1.msra.mxu0 %v1941
    %3100 = vmatprep.subr.mxu0 %v1938
    %3101 = vmatpush1.msra.mxu0 %v1937
    %3102 = vmatprep.subr.mxu0 %v1934
    %3103 = vmatpush1.msra.mxu0 %v1933
    %3104 = vmatprep.subr.mxu0 %v1930
    %3105 = vmatpush1.msra.mxu0 %v1929
    %3106 = vmatprep.subr.mxu0 %v1926
    %3107 = vmatpush1.msra.mxu0 %v1925
    %3108 = vmatprep.subr.mxu0 %v1922
    %3109 = vmatpush1.msra.mxu0 %v1921
    %3110 = vmatprep.subr.mxu0 %v1918
    %3111 = vmatpush1.msra.mxu0 %v1917
    %3112 = vmatprep.subr.mxu0 %v1914
    %3113 = vmatpush1.msra.mxu0 %v1913
    %3114 = vmatprep.subr.mxu0 %v1910
    %3115 = vmatpush1.msra.mxu0 %v1909
    %3116 = vmatprep.subr.mxu0 %v1906
    %3117 = vmatpush1.msra.mxu0 %v1905
    %3118 = vmatprep.subr.mxu0 %v1902
    %3119 = vmatpush1.msra.mxu0 %v1901
    %3120 = vmatprep.subr.mxu0 0.0
    %3121 = vmatpush2.msra.mxu0 0.0
    %3122 = vmatprep.subr.mxu0 0.0
    %3123 = vmatpush2.msra.mxu0 0.0
    %3124 = vmatprep.subr.mxu0 0.0
    %3125 = vmatpush2.msra.mxu0 0.0
    %3126 = vmatprep.subr.mxu0 0.0
    %3127 = vmatpush2.msra.mxu0 0.0
    %3128 = vmatprep.subr.mxu0 0.0
    %3129 = vmatpush2.msra.mxu0 0.0
    %3130 = vmatprep.subr.mxu0 0.0
    %3131 = vmatpush2.msra.mxu0 0.0
    %3132 = vmatprep.subr.mxu0 0.0
    %3133 = vmatpush2.msra.mxu0 0.0
    %3134 = vmatprep.subr.mxu0 0.0
    %3135 = vmatpush2.msra.mxu0 0.0
    %3136 = vmatprep.subr.mxu0 0.0
    %3137 = vmatpush2.msra.mxu0 0.0
    %3138 = vmatprep.subr.mxu0 0.0
    %3139 = vmatpush2.msra.mxu0 0.0
    %3140 = vmatprep.subr.mxu0 0.0
    %3141 = vmatpush2.msra.mxu0 0.0
    %3142 = vmatprep.subr.mxu0 0.0
    %3143 = vmatpush2.msra.mxu0 0.0
    %3144 = vmatprep.subr.mxu0 0.0
    %3145 = vmatpush2.msra.mxu0 0.0
    %3146 = vmatprep.subr.mxu0 0.0
    %3147 = vmatpush2.msra.mxu0 0.0
    %3148 = vmatprep.subr.mxu0 0.0
    %3149 = vmatpush2.msra.mxu0 0.0
    %3150 = vmatprep.subr.mxu0 0.0
    %3151 = vmatpush2.msra.mxu0 0.0
    %3152 = vmatprep.mubr.f32.mxu0 0.0
    %3153 = vmatmul.mubr.f32.gmra.mxu0 %v3086
    %v3154 = vpop.f32.mrf.mxu0
    %v3155 = vadd.f32 0.0, %v3154
    %v3156 = vpop.f32.mrf.mxu0
    %v3157 = vadd.f32 0.0, %v3156
    %3158 = vdwg.mxu0
    %3159 = vmatprep.subr.mxu0 0.0
    %3160 = vmatpush1.msra.mxu0 0.0
    %3161 = vmatprep.subr.mxu0 0.0
    %3162 = vmatpush1.msra.mxu0 0.0
    %3163 = vmatprep.subr.mxu0 0.0
    %3164 = vmatpush1.msra.mxu0 0.0
    %3165 = vmatprep.subr.mxu0 0.0
    %3166 = vmatpush1.msra.mxu0 0.0
    %3167 = vmatprep.subr.mxu0 %v1948
    %3168 = vmatpush1.msra.mxu0 %v1947
    %3169 = vmatprep.subr.mxu0 %v1944
    %3170 = vmatpush1.msra.mxu0 %v1943
    %3171 = vmatprep.subr.mxu0 %v1940
    %3172 = vmatpush1.msra.mxu0 %v1939
    %3173 = vmatprep.subr.mxu0 %v1936
    %3174 = vmatpush1.msra.mxu0 %v1935
    %3175 = vmatprep.subr.mxu0 %v1932
    %3176 = vmatpush1.msra.mxu0 %v1931
    %3177 = vmatprep.subr.mxu0 %v1928
    %3178 = vmatpush1.msra.mxu0 %v1927
    %3179 = vmatprep.subr.mxu0 %v1924
    %3180 = vmatpush1.msra.mxu0 %v1923
    %3181 = vmatprep.subr.mxu0 %v1920
    %3182 = vmatpush1.msra.mxu0 %v1919
    %3183 = vmatprep.subr.mxu0 %v1916
    %3184 = vmatpush1.msra.mxu0 %v1915
    %3185 = vmatprep.subr.mxu0 %v1912
    %3186 = vmatpush1.msra.mxu0 %v1911
    %3187 = vmatprep.subr.mxu0 %v1908
    %3188 = vmatpush1.msra.mxu0 %v1907
    %3189 = vmatprep.subr.mxu0 %v1904
    %3190 = vmatpush1.msra.mxu0 %v1903
    %3191 = vmatprep.subr.mxu0 0.0
    %3192 = vmatpush2.msra.mxu0 0.0
    %3193 = vmatprep.subr.mxu0 0.0
    %3194 = vmatpush2.msra.mxu0 0.0
    %3195 = vmatprep.subr.mxu0 0.0
    %3196 = vmatpush2.msra.mxu0 0.0
    %3197 = vmatprep.subr.mxu0 0.0
    %3198 = vmatpush2.msra.mxu0 0.0
    %3199 = vmatprep.subr.mxu0 0.0
    %3200 = vmatpush2.msra.mxu0 0.0
    %3201 = vmatprep.subr.mxu0 0.0
    %3202 = vmatpush2.msra.mxu0 0.0
    %3203 = vmatprep.subr.mxu0 0.0
    %3204 = vmatpush2.msra.mxu0 0.0
    %3205 = vmatprep.subr.mxu0 0.0
    %3206 = vmatpush2.msra.mxu0 0.0
    %3207 = vmatprep.subr.mxu0 0.0
    %3208 = vmatpush2.msra.mxu0 0.0
    %3209 = vmatprep.subr.mxu0 0.0
    %3210 = vmatpush2.msra.mxu0 0.0
    %3211 = vmatprep.subr.mxu0 0.0
    %3212 = vmatpush2.msra.mxu0 0.0
    %3213 = vmatprep.subr.mxu0 0.0
    %3214 = vmatpush2.msra.mxu0 0.0
    %3215 = vmatprep.subr.mxu0 0.0
    %3216 = vmatpush2.msra.mxu0 0.0
    %3217 = vmatprep.subr.mxu0 0.0
    %3218 = vmatpush2.msra.mxu0 0.0
    %3219 = vmatprep.subr.mxu0 0.0
    %3220 = vmatpush2.msra.mxu0 0.0
    %3221 = vmatprep.subr.mxu0 0.0
    %3222 = vmatpush2.msra.mxu0 0.0
    %3223 = vmatprep.mubr.f32.mxu0 0.0
    %3224 = vmatmul.mubr.f32.gmra.mxu0 %v3086
    %v3225 = vpop.f32.mrf.mxu0
    %v3226 = vadd.f32 0.0, %v3225
    %v3227 = vpop.f32.mrf.mxu0
    %v3228 = vadd.f32 0.0, %v3227
    %3229 = vdwg.mxu0
    %v3234 = vrot.slane %v3155, 6
    %v3235 = vrot.slane %v3157, 6
    %v3236 = vrot.slane %v3226, 6
    %v3237 = vrot.slane %v3228, 6
    %v3242 = vadd.f32 %v2051, %v3234
    %v3243 = vadd.f32 %v2053, %v3235
    %v3244 = vadd.f32 %v2128, %v3236
    %v3245 = vadd.f32 %v2130, %v3237
    %v3246 = vxor.u32 %v3242, 2147483648
    %v3247 = vxor.u32 %v3243, 2147483648
    %v3248 = vxor.u32 %v3244, 2147483648
    %v3249 = vxor.u32 %v3245, 2147483648
    %v3250 = vmul.f32 %v3246, 1.442695
    %v3251 = vpow.pop %v3250
    %v3252 = vmul.f32 %v3247, 1.442695
    %v3253 = vpow.pop %v3252
    %v3254 = vmul.f32 %v3248, 1.442695
    %v3255 = vpow.pop %v3254
    %v3256 = vmul.f32 %v3249, 1.442695
    %v3257 = vpow.pop %v3256
    %v3258 = vadd.f32 %v3251, 1.0
    %v3259 = vadd.f32 %v3253, 1.0
    %v3260 = vadd.f32 %v3255, 1.0
    %v3261 = vadd.f32 %v3257, 1.0
    %v3262 = vrcp.pop %v3258
    %v3263 = vmul.f32 1.0, %v3262
    %v3264 = vrcp.pop %v3259
    %v3265 = vmul.f32 1.0, %v3264
    %v3266 = vrcp.pop %v3260
    %v3267 = vmul.f32 1.0, %v3266
    %v3268 = vrcp.pop %v3261
    %v3269 = vmul.f32 1.0, %v3268
    %v3270 = vmul.f32 %v3267, 2.0
    %v3271 = vsub.f32 %v3270, 1.0
    %v3273 = vrot.slane %v3081, 6
    %v3275 = vmul.f32 %v3265, %v3273
    %v3276 = vmul.f32 %v3263, %v3271
    %v3277 = vadd.f32 %v3275, %v3276
    %v3278 = vtanh.pop %v3277
    %v3279 = vmul.f32 %v3269, %v3278
    %3280 = vst.msk [vmem:[#allocation3 + $0x8] sm:$0xc] %vm677, %v3279
    %v3282 = vrot.slane %v3279, 2
    %v3283 = vsel %vm299, %v3282, 0
    %3285 = vmatprep.subr.mxu0 0.0
    %3286 = vmatpush1.msra.mxu0 0.0
    %3287 = vmatprep.subr.mxu0 0.0
    %3288 = vmatpush1.msra.mxu0 0.0
    %3289 = vmatprep.subr.mxu0 0.0
    %3290 = vmatpush1.msra.mxu0 0.0
    %3291 = vmatprep.subr.mxu0 0.0
    %3292 = vmatpush1.msra.mxu0 0.0
    %3293 = vmatprep.subr.mxu0 %v1946
    %3294 = vmatpush1.msra.mxu0 %v1945
    %3295 = vmatprep.subr.mxu0 %v1942
    %3296 = vmatpush1.msra.mxu0 %v1941
    %3297 = vmatprep.subr.mxu0 %v1938
    %3298 = vmatpush1.msra.mxu0 %v1937
    %3299 = vmatprep.subr.mxu0 %v1934
    %3300 = vmatpush1.msra.mxu0 %v1933
    %3301 = vmatprep.subr.mxu0 %v1930
    %3302 = vmatpush1.msra.mxu0 %v1929
    %3303 = vmatprep.subr.mxu0 %v1926
    %3304 = vmatpush1.msra.mxu0 %v1925
    %3305 = vmatprep.subr.mxu0 %v1922
    %3306 = vmatpush1.msra.mxu0 %v1921
    %3307 = vmatprep.subr.mxu0 %v1918
    %3308 = vmatpush1.msra.mxu0 %v1917
    %3309 = vmatprep.subr.mxu0 %v1914
    %3310 = vmatpush1.msra.mxu0 %v1913
    %3311 = vmatprep.subr.mxu0 %v1910
    %3312 = vmatpush1.msra.mxu0 %v1909
    %3313 = vmatprep.subr.mxu0 %v1906
    %3314 = vmatpush1.msra.mxu0 %v1905
    %3315 = vmatprep.subr.mxu0 %v1902
    %3316 = vmatpush1.msra.mxu0 %v1901
    %3317 = vmatprep.subr.mxu0 0.0
    %3318 = vmatpush2.msra.mxu0 0.0
    %3319 = vmatprep.subr.mxu0 0.0
    %3320 = vmatpush2.msra.mxu0 0.0
    %3321 = vmatprep.subr.mxu0 0.0
    %3322 = vmatpush2.msra.mxu0 0.0
    %3323 = vmatprep.subr.mxu0 0.0
    %3324 = vmatpush2.msra.mxu0 0.0
    %3325 = vmatprep.subr.mxu0 0.0
    %3326 = vmatpush2.msra.mxu0 0.0
    %3327 = vmatprep.subr.mxu0 0.0
    %3328 = vmatpush2.msra.mxu0 0.0
    %3329 = vmatprep.subr.mxu0 0.0
    %3330 = vmatpush2.msra.mxu0 0.0
    %3331 = vmatprep.subr.mxu0 0.0
    %3332 = vmatpush2.msra.mxu0 0.0
    %3333 = vmatprep.subr.mxu0 0.0
    %3334 = vmatpush2.msra.mxu0 0.0
    %3335 = vmatprep.subr.mxu0 0.0
    %3336 = vmatpush2.msra.mxu0 0.0
    %3337 = vmatprep.subr.mxu0 0.0
    %3338 = vmatpush2.msra.mxu0 0.0
    %3339 = vmatprep.subr.mxu0 0.0
    %3340 = vmatpush2.msra.mxu0 0.0
    %3341 = vmatprep.subr.mxu0 0.0
    %3342 = vmatpush2.msra.mxu0 0.0
    %3343 = vmatprep.subr.mxu0 0.0
    %3344 = vmatpush2.msra.mxu0 0.0
    %3345 = vmatprep.subr.mxu0 0.0
    %3346 = vmatpush2.msra.mxu0 0.0
    %3347 = vmatprep.subr.mxu0 0.0
    %3348 = vmatpush2.msra.mxu0 0.0
    %3349 = vmatprep.mubr.f32.mxu0 0.0
    %3350 = vmatmul.mubr.f32.gmra.mxu0 %v3283
    %v3351 = vpop.f32.mrf.mxu0
    %v3352 = vadd.f32 0.0, %v3351
    %v3353 = vpop.f32.mrf.mxu0
    %v3354 = vadd.f32 0.0, %v3353
    %3355 = vdwg.mxu0
    %3356 = vmatprep.subr.mxu0 0.0
    %3357 = vmatpush1.msra.mxu0 0.0
    %3358 = vmatprep.subr.mxu0 0.0
    %3359 = vmatpush1.msra.mxu0 0.0
    %3360 = vmatprep.subr.mxu0 0.0
    %3361 = vmatpush1.msra.mxu0 0.0
    %3362 = vmatprep.subr.mxu0 0.0
    %3363 = vmatpush1.msra.mxu0 0.0
    %3364 = vmatprep.subr.mxu0 %v1948
    %3365 = vmatpush1.msra.mxu0 %v1947
    %3366 = vmatprep.subr.mxu0 %v1944
    %3367 = vmatpush1.msra.mxu0 %v1943
    %3368 = vmatprep.subr.mxu0 %v1940
    %3369 = vmatpush1.msra.mxu0 %v1939
    %3370 = vmatprep.subr.mxu0 %v1936
    %3371 = vmatpush1.msra.mxu0 %v1935
    %3372 = vmatprep.subr.mxu0 %v1932
    %3373 = vmatpush1.msra.mxu0 %v1931
    %3374 = vmatprep.subr.mxu0 %v1928
    %3375 = vmatpush1.msra.mxu0 %v1927
    %3376 = vmatprep.subr.mxu0 %v1924
    %3377 = vmatpush1.msra.mxu0 %v1923
    %3378 = vmatprep.subr.mxu0 %v1920
    %3379 = vmatpush1.msra.mxu0 %v1919
    %3380 = vmatprep.subr.mxu0 %v1916
    %3381 = vmatpush1.msra.mxu0 %v1915
    %3382 = vmatprep.subr.mxu0 %v1912
    %3383 = vmatpush1.msra.mxu0 %v1911
    %3384 = vmatprep.subr.mxu0 %v1908
    %3385 = vmatpush1.msra.mxu0 %v1907
    %3386 = vmatprep.subr.mxu0 %v1904
    %3387 = vmatpush1.msra.mxu0 %v1903
    %3388 = vmatprep.subr.mxu0 0.0
    %3389 = vmatpush2.msra.mxu0 0.0
    %3390 = vmatprep.subr.mxu0 0.0
    %3391 = vmatpush2.msra.mxu0 0.0
    %3392 = vmatprep.subr.mxu0 0.0
    %3393 = vmatpush2.msra.mxu0 0.0
    %3394 = vmatprep.subr.mxu0 0.0
    %3395 = vmatpush2.msra.mxu0 0.0
    %3396 = vmatprep.subr.mxu0 0.0
    %3397 = vmatpush2.msra.mxu0 0.0
    %3398 = vmatprep.subr.mxu0 0.0
    %3399 = vmatpush2.msra.mxu0 0.0
    %3400 = vmatprep.subr.mxu0 0.0
    %3401 = vmatpush2.msra.mxu0 0.0
    %3402 = vmatprep.subr.mxu0 0.0
    %3403 = vmatpush2.msra.mxu0 0.0
    %3404 = vmatprep.subr.mxu0 0.0
    %3405 = vmatpush2.msra.mxu0 0.0
    %3406 = vmatprep.subr.mxu0 0.0
    %3407 = vmatpush2.msra.mxu0 0.0
    %3408 = vmatprep.subr.mxu0 0.0
    %3409 = vmatpush2.msra.mxu0 0.0
    %3410 = vmatprep.subr.mxu0 0.0
    %3411 = vmatpush2.msra.mxu0 0.0
    %3412 = vmatprep.subr.mxu0 0.0
    %3413 = vmatpush2.msra.mxu0 0.0
    %3414 = vmatprep.subr.mxu0 0.0
    %3415 = vmatpush2.msra.mxu0 0.0
    %3416 = vmatprep.subr.mxu0 0.0
    %3417 = vmatpush2.msra.mxu0 0.0
    %3418 = vmatprep.subr.mxu0 0.0
    %3419 = vmatpush2.msra.mxu0 0.0
    %3420 = vmatprep.mubr.f32.mxu0 0.0
    %3421 = vmatmul.mubr.f32.gmra.mxu0 %v3283
    %v3422 = vpop.f32.mrf.mxu0
    %v3423 = vadd.f32 0.0, %v3422
    %v3424 = vpop.f32.mrf.mxu0
    %v3425 = vadd.f32 0.0, %v3424
    %3426 = vdwg.mxu0
    %v3431 = vrot.slane %v3352, 4
    %v3432 = vrot.slane %v3354, 4
    %v3433 = vrot.slane %v3423, 4
    %v3434 = vrot.slane %v3425, 4
    %v3439 = vadd.f32 %v2051, %v3431
    %v3440 = vadd.f32 %v2053, %v3432
    %v3441 = vadd.f32 %v2128, %v3433
    %v3442 = vadd.f32 %v2130, %v3434
    %v3443 = vxor.u32 %v3439, 2147483648
    %v3444 = vxor.u32 %v3440, 2147483648
    %v3445 = vxor.u32 %v3441, 2147483648
    %v3446 = vxor.u32 %v3442, 2147483648
    %v3447 = vmul.f32 %v3443, 1.442695
    %v3448 = vpow.pop %v3447
    %v3449 = vmul.f32 %v3444, 1.442695
    %v3450 = vpow.pop %v3449
    %v3451 = vmul.f32 %v3445, 1.442695
    %v3452 = vpow.pop %v3451
    %v3453 = vmul.f32 %v3446, 1.442695
    %v3454 = vpow.pop %v3453
    %v3455 = vadd.f32 %v3448, 1.0
    %v3456 = vadd.f32 %v3450, 1.0
    %v3457 = vadd.f32 %v3452, 1.0
    %v3458 = vadd.f32 %v3454, 1.0
    %v3459 = vrcp.pop %v3455
    %v3460 = vmul.f32 1.0, %v3459
    %v3461 = vrcp.pop %v3456
    %v3462 = vmul.f32 1.0, %v3461
    %v3463 = vrcp.pop %v3457
    %v3464 = vmul.f32 1.0, %v3463
    %v3465 = vrcp.pop %v3458
    %v3466 = vmul.f32 1.0, %v3465
    %v3467 = vmul.f32 %v3464, 2.0
    %v3468 = vsub.f32 %v3467, 1.0
    %v3470 = vrot.slane %v3277, 6
    %v3472 = vmul.f32 %v3462, %v3470
    %v3473 = vmul.f32 %v3460, %v3468
    %v3474 = vadd.f32 %v3472, %v3473
    %v3475 = vtanh.pop %v3474
    %v3476 = vmul.f32 %v3466, %v3475
    %3477 = vst.msk [vmem:[#allocation3 + $0x8] sm:$0x30] %vm875, %v3476
    %v3479 = vrot.slane %v3476, 4
    %v3480 = vsel %vm299, %v3479, 0
    %3482 = vmatprep.subr.mxu0 0.0
    %3483 = vmatpush1.msra.mxu0 0.0
    %3484 = vmatprep.subr.mxu0 0.0
    %3485 = vmatpush1.msra.mxu0 0.0
    %3486 = vmatprep.subr.mxu0 0.0
    %3487 = vmatpush1.msra.mxu0 0.0
    %3488 = vmatprep.subr.mxu0 0.0
    %3489 = vmatpush1.msra.mxu0 0.0
    %3490 = vmatprep.subr.mxu0 %v1946
    %3491 = vmatpush1.msra.mxu0 %v1945
    %3492 = vmatprep.subr.mxu0 %v1942
    %3493 = vmatpush1.msra.mxu0 %v1941
    %3494 = vmatprep.subr.mxu0 %v1938
    %3495 = vmatpush1.msra.mxu0 %v1937
    %3496 = vmatprep.subr.mxu0 %v1934
    %3497 = vmatpush1.msra.mxu0 %v1933
    %3498 = vmatprep.subr.mxu0 %v1930
    %3499 = vmatpush1.msra.mxu0 %v1929
    %3500 = vmatprep.subr.mxu0 %v1926
    %3501 = vmatpush1.msra.mxu0 %v1925
    %3502 = vmatprep.subr.mxu0 %v1922
    %3503 = vmatpush1.msra.mxu0 %v1921
    %3504 = vmatprep.subr.mxu0 %v1918
    %3505 = vmatpush1.msra.mxu0 %v1917
    %3506 = vmatprep.subr.mxu0 %v1914
    %3507 = vmatpush1.msra.mxu0 %v1913
    %3508 = vmatprep.subr.mxu0 %v1910
    %3509 = vmatpush1.msra.mxu0 %v1909
    %3510 = vmatprep.subr.mxu0 %v1906
    %3511 = vmatpush1.msra.mxu0 %v1905
    %3512 = vmatprep.subr.mxu0 %v1902
    %3513 = vmatpush1.msra.mxu0 %v1901
    %3514 = vmatprep.subr.mxu0 0.0
    %3515 = vmatpush2.msra.mxu0 0.0
    %3516 = vmatprep.subr.mxu0 0.0
    %3517 = vmatpush2.msra.mxu0 0.0
    %3518 = vmatprep.subr.mxu0 0.0
    %3519 = vmatpush2.msra.mxu0 0.0
    %3520 = vmatprep.subr.mxu0 0.0
    %3521 = vmatpush2.msra.mxu0 0.0
    %3522 = vmatprep.subr.mxu0 0.0
    %3523 = vmatpush2.msra.mxu0 0.0
    %3524 = vmatprep.subr.mxu0 0.0
    %3525 = vmatpush2.msra.mxu0 0.0
    %3526 = vmatprep.subr.mxu0 0.0
    %3527 = vmatpush2.msra.mxu0 0.0
    %3528 = vmatprep.subr.mxu0 0.0
    %3529 = vmatpush2.msra.mxu0 0.0
    %3530 = vmatprep.subr.mxu0 0.0
    %3531 = vmatpush2.msra.mxu0 0.0
    %3532 = vmatprep.subr.mxu0 0.0
    %3533 = vmatpush2.msra.mxu0 0.0
    %3534 = vmatprep.subr.mxu0 0.0
    %3535 = vmatpush2.msra.mxu0 0.0
    %3536 = vmatprep.subr.mxu0 0.0
    %3537 = vmatpush2.msra.mxu0 0.0
    %3538 = vmatprep.subr.mxu0 0.0
    %3539 = vmatpush2.msra.mxu0 0.0
    %3540 = vmatprep.subr.mxu0 0.0
    %3541 = vmatpush2.msra.mxu0 0.0
    %3542 = vmatprep.subr.mxu0 0.0
    %3543 = vmatpush2.msra.mxu0 0.0
    %3544 = vmatprep.subr.mxu0 0.0
    %3545 = vmatpush2.msra.mxu0 0.0
    %3546 = vmatprep.mubr.f32.mxu0 0.0
    %3547 = vmatmul.mubr.f32.gmra.mxu0 %v3480
    %v3548 = vpop.f32.mrf.mxu0
    %v3549 = vadd.f32 0.0, %v3548
    %v3550 = vpop.f32.mrf.mxu0
    %v3551 = vadd.f32 0.0, %v3550
    %3552 = vdwg.mxu0
    %3553 = vmatprep.subr.mxu0 0.0
    %3554 = vmatpush1.msra.mxu0 0.0
    %3555 = vmatprep.subr.mxu0 0.0
    %3556 = vmatpush1.msra.mxu0 0.0
    %3557 = vmatprep.subr.mxu0 0.0
    %3558 = vmatpush1.msra.mxu0 0.0
    %3559 = vmatprep.subr.mxu0 0.0
    %3560 = vmatpush1.msra.mxu0 0.0
    %3561 = vmatprep.subr.mxu0 %v1948
    %3562 = vmatpush1.msra.mxu0 %v1947
    %3563 = vmatprep.subr.mxu0 %v1944
    %3564 = vmatpush1.msra.mxu0 %v1943
    %3565 = vmatprep.subr.mxu0 %v1940
    %3566 = vmatpush1.msra.mxu0 %v1939
    %3567 = vmatprep.subr.mxu0 %v1936
    %3568 = vmatpush1.msra.mxu0 %v1935
    %3569 = vmatprep.subr.mxu0 %v1932
    %3570 = vmatpush1.msra.mxu0 %v1931
    %3571 = vmatprep.subr.mxu0 %v1928
    %3572 = vmatpush1.msra.mxu0 %v1927
    %3573 = vmatprep.subr.mxu0 %v1924
    %3574 = vmatpush1.msra.mxu0 %v1923
    %3575 = vmatprep.subr.mxu0 %v1920
    %3576 = vmatpush1.msra.mxu0 %v1919
    %3577 = vmatprep.subr.mxu0 %v1916
    %3578 = vmatpush1.msra.mxu0 %v1915
    %3579 = vmatprep.subr.mxu0 %v1912
    %3580 = vmatpush1.msra.mxu0 %v1911
    %3581 = vmatprep.subr.mxu0 %v1908
    %3582 = vmatpush1.msra.mxu0 %v1907
    %3583 = vmatprep.subr.mxu0 %v1904
    %3584 = vmatpush1.msra.mxu0 %v1903
    %3585 = vmatprep.subr.mxu0 0.0
    %3586 = vmatpush2.msra.mxu0 0.0
    %3587 = vmatprep.subr.mxu0 0.0
    %3588 = vmatpush2.msra.mxu0 0.0
    %3589 = vmatprep.subr.mxu0 0.0
    %3590 = vmatpush2.msra.mxu0 0.0
    %3591 = vmatprep.subr.mxu0 0.0
    %3592 = vmatpush2.msra.mxu0 0.0
    %3593 = vmatprep.subr.mxu0 0.0
    %3594 = vmatpush2.msra.mxu0 0.0
    %3595 = vmatprep.subr.mxu0 0.0
    %3596 = vmatpush2.msra.mxu0 0.0
    %3597 = vmatprep.subr.mxu0 0.0
    %3598 = vmatpush2.msra.mxu0 0.0
    %3599 = vmatprep.subr.mxu0 0.0
    %3600 = vmatpush2.msra.mxu0 0.0
    %3601 = vmatprep.subr.mxu0 0.0
    %3602 = vmatpush2.msra.mxu0 0.0
    %3603 = vmatprep.subr.mxu0 0.0
    %3604 = vmatpush2.msra.mxu0 0.0
    %3605 = vmatprep.subr.mxu0 0.0
    %3606 = vmatpush2.msra.mxu0 0.0
    %3607 = vmatprep.subr.mxu0 0.0
    %3608 = vmatpush2.msra.mxu0 0.0
    %3609 = vmatprep.subr.mxu0 0.0
    %3610 = vmatpush2.msra.mxu0 0.0
    %3611 = vmatprep.subr.mxu0 0.0
    %3612 = vmatpush2.msra.mxu0 0.0
    %3613 = vmatprep.subr.mxu0 0.0
    %3614 = vmatpush2.msra.mxu0 0.0
    %3615 = vmatprep.subr.mxu0 0.0
    %3616 = vmatpush2.msra.mxu0 0.0
    %3617 = vmatprep.mubr.f32.mxu0 0.0
    %3618 = vmatmul.mubr.f32.gmra.mxu0 %v3480
    %v3619 = vpop.f32.mrf.mxu0
    %v3620 = vadd.f32 0.0, %v3619
    %v3621 = vpop.f32.mrf.mxu0
    %v3622 = vadd.f32 0.0, %v3621
    %3623 = vdwg.mxu0
    %v3628 = vrot.slane %v3549, 2
    %v3629 = vrot.slane %v3551, 2
    %v3630 = vrot.slane %v3620, 2
    %v3631 = vrot.slane %v3622, 2
    %v3636 = vadd.f32 %v2051, %v3628
    %v3637 = vadd.f32 %v2053, %v3629
    %v3638 = vadd.f32 %v2128, %v3630
    %v3639 = vadd.f32 %v2130, %v3631
    %v3640 = vxor.u32 %v3636, 2147483648
    %v3641 = vxor.u32 %v3637, 2147483648
    %v3642 = vxor.u32 %v3638, 2147483648
    %v3643 = vxor.u32 %v3639, 2147483648
    %v3644 = vmul.f32 %v3640, 1.442695
    %v3645 = vpow.pop %v3644
    %v3646 = vmul.f32 %v3641, 1.442695
    %v3647 = vpow.pop %v3646
    %v3648 = vmul.f32 %v3642, 1.442695
    %v3649 = vpow.pop %v3648
    %v3650 = vmul.f32 %v3643, 1.442695
    %v3651 = vpow.pop %v3650
    %v3652 = vadd.f32 %v3645, 1.0
    %v3653 = vadd.f32 %v3647, 1.0
    %v3654 = vadd.f32 %v3649, 1.0
    %v3655 = vadd.f32 %v3651, 1.0
    %v3656 = vrcp.pop %v3652
    %v3657 = vmul.f32 1.0, %v3656
    %v3658 = vrcp.pop %v3653
    %v3659 = vmul.f32 1.0, %v3658
    %v3660 = vrcp.pop %v3654
    %v3661 = vmul.f32 1.0, %v3660
    %v3662 = vrcp.pop %v3655
    %v3663 = vmul.f32 1.0, %v3662
    %v3664 = vmul.f32 %v3661, 2.0
    %v3665 = vsub.f32 %v3664, 1.0
    %v3667 = vrot.slane %v3474, 6
    %v3669 = vmul.f32 %v3659, %v3667
    %v3670 = vmul.f32 %v3657, %v3665
    %v3671 = vadd.f32 %v3669, %v3670
    %v3672 = vtanh.pop %v3671
    %v3673 = vmul.f32 %v3663, %v3672
    %3674 = vst.msk [vmem:[#allocation3 + $0x8] sm:$0xc0] %vm1073, %v3673
    %v3675 = vld [vmem:[#allocation3] sm:$0xff]
    %v3676 = vld [vmem:[#allocation3 + $0x8] sm:$0xff]
    %v3677 = vld [vmem:[%s5] sm:$0xff]
    %v3678 = vld [vmem:[%s5 + $0x8] sm:$0xff]
    %v3679 = vld [vmem:[%s5 + $0x10] sm:$0xff]
    %v3680 = vld [vmem:[%s5 + $0x18] sm:$0xff]
    %v3681 = vld [vmem:[%s5 + $0x20] sm:$0xff]
    %v3682 = vld [vmem:[%s5 + $0x28] sm:$0xff]
    %v3683 = vld [vmem:[%s5 + $0x30] sm:$0xff]
    %v3684 = vld [vmem:[%s5 + $0x38] sm:$0xff]
    %v3685 = vld [vmem:[%s5 + $0x40] sm:$0xff]
    %v3686 = vld [vmem:[%s5 + $0x48] sm:$0xff]
    %v3687 = vld [vmem:[%s5 + $0x50] sm:$0xff]
    %v3688 = vld [vmem:[%s5 + $0x58] sm:$0xff]
    %v3689 = vld [vmem:[%s6] sm:$0x1]
    %v3691 = vlaneseq
    %v3692 = vshrl.u32 %v3691, 7
    %v3693 = vsub.s32 0, %v3692
    %v3694 = vrot.slane %v3689, %v3693
    %v3697 = vsel %vm299, %v3675, 0
    %v3700 = vsel %vm299, %v3676, 0
    %3702 = vmatprep.subr.mxu0 0.0
    %3703 = vmatpush1.msra.mxu0 0.0
    %3704 = vmatprep.subr.mxu0 0.0
    %3705 = vmatpush1.msra.mxu0 0.0
    %3706 = vmatprep.subr.mxu0 0.0
    %3707 = vmatpush1.msra.mxu0 0.0
    %3708 = vmatprep.subr.mxu0 0.0
    %3709 = vmatpush1.msra.mxu0 0.0
    %3710 = vmatprep.subr.mxu0 0.0
    %3711 = vmatpush1.msra.mxu0 %v3688
    %3712 = vmatprep.subr.mxu0 0.0
    %3713 = vmatpush1.msra.mxu0 %v3687
    %3714 = vmatprep.subr.mxu0 0.0
    %3715 = vmatpush1.msra.mxu0 %v3686
    %3716 = vmatprep.subr.mxu0 0.0
    %3717 = vmatpush1.msra.mxu0 %v3685
    %3718 = vmatprep.subr.mxu0 0.0
    %3719 = vmatpush1.msra.mxu0 %v3684
    %3720 = vmatprep.subr.mxu0 0.0
    %3721 = vmatpush1.msra.mxu0 %v3683
    %3722 = vmatprep.subr.mxu0 0.0
    %3723 = vmatpush1.msra.mxu0 %v3682
    %3724 = vmatprep.subr.mxu0 0.0
    %3725 = vmatpush1.msra.mxu0 %v3681
    %3726 = vmatprep.subr.mxu0 0.0
    %3727 = vmatpush1.msra.mxu0 %v3680
    %3728 = vmatprep.subr.mxu0 0.0
    %3729 = vmatpush1.msra.mxu0 %v3679
    %3730 = vmatprep.subr.mxu0 0.0
    %3731 = vmatpush1.msra.mxu0 %v3678
    %3732 = vmatprep.subr.mxu0 0.0
    %3733 = vmatpush1.msra.mxu0 %v3677
    %3734 = vmatprep.subr.mxu0 0.0
    %3735 = vmatpush2.msra.mxu0 0.0
    %3736 = vmatprep.subr.mxu0 0.0
    %3737 = vmatpush2.msra.mxu0 0.0
    %3738 = vmatprep.subr.mxu0 0.0
    %3739 = vmatpush2.msra.mxu0 0.0
    %3740 = vmatprep.subr.mxu0 0.0
    %3741 = vmatpush2.msra.mxu0 0.0
    %3742 = vmatprep.subr.mxu0 0.0
    %3743 = vmatpush2.msra.mxu0 0.0
    %3744 = vmatprep.subr.mxu0 0.0
    %3745 = vmatpush2.msra.mxu0 0.0
    %3746 = vmatprep.subr.mxu0 0.0
    %3747 = vmatpush2.msra.mxu0 0.0
    %3748 = vmatprep.subr.mxu0 0.0
    %3749 = vmatpush2.msra.mxu0 0.0
    %3750 = vmatprep.subr.mxu0 0.0
    %3751 = vmatpush2.msra.mxu0 0.0
    %3752 = vmatprep.subr.mxu0 0.0
    %3753 = vmatpush2.msra.mxu0 0.0
    %3754 = vmatprep.subr.mxu0 0.0
    %3755 = vmatpush2.msra.mxu0 0.0
    %3756 = vmatprep.subr.mxu0 0.0
    %3757 = vmatpush2.msra.mxu0 0.0
    %3758 = vmatprep.subr.mxu0 0.0
    %3759 = vmatpush2.msra.mxu0 0.0
    %3760 = vmatprep.subr.mxu0 0.0
    %3761 = vmatpush2.msra.mxu0 0.0
    %3762 = vmatprep.subr.mxu0 0.0
    %3763 = vmatpush2.msra.mxu0 0.0
    %3764 = vmatprep.subr.mxu0 0.0
    %3765 = vmatpush2.msra.mxu0 0.0
    %3766 = vmatprep.mubr.f32.mxu0 0.0
    %3767 = vmatmul.mubr.f32.gmra.mxu0 %v3697
    %v3768 = vpop.f32.mrf.mxu0
    %v3769 = vadd.f32 %v3694, %v3768
    %v3770 = vpop.f32.mrf.mxu0
    %3771 = vmatprep.mubr.f32.mxu0 0.0
    %3772 = vmatmul.mubr.f32.gmra.mxu0 %v3700
    %v3773 = vpop.f32.mrf.mxu0
    %v3774 = vadd.f32 %v3694, %v3773
    %v3775 = vpop.f32.mrf.mxu0
    %3776 = vdwg.mxu0
    %3777 = vst [vmem:[%s7] sm:$0xff] %v3769
    %3778 = vst [vmem:[%s7 + $0x8] sm:$0xff] %v3774
    // Predicated region
    $region38: #{_forward_impl.1} parent=1 // pred_check
      _
    $region39: #{_forward_impl.1} parent=1 // pred_check_branch
      %3780 = sbr.rel (0) target = $region41
    $region40: #{_forward_impl.1} parent=1 // pred_region
      _
    $region41: #{_forward_impl.1} parent=1 // pred_fallthru
      _
    // Predicated region
    $region42: #{_forward_impl.1} parent=1 // pred_check
      _
    $region43: #{_forward_impl.1} parent=1 // pred_check_branch
      %3782 = sbr.rel (0) target = $region45
    $region44: #{_forward_impl.1} parent=1 // pred_region
      _
    $region45: #{_forward_impl.1} parent=1 // pred_fallthru
      _
    %3783 = vsyncpa [#allocation5], 1
    %3784 = vsyncpa [#allocation7], 1

</llo_original>
